<compile_context>
chip_gen: v7x
topology: tpu7x:2x2x1
jax: 0.10.0
libtpu: 0.0.40
codegen_flags: <defaults>
</compile_context>

<pallas_src>
import functools
import math

import jax
import jax.numpy as jnp
from jax.experimental import pallas as pl
from jax.experimental.pallas import tpu as pltpu


# ----------------------------------------------------------------------------
# Parameter / buffer setup (deterministic, in-script)
# ----------------------------------------------------------------------------
def trunc_normal(key, shape, std=0.02, a=-2.0, b=2.0, mean=0.0):
    # Same algorithm as the PyTorch trunc_normal_ in the module.
    def norm_cdf(x):
        return (1.0 + math.erf(x / math.sqrt(2.0))) / 2.0

    lo = norm_cdf((a - mean) / std)
    hi = norm_cdf((b - mean) / std)
    u = jax.random.uniform(key, shape, jnp.float32, 2 * lo - 1, 2 * hi - 1)
    x = jax.scipy.special.erfinv(u) * (std * math.sqrt(2.0)) + mean
    return jnp.clip(x, a, b)


def make_relative_position_index(window_size):
    Wh, Ww = window_size
    coords_h = jnp.arange(Wh)
    coords_w = jnp.arange(Ww)
    coords = jnp.stack(jnp.meshgrid(coords_h, coords_w, indexing="ij"))  # (2, Wh, Ww)
    coords_flatten = coords.reshape(2, -1)                               # (2, N)
    rel = coords_flatten[:, :, None] - coords_flatten[:, None, :]        # (2, N, N)
    rel = jnp.transpose(rel, (1, 2, 0))                                  # (N, N, 2)
    rc0 = rel[..., 0] + (Wh - 1)
    rc1 = rel[..., 1] + (Ww - 1)
    rc0 = rc0 * (2 * Ww - 1)
    return rc0 + rc1                                                     # (N, N) int32


def init_window_attention_params(key, dim, window_size, num_heads):
    Wh, Ww = window_size
    k1, k2, k3, k4, k5 = jax.random.split(key, 5)
    table_rows = (2 * Wh - 1) * (2 * Ww - 1)
    params = {
        # relative position bias table: ((2Wh-1)*(2Ww-1), nH)
        "rel_pos_table": trunc_normal(k1, (table_rows, num_heads), std=0.02),
        # qkv linear: weight (C, 3C) [already transposed for x @ W], bias (3C,)
        "w_qkv": jax.random.normal(k2, (dim, 3 * dim), jnp.float32) * 0.02,
        "b_qkv": jax.random.normal(k3, (3 * dim,), jnp.float32) * 0.02,
        # output projection: weight (C, C), bias (C,)
        "w_proj": jax.random.normal(k4, (dim, dim), jnp.float32) * 0.02,
        "b_proj": jax.random.normal(k5, (dim,), jnp.float32) * 0.02,
    }
    return params


# ----------------------------------------------------------------------------
# VMEM estimate + window-batch (tile) selection
# ----------------------------------------------------------------------------
def _vmem_estimate(rows, Cp, nH, hd, N, wb, mb):
    """Per-step VMEM need: double-buffered blocks + in-kernel temporaries."""
    io = 2 * rows * Cp * 4 * 2                          # x + out blocks, 2x-buffered f32
    wts = 2 * (Cp * 3 * Cp * 2                          # w_qkv bf16
               + nH * hd * Cp * 2                       # w_proj (per-head) bf16
               + 4 * Cp * 4                             # biases f32
               + nH * mb * N * N * 4)                   # bias (+mask) block f32
    tmp = (rows * 3 * Cp * 4                            # qkv f32
           + rows * Cp * 2                              # x bf16 cast
           + rows * Cp * 4                              # output accumulator f32
           + 3 * rows * hd * 2                          # per-head q/k/v bf16
           + 4 * wb * N * N * 4                         # per-head logits / softmax f32
           + wb * N * hd * 4)                           # per-head attention output f32
    return int(1.2 * (io + wts + tmp))


def _choose_window_batch(B_, N, nW, Cp, nH, hd, target_rows=512,
                         vmem_cap=36 * 2 ** 20):
    """Pick how many windows to process per grid step.

    Constraints: Wb divides B_; (Wb*N) % 8 == 0 (sublane alignment of the row
    block, needed e.g. for 7x7 windows) unless Wb == B_ (full-array block); with a
    mask, either Wb divides nW (block selected via index_map) or nW divides Wb
    (mask tiled once in the wrapper).  Preference: ~target_rows rows per step,
    even grid length >= 2 (feeds both v7x TensorCores, no odd tail), all under a
    VMEM budget that leaves headroom on v7x's 64 MiB.
    """
    def structural_ok(w):
        if B_ % w:
            return False
        if (w * N) % 8 != 0 and w != B_:
            return False
        if nW is not None and not (nW % w == 0 or w % nW == 0):
            return False
        return True

    cands = [w for w in range(1, B_ + 1) if structural_ok(w)]   # B_ always qualifies

    def need(w):
        mb = 1 if nW is None else w
        return _vmem_estimate(w * N, Cp, nH, hd, N, w, mb)

    fit = [w for w in cands if need(w) <= vmem_cap] or [min(cands)]

    def score(w):
        rows = w * N
        grid = B_ // w
        over = rows > target_rows
        nice_grid = grid >= 2 and grid % 2 == 0
        return (1 if over else 0,
                0 if nice_grid else 1,
                rows if over else -rows)

    return min(fit, key=score)


# ----------------------------------------------------------------------------
# Pallas kernel
# ----------------------------------------------------------------------------
def _window_attn_kernel(x_ref, wqkv_ref, bqkv_ref, bm_ref, wprojh_ref, bproj_ref,
                        o_ref, *, wb, seq, c_pad, num_heads, head_dim,
                        mxu_dtype, exact_softmax):
    # Refs:
    #   x_ref:      (wb*N, Cp)        activations for wb windows (flattened rows)
    #   wqkv_ref:   (Cp, 3Cp)         bf16, qk scale folded into the q columns
    #   bqkv_ref:   (1, 3Cp)          f32
    #   bm_ref:     (nH, mb, N, N)    f32 rel-pos bias (+ additive mask), mb in {1, wb}
    #   wprojh_ref: (nH, hd, Cp)      bf16 output projection, split per head
    #   bproj_ref:  (1, Cp)           f32
    #   o_ref:      (wb*N, Cp)
    N = seq
    Cp = c_pad
    nH = num_heads
    hd = head_dim
    rows = wb * N

    # ---- QKV projection: one big (rows, Cp) @ (Cp, 3Cp) matmul, f32 accumulate.
    x = x_ref[...].astype(mxu_dtype)
    qkv = jnp.dot(x, wqkv_ref[...], preferred_element_type=jnp.float32)
    qkv = qkv + bqkv_ref[...]                                          # (rows, 3Cp) f32

    # ---- per-head attention; head merge folded into the projection accumulation.
    #      No stack / concat relayouts; softmax temporaries are (wb, N, N) per head,
    #      bounding the live VMEM footprint.  Slices of the next head overlap with
    #      the MXU work of the current one.
    y = jnp.zeros((rows, Cp), jnp.float32)
    for h in range(nH):
        q0 = h * hd
        qh = qkv[:, q0:q0 + hd].reshape(wb, N, hd).astype(mxu_dtype)
        kh = qkv[:, Cp + q0:Cp + q0 + hd].reshape(wb, N, hd).astype(mxu_dtype)
        vh = qkv[:, 2 * Cp + q0:2 * Cp + q0 + hd].reshape(wb, N, hd).astype(mxu_dtype)

        # logits for this head, batched over the wb windows
        s = jnp.einsum("wnd,wmd->wnm", qh, kh,
                       preferred_element_type=jnp.float32)             # (wb, N, N)
        s = s + bm_ref[h]                                               # bias (+ mask)

        # numerically stable softmax (f32)
        s = s - jnp.max(s, axis=-1, keepdims=True)
        e = jnp.exp(s)
        denom = jnp.sum(e, axis=-1, keepdims=True)
        if exact_softmax:
            p = e / denom
        else:
            p = e * pl.reciprocal(denom, approx=True)

        # attention-weighted values, then accumulate this head's projection slab
        oh = jnp.einsum("wnm,wmd->wnd", p.astype(mxu_dtype), vh,
                        preferred_element_type=jnp.float32)             # (wb, N, hd)
        y = y + jnp.dot(oh.reshape(rows, hd).astype(mxu_dtype), wprojh_ref[h],
                        preferred_element_type=jnp.float32)             # (rows, Cp)

    o_ref[...] = (y + bproj_ref[...]).astype(o_ref.dtype)


# ----------------------------------------------------------------------------
# Wrapper
# ----------------------------------------------------------------------------
def window_attention(x, params, window_size, num_heads, mask=None, qk_scale=None,
                     window_block=None, exact_softmax=False):
    """Pallas forward pass matching WindowAttention.forward (dropout p=0)."""
    B_, N, C = x.shape
    Wh, Ww = window_size
    assert N == Wh * Ww
    assert C % num_heads == 0
    head_dim = C // num_heads
    scale = float(qk_scale if qk_scale is not None else head_dim ** (-0.5))

    nW = None
    if mask is not None:
        nW = mask.shape[0]
        assert B_ % nW == 0

    # Lane-dense channel padding: Cp = multiple of 128.  Real channels stay at the
    # front of each q/k/v region and of the output; the padded tail is zero-weighted
    # and never read by the per-head slices, so results are unchanged.
    Cp = ((C + 127) // 128) * 128

    Wb = (window_block if window_block is not None
          else _choose_window_batch(B_, N, nW, Cp, num_heads, head_dim))
    assert B_ % Wb == 0
    if Wb != B_:
        assert (Wb * N) % 8 == 0, "window block must give sublane-aligned rows"
    if nW is not None:
        assert (nW % Wb == 0) or (Wb % nW == 0)
    grid = (B_ // Wb,)

    mxu_dtype = jnp.bfloat16
    f32 = jnp.float32

    # ---- weights: fold qk scale into the q columns, pad channels, pre-cast bf16.
    w_qkv = params["w_qkv"].astype(f32)
    b_qkv = params["b_qkv"].astype(f32)
    wq, wk, wv = w_qkv[:, :C] * scale, w_qkv[:, C:2 * C], w_qkv[:, 2 * C:]
    bq, bk, bv = b_qkv[:C] * scale, b_qkv[C:2 * C], b_qkv[2 * C:]
    w_qkv_p = jnp.zeros((Cp, 3 * Cp), f32)
    w_qkv_p = w_qkv_p.at[:C, 0:C].set(wq)
    w_qkv_p = w_qkv_p.at[:C, Cp:Cp + C].set(wk)
    w_qkv_p = w_qkv_p.at[:C, 2 * Cp:2 * Cp + C].set(wv)
    w_qkv_p = w_qkv_p.astype(mxu_dtype)
    b_qkv_p = jnp.zeros((1, 3 * Cp), f32)
    b_qkv_p = b_qkv_p.at[0, 0:C].set(bq)
    b_qkv_p = b_qkv_p.at[0, Cp:Cp + C].set(bk)
    b_qkv_p = b_qkv_p.at[0, 2 * Cp:2 * Cp + C].set(bv)

    # Output projection reshaped per head so the head merge happens inside the MXU
    # contraction (rows of w_proj are ordered (head, head_dim), like the reference).
    w_proj_h = jnp.zeros((num_heads, head_dim, Cp), f32)
    w_proj_h = w_proj_h.at[:, :, :C].set(
        params["w_proj"].astype(f32).reshape(num_heads, head_dim, C))
    w_proj_h = w_proj_h.astype(mxu_dtype)
    b_proj_p = jnp.zeros((1, Cp), f32).at[0, :C].set(params["b_proj"].astype(f32))

    # ---- relative position bias (+ additive mask) pre-combined in the wrapper.
    #      Layout (nH, mb, N, N) so the kernel indexes the head on the leading axis.
    rel_idx = make_relative_position_index(window_size)
    bias = params["rel_pos_table"][rel_idx.reshape(-1)]
    bias = bias.reshape(N, N, num_heads).transpose(2, 0, 1).astype(f32)  # (nH, N, N)
    if mask is None:
        bm = bias[:, None]                                               # (nH, 1, N, N)
        mb = 1
        bm_index = lambda g: (0, 0, 0, 0)
    else:
        bm = bias[:, None] + mask.astype(f32)[None]                      # (nH, nW, N, N)
        mb = Wb
        if Wb % nW == 0:
            # One resident (nH, Wb, N, N) tile covering Wb/nW full mask repeats.
            bm = jnp.tile(bm, (1, Wb // nW, 1, 1))
            bm_index = lambda g: (0, 0, 0, 0)
        else:
            # Wb divides nW: select the right (nH, Wb, N, N) block via the index_map.
            nblk = nW // Wb
            bm_index = lambda g: (0, g % nblk, 0, 0)

    # ---- lane-dense activations: pad x channels to Cp (wrapper-side layout plumbing).
    x2 = x.reshape(B_ * N, C)
    if Cp != C:
        x2 = jnp.zeros((B_ * N, Cp), x.dtype).at[:, :C].set(x2)

    in_specs = [
        pl.BlockSpec((Wb * N, Cp), lambda g: (g, 0)),                    # x rows
        pl.BlockSpec((Cp, 3 * Cp), lambda g: (0, 0)),                    # w_qkv
        pl.BlockSpec((1, 3 * Cp), lambda g: (0, 0)),                     # b_qkv
        pl.BlockSpec((num_heads, mb, N, N), bm_index),                   # bias (+ mask)
        pl.BlockSpec((num_heads, head_dim, Cp), lambda g: (0, 0, 0)),    # w_proj per head
        pl.BlockSpec((1, Cp), lambda g: (0, 0)),                         # b_proj
    ]
    out_specs = pl.BlockSpec((Wb * N, Cp), lambda g: (g, 0))

    vmem_need = _vmem_estimate(Wb * N, Cp, num_heads, head_dim, N, Wb, mb)
    # Headroom above the estimate, but stay safely under v7x's 64 MiB physical VMEM
    # (v5e/v6e have 128 MiB so this is always valid there too).
    vmem_limit = int(min(max(32 * 2 ** 20, 2 * vmem_need), 56 * 2 ** 20))

    kernel = functools.partial(
        _window_attn_kernel, wb=Wb, seq=N, c_pad=Cp, num_heads=num_heads,
        head_dim=head_dim, mxu_dtype=mxu_dtype, exact_softmax=exact_softmax)

    out = pl.pallas_call(
        kernel,
        out_shape=jax.ShapeDtypeStruct((B_ * N, Cp), x.dtype),
        grid_spec=pltpu.PrefetchScalarGridSpec(
            num_scalar_prefetch=0,
            grid=grid,
            in_specs=in_specs,
            out_specs=out_specs,
        ),
        compiler_params=pltpu.CompilerParams(
            dimension_semantics=("parallel",),
            vmem_limit_bytes=vmem_limit),
    )(x2, w_qkv_p, b_qkv_p, bm, w_proj_h, b_proj_p)

    if Cp != C:
        out = out[:, :C]
    return out.reshape(B_, N, C)
    # TODO(synk): attn_drop / proj_drop are identity at the default p=0.0 and are
    # therefore omitted.


# ----------------------------------------------------------------------------
# Pure-JAX reference (mirrors the PyTorch forward, full f32) for verification
# ----------------------------------------------------------------------------
def window_attention_ref(x, params, window_size, num_heads, mask=None, qk_scale=None):
    B_, N, C = x.shape
    head_dim = C // num_heads
    scale = qk_scale if qk_scale is not None else head_dim ** (-0.5)

    qkv = x @ params["w_qkv"] + params["b_qkv"]                        # (B_, N, 3C)
    qkv = qkv.reshape(B_, N, 3, num_heads, head_dim).transpose(2, 0, 3, 1, 4)
    q, k, v = qkv[0], qkv[1], qkv[2]                                   # (B_, nH, N, hd)
    q = q * scale
    attn = jnp.einsum("bhnd,bhmd->bhnm", q, k)                         # (B_, nH, N, N)

    rel_idx = make_relative_position_index(window_size)
    bias = params["rel_pos_table"][rel_idx.reshape(-1)]
    bias = bias.reshape(N, N, num_heads).transpose(2, 0, 1)            # (nH, N, N)
    attn = attn + bias[None]

    if mask is not None:
        nW = mask.shape[0]
        attn = attn.reshape(B_ // nW, nW, num_heads, N, N) + mask[None, :, None]
        attn = attn.reshape(-1, num_heads, N, N)
    attn = jax.nn.softmax(attn, axis=-1)

    out = jnp.einsum("bhnm,bhmd->bhnd", attn, v)                       # (B_, nH, N, hd)
    out = out.transpose(0, 2, 1, 3).reshape(B_, N, C)
    out = out @ params["w_proj"] + params["b_proj"]
    return out


# ----------------------------------------------------------------------------
if __name__ == "__main__":
    # Small shapes: dim=32, heads=4 (head_dim=8), window=(4,4) => N=16,
    # batch B=2 with nW=4 windows per image => B_ = 8.
    dim = 32
    num_heads = 4
    window_size = (4, 4)
    N = window_size[0] * window_size[1]
    nW = 4
    B = 2
    B_ = B * nW

    key = jax.random.PRNGKey(0)
    kx, kp, km = jax.random.split(key, 3)

    x = jax.random.normal(kx, (B_, N, dim), jnp.float32)
    params = init_window_attention_params(kp, dim, window_size, num_heads)

    # Deterministic 0 / -100 shifted-window-style mask, shape (nW, N, N).
    mask_bits = jax.random.bernoulli(km, 0.25, (nW, N, N))
    mask = jnp.where(mask_bits, jnp.float32(-100.0), jnp.float32(0.0))

    # Run kernel (with mask and without).
    out_masked = window_attention(x, params, window_size, num_heads, mask=mask)
    out_nomask = window_attention(x, params, window_size, num_heads, mask=None)
    jax.block_until_ready(out_masked)
    jax.block_until_ready(out_nomask)

    # Verify against pure-f32 JAX reference of the PyTorch forward.  The kernel uses
    # bf16 MXU inputs with f32 accumulation (and an approximate softmax reciprocal),
    # so tolerances are set accordingly.
    ref_masked = window_attention_ref(x, params, window_size, num_heads, mask=mask)
    ref_nomask = window_attention_ref(x, params, window_size, num_heads, mask=None)

    assert jnp.allclose(out_masked, ref_masked, atol=3e-3, rtol=2e-2), (
        float(jnp.max(jnp.abs(out_masked - ref_masked))))
    assert jnp.allclose(out_nomask, ref_nomask, atol=3e-3, rtol=2e-2), (
        float(jnp.max(jnp.abs(out_nomask - ref_nomask))))

    print("KERNEL_OK")
</pallas_src>

<mosaic_0001>
module attributes {stable_mosaic.version = 11 : i64} {
  func.func @_window_attn_kernel(%arg0: i32, %arg1: memref<64x128xf32, #tpu.memory_space<vmem>>, %arg2: memref<128x384xbf16, #tpu.memory_space<vmem>>, %arg3: memref<1x384xf32, #tpu.memory_space<vmem>>, %arg4: memref<4x4x16x16xf32, #tpu.memory_space<vmem>>, %arg5: memref<4x8x128xbf16, #tpu.memory_space<vmem>>, %arg6: memref<1x128xf32, #tpu.memory_space<vmem>>, %arg7: memref<64x128xf32, #tpu.memory_space<vmem>>) attributes {dimension_semantics = [#tpu.dimension_semantics<parallel>], iteration_bounds = array<i64: 2>, scalar_prefetch = 0 : i64, scratch_operands = 0 : i64, tpu.core_type = #tpu.core_type<tc>, window_params = [{transform_indices = @transform_0, window_bounds = array<i64: 64, 128>}, {pipeline_mode = #tpu.pipeline_mode<synchronous>, transform_indices = @transform_1, window_bounds = array<i64: 128, 384>}, {pipeline_mode = #tpu.pipeline_mode<synchronous>, transform_indices = @transform_2, window_bounds = array<i64: 1, 384>}, {pipeline_mode = #tpu.pipeline_mode<synchronous>, transform_indices = @transform_3, window_bounds = array<i64: 4, 4, 16, 16>}, {pipeline_mode = #tpu.pipeline_mode<synchronous>, transform_indices = @transform_4, window_bounds = array<i64: 4, 8, 128>}, {pipeline_mode = #tpu.pipeline_mode<synchronous>, transform_indices = @transform_5, window_bounds = array<i64: 1, 128>}, {transform_indices = @transform_6, window_bounds = array<i64: 64, 128>}]} {
    %c0 = arith.constant 0 : index
    %c0_0 = arith.constant 0 : index
    %0 = vector.load %arg1[%c0, %c0_0] : memref<64x128xf32, #tpu.memory_space<vmem>>, vector<64x128xf32>
    %1 = arith.truncf %0 : vector<64x128xf32> to vector<64x128xbf16>
    %c0_1 = arith.constant 0 : index
    %c0_2 = arith.constant 0 : index
    %2 = vector.load %arg2[%c0_1, %c0_2] : memref<128x384xbf16, #tpu.memory_space<vmem>>, vector<128x384xbf16>
    %cst = arith.constant dense<0.000000e+00> : vector<64x384xf32>
    %3 = tpu.matmul %1, %2, %cst {dimension_numbers = #tpu.dot_dimension_numbers<[1], [0], [0], [1], [0, 0, 1, 1], [], []>} : vector<64x128xbf16>, vector<128x384xbf16>, vector<64x384xf32> -> vector<64x384xf32>
    %c0_3 = arith.constant 0 : index
    %c0_4 = arith.constant 0 : index
    %4 = vector.load %arg3[%c0_3, %c0_4] : memref<1x384xf32, #tpu.memory_space<vmem>>, vector<1x384xf32>
    %5 = vector.broadcast %4 : vector<1x384xf32> to vector<64x384xf32>
    %6 = arith.addf %3, %5 : vector<64x384xf32>
    %cst_5 = arith.constant 0.000000e+00 : f32
    %7 = vector.broadcast %cst_5 : f32 to vector<64x128xf32>
    %8 = vector.extract_strided_slice %6 {offsets = [0, 0], sizes = [64, 8], strides = [1, 1]} : vector<64x384xf32> to vector<64x8xf32>
    %9 = vector.shape_cast %8 : vector<64x8xf32> to vector<4x16x8xf32>
    %10 = arith.truncf %9 : vector<4x16x8xf32> to vector<4x16x8xbf16>
    %11 = vector.extract_strided_slice %6 {offsets = [0, 128], sizes = [64, 8], strides = [1, 1]} : vector<64x384xf32> to vector<64x8xf32>
    %12 = vector.shape_cast %11 : vector<64x8xf32> to vector<4x16x8xf32>
    %13 = arith.truncf %12 : vector<4x16x8xf32> to vector<4x16x8xbf16>
    %14 = vector.extract_strided_slice %6 {offsets = [0, 256], sizes = [64, 8], strides = [1, 1]} : vector<64x384xf32> to vector<64x8xf32>
    %15 = vector.shape_cast %14 : vector<64x8xf32> to vector<4x16x8xf32>
    %16 = arith.truncf %15 : vector<4x16x8xf32> to vector<4x16x8xbf16>
    "tpu.trace_start"() <{level = 10 : i32, message = "wnd,wmd->wnm"}> : () -> ()
    %cst_6 = arith.constant dense<0.000000e+00> : vector<4x16x16xf32>
    %17 = tpu.matmul %10, %13, %cst_6 {dimension_numbers = #tpu.dot_dimension_numbers<[2], [2], [1], [1], [0, 0, 0, 1, 1, 1], [0], [0]>} : vector<4x16x8xbf16>, vector<4x16x8xbf16>, vector<4x16x16xf32> -> vector<4x16x16xf32>
    "tpu.trace_stop"() : () -> ()
    %c0_7 = arith.constant 0 : index
    %c0_8 = arith.constant 0 : index
    %c0_9 = arith.constant 0 : index
    %c0_10 = arith.constant 0 : index
    %18 = vector.load %arg4[%c0_7, %c0_8, %c0_9, %c0_10] : memref<4x4x16x16xf32, #tpu.memory_space<vmem>>, vector<1x4x16x16xf32>
    %19 = vector.shape_cast %18 : vector<1x4x16x16xf32> to vector<4x16x16xf32>
    %20 = arith.addf %17, %19 : vector<4x16x16xf32>
    %cst_11 = arith.constant dense<0xFF800000> : vector<4x16xf32>
    %21 = vector.multi_reduction <maximumf>, %20, %cst_11 [2] : vector<4x16x16xf32> to vector<4x16xf32>
    %22 = vector.shape_cast %21 : vector<4x16xf32> to vector<4x16x1xf32>
    %23 = vector.broadcast %22 : vector<4x16x1xf32> to vector<4x16x16xf32>
    %24 = arith.subf %20, %23 : vector<4x16x16xf32>
    %25 = math.exp %24 : vector<4x16x16xf32>
    %cst_12 = arith.constant dense<0.000000e+00> : vector<4x16xf32>
    %26 = vector.multi_reduction <add>, %25, %cst_12 [2] : vector<4x16x16xf32> to vector<4x16xf32>
    %27 = vector.shape_cast %26 : vector<4x16xf32> to vector<4x16x1xf32>
    %28 = tpu.reciprocal %27 {approx = true} : vector<4x16x1xf32> -> vector<4x16x1xf32>
    %29 = vector.broadcast %28 : vector<4x16x1xf32> to vector<4x16x16xf32>
    %30 = arith.mulf %25, %29 : vector<4x16x16xf32>
    %31 = arith.truncf %30 : vector<4x16x16xf32> to vector<4x16x16xbf16>
    "tpu.trace_start"() <{level = 10 : i32, message = "wnm,wmd->wnd"}> : () -> ()
    %cst_13 = arith.constant dense<0.000000e+00> : vector<4x16x8xf32>
    %32 = tpu.matmul %31, %16, %cst_13 {dimension_numbers = #tpu.dot_dimension_numbers<[2], [1], [1], [2], [0, 0, 0, 1, 1, 2], [0], [0]>} : vector<4x16x16xbf16>, vector<4x16x8xbf16>, vector<4x16x8xf32> -> vector<4x16x8xf32>
    "tpu.trace_stop"() : () -> ()
    %33 = vector.shape_cast %32 : vector<4x16x8xf32> to vector<64x8xf32>
    %34 = arith.truncf %33 : vector<64x8xf32> to vector<64x8xbf16>
    %c0_14 = arith.constant 0 : index
    %c0_15 = arith.constant 0 : index
    %c0_16 = arith.constant 0 : index
    %35 = vector.load %arg5[%c0_14, %c0_15, %c0_16] : memref<4x8x128xbf16, #tpu.memory_space<vmem>>, vector<1x8x128xbf16>
    %36 = vector.shape_cast %35 : vector<1x8x128xbf16> to vector<8x128xbf16>
    %cst_17 = arith.constant dense<0.000000e+00> : vector<64x128xf32>
    %37 = tpu.matmul %34, %36, %cst_17 {dimension_numbers = #tpu.dot_dimension_numbers<[1], [0], [0], [1], [0, 0, 1, 1], [], []>} : vector<64x8xbf16>, vector<8x128xbf16>, vector<64x128xf32> -> vector<64x128xf32>
    %38 = arith.addf %7, %37 : vector<64x128xf32>
    %39 = vector.extract_strided_slice %6 {offsets = [0, 8], sizes = [64, 8], strides = [1, 1]} : vector<64x384xf32> to vector<64x8xf32>
    %40 = vector.shape_cast %39 : vector<64x8xf32> to vector<4x16x8xf32>
    %41 = arith.truncf %40 : vector<4x16x8xf32> to vector<4x16x8xbf16>
    %42 = vector.extract_strided_slice %6 {offsets = [0, 136], sizes = [64, 8], strides = [1, 1]} : vector<64x384xf32> to vector<64x8xf32>
    %43 = vector.shape_cast %42 : vector<64x8xf32> to vector<4x16x8xf32>
    %44 = arith.truncf %43 : vector<4x16x8xf32> to vector<4x16x8xbf16>
    %45 = vector.extract_strided_slice %6 {offsets = [0, 264], sizes = [64, 8], strides = [1, 1]} : vector<64x384xf32> to vector<64x8xf32>
    %46 = vector.shape_cast %45 : vector<64x8xf32> to vector<4x16x8xf32>
    %47 = arith.truncf %46 : vector<4x16x8xf32> to vector<4x16x8xbf16>
    "tpu.trace_start"() <{level = 10 : i32, message = "wnd,wmd->wnm"}> : () -> ()
    %cst_18 = arith.constant dense<0.000000e+00> : vector<4x16x16xf32>
    %48 = tpu.matmul %41, %44, %cst_18 {dimension_numbers = #tpu.dot_dimension_numbers<[2], [2], [1], [1], [0, 0, 0, 1, 1, 1], [0], [0]>} : vector<4x16x8xbf16>, vector<4x16x8xbf16>, vector<4x16x16xf32> -> vector<4x16x16xf32>
    "tpu.trace_stop"() : () -> ()
    %c1 = arith.constant 1 : index
    %c0_19 = arith.constant 0 : index
    %c0_20 = arith.constant 0 : index
    %c0_21 = arith.constant 0 : index
    %49 = vector.load %arg4[%c1, %c0_19, %c0_20, %c0_21] : memref<4x4x16x16xf32, #tpu.memory_space<vmem>>, vector<1x4x16x16xf32>
    %50 = vector.shape_cast %49 : vector<1x4x16x16xf32> to vector<4x16x16xf32>
    %51 = arith.addf %48, %50 : vector<4x16x16xf32>
    %cst_22 = arith.constant dense<0xFF800000> : vector<4x16xf32>
    %52 = vector.multi_reduction <maximumf>, %51, %cst_22 [2] : vector<4x16x16xf32> to vector<4x16xf32>
    %53 = vector.shape_cast %52 : vector<4x16xf32> to vector<4x16x1xf32>
    %54 = vector.broadcast %53 : vector<4x16x1xf32> to vector<4x16x16xf32>
    %55 = arith.subf %51, %54 : vector<4x16x16xf32>
    %56 = math.exp %55 : vector<4x16x16xf32>
    %cst_23 = arith.constant dense<0.000000e+00> : vector<4x16xf32>
    %57 = vector.multi_reduction <add>, %56, %cst_23 [2] : vector<4x16x16xf32> to vector<4x16xf32>
    %58 = vector.shape_cast %57 : vector<4x16xf32> to vector<4x16x1xf32>
    %59 = tpu.reciprocal %58 {approx = true} : vector<4x16x1xf32> -> vector<4x16x1xf32>
    %60 = vector.broadcast %59 : vector<4x16x1xf32> to vector<4x16x16xf32>
    %61 = arith.mulf %56, %60 : vector<4x16x16xf32>
    %62 = arith.truncf %61 : vector<4x16x16xf32> to vector<4x16x16xbf16>
    "tpu.trace_start"() <{level = 10 : i32, message = "wnm,wmd->wnd"}> : () -> ()
    %cst_24 = arith.constant dense<0.000000e+00> : vector<4x16x8xf32>
    %63 = tpu.matmul %62, %47, %cst_24 {dimension_numbers = #tpu.dot_dimension_numbers<[2], [1], [1], [2], [0, 0, 0, 1, 1, 2], [0], [0]>} : vector<4x16x16xbf16>, vector<4x16x8xbf16>, vector<4x16x8xf32> -> vector<4x16x8xf32>
    "tpu.trace_stop"() : () -> ()
    %64 = vector.shape_cast %63 : vector<4x16x8xf32> to vector<64x8xf32>
    %65 = arith.truncf %64 : vector<64x8xf32> to vector<64x8xbf16>
    %c1_25 = arith.constant 1 : index
    %c0_26 = arith.constant 0 : index
    %c0_27 = arith.constant 0 : index
    %66 = vector.load %arg5[%c1_25, %c0_26, %c0_27] : memref<4x8x128xbf16, #tpu.memory_space<vmem>>, vector<1x8x128xbf16>
    %67 = vector.shape_cast %66 : vector<1x8x128xbf16> to vector<8x128xbf16>
    %cst_28 = arith.constant dense<0.000000e+00> : vector<64x128xf32>
    %68 = tpu.matmul %65, %67, %cst_28 {dimension_numbers = #tpu.dot_dimension_numbers<[1], [0], [0], [1], [0, 0, 1, 1], [], []>} : vector<64x8xbf16>, vector<8x128xbf16>, vector<64x128xf32> -> vector<64x128xf32>
    %69 = arith.addf %38, %68 : vector<64x128xf32>
    %70 = vector.extract_strided_slice %6 {offsets = [0, 16], sizes = [64, 8], strides = [1, 1]} : vector<64x384xf32> to vector<64x8xf32>
    %71 = vector.shape_cast %70 : vector<64x8xf32> to vector<4x16x8xf32>
    %72 = arith.truncf %71 : vector<4x16x8xf32> to vector<4x16x8xbf16>
    %73 = vector.extract_strided_slice %6 {offsets = [0, 144], sizes = [64, 8], strides = [1, 1]} : vector<64x384xf32> to vector<64x8xf32>
    %74 = vector.shape_cast %73 : vector<64x8xf32> to vector<4x16x8xf32>
    %75 = arith.truncf %74 : vector<4x16x8xf32> to vector<4x16x8xbf16>
    %76 = vector.extract_strided_slice %6 {offsets = [0, 272], sizes = [64, 8], strides = [1, 1]} : vector<64x384xf32> to vector<64x8xf32>
    %77 = vector.shape_cast %76 : vector<64x8xf32> to vector<4x16x8xf32>
    %78 = arith.truncf %77 : vector<4x16x8xf32> to vector<4x16x8xbf16>
    "tpu.trace_start"() <{level = 10 : i32, message = "wnd,wmd->wnm"}> : () -> ()
    %cst_29 = arith.constant dense<0.000000e+00> : vector<4x16x16xf32>
    %79 = tpu.matmul %72, %75, %cst_29 {dimension_numbers = #tpu.dot_dimension_numbers<[2], [2], [1], [1], [0, 0, 0, 1, 1, 1], [0], [0]>} : vector<4x16x8xbf16>, vector<4x16x8xbf16>, vector<4x16x16xf32> -> vector<4x16x16xf32>
    "tpu.trace_stop"() : () -> ()
    %c2 = arith.constant 2 : index
    %c0_30 = arith.constant 0 : index
    %c0_31 = arith.constant 0 : index
    %c0_32 = arith.constant 0 : index
    %80 = vector.load %arg4[%c2, %c0_30, %c0_31, %c0_32] : memref<4x4x16x16xf32, #tpu.memory_space<vmem>>, vector<1x4x16x16xf32>
    %81 = vector.shape_cast %80 : vector<1x4x16x16xf32> to vector<4x16x16xf32>
    %82 = arith.addf %79, %81 : vector<4x16x16xf32>
    %cst_33 = arith.constant dense<0xFF800000> : vector<4x16xf32>
    %83 = vector.multi_reduction <maximumf>, %82, %cst_33 [2] : vector<4x16x16xf32> to vector<4x16xf32>
    %84 = vector.shape_cast %83 : vector<4x16xf32> to vector<4x16x1xf32>
    %85 = vector.broadcast %84 : vector<4x16x1xf32> to vector<4x16x16xf32>
    %86 = arith.subf %82, %85 : vector<4x16x16xf32>
    %87 = math.exp %86 : vector<4x16x16xf32>
    %cst_34 = arith.constant dense<0.000000e+00> : vector<4x16xf32>
    %88 = vector.multi_reduction <add>, %87, %cst_34 [2] : vector<4x16x16xf32> to vector<4x16xf32>
    %89 = vector.shape_cast %88 : vector<4x16xf32> to vector<4x16x1xf32>
    %90 = tpu.reciprocal %89 {approx = true} : vector<4x16x1xf32> -> vector<4x16x1xf32>
    %91 = vector.broadcast %90 : vector<4x16x1xf32> to vector<4x16x16xf32>
    %92 = arith.mulf %87, %91 : vector<4x16x16xf32>
    %93 = arith.truncf %92 : vector<4x16x16xf32> to vector<4x16x16xbf16>
    "tpu.trace_start"() <{level = 10 : i32, message = "wnm,wmd->wnd"}> : () -> ()
    %cst_35 = arith.constant dense<0.000000e+00> : vector<4x16x8xf32>
    %94 = tpu.matmul %93, %78, %cst_35 {dimension_numbers = #tpu.dot_dimension_numbers<[2], [1], [1], [2], [0, 0, 0, 1, 1, 2], [0], [0]>} : vector<4x16x16xbf16>, vector<4x16x8xbf16>, vector<4x16x8xf32> -> vector<4x16x8xf32>
    "tpu.trace_stop"() : () -> ()
    %95 = vector.shape_cast %94 : vector<4x16x8xf32> to vector<64x8xf32>
    %96 = arith.truncf %95 : vector<64x8xf32> to vector<64x8xbf16>
    %c2_36 = arith.constant 2 : index
    %c0_37 = arith.constant 0 : index
    %c0_38 = arith.constant 0 : index
    %97 = vector.load %arg5[%c2_36, %c0_37, %c0_38] : memref<4x8x128xbf16, #tpu.memory_space<vmem>>, vector<1x8x128xbf16>
    %98 = vector.shape_cast %97 : vector<1x8x128xbf16> to vector<8x128xbf16>
    %cst_39 = arith.constant dense<0.000000e+00> : vector<64x128xf32>
    %99 = tpu.matmul %96, %98, %cst_39 {dimension_numbers = #tpu.dot_dimension_numbers<[1], [0], [0], [1], [0, 0, 1, 1], [], []>} : vector<64x8xbf16>, vector<8x128xbf16>, vector<64x128xf32> -> vector<64x128xf32>
    %100 = arith.addf %69, %99 : vector<64x128xf32>
    %101 = vector.extract_strided_slice %6 {offsets = [0, 24], sizes = [64, 8], strides = [1, 1]} : vector<64x384xf32> to vector<64x8xf32>
    %102 = vector.shape_cast %101 : vector<64x8xf32> to vector<4x16x8xf32>
    %103 = arith.truncf %102 : vector<4x16x8xf32> to vector<4x16x8xbf16>
    %104 = vector.extract_strided_slice %6 {offsets = [0, 152], sizes = [64, 8], strides = [1, 1]} : vector<64x384xf32> to vector<64x8xf32>
    %105 = vector.shape_cast %104 : vector<64x8xf32> to vector<4x16x8xf32>
    %106 = arith.truncf %105 : vector<4x16x8xf32> to vector<4x16x8xbf16>
    %107 = vector.extract_strided_slice %6 {offsets = [0, 280], sizes = [64, 8], strides = [1, 1]} : vector<64x384xf32> to vector<64x8xf32>
    %108 = vector.shape_cast %107 : vector<64x8xf32> to vector<4x16x8xf32>
    %109 = arith.truncf %108 : vector<4x16x8xf32> to vector<4x16x8xbf16>
    "tpu.trace_start"() <{level = 10 : i32, message = "wnd,wmd->wnm"}> : () -> ()
    %cst_40 = arith.constant dense<0.000000e+00> : vector<4x16x16xf32>
    %110 = tpu.matmul %103, %106, %cst_40 {dimension_numbers = #tpu.dot_dimension_numbers<[2], [2], [1], [1], [0, 0, 0, 1, 1, 1], [0], [0]>} : vector<4x16x8xbf16>, vector<4x16x8xbf16>, vector<4x16x16xf32> -> vector<4x16x16xf32>
    "tpu.trace_stop"() : () -> ()
    %c3 = arith.constant 3 : index
    %c0_41 = arith.constant 0 : index
    %c0_42 = arith.constant 0 : index
    %c0_43 = arith.constant 0 : index
    %111 = vector.load %arg4[%c3, %c0_41, %c0_42, %c0_43] : memref<4x4x16x16xf32, #tpu.memory_space<vmem>>, vector<1x4x16x16xf32>
    %112 = vector.shape_cast %111 : vector<1x4x16x16xf32> to vector<4x16x16xf32>
    %113 = arith.addf %110, %112 : vector<4x16x16xf32>
    %cst_44 = arith.constant dense<0xFF800000> : vector<4x16xf32>
    %114 = vector.multi_reduction <maximumf>, %113, %cst_44 [2] : vector<4x16x16xf32> to vector<4x16xf32>
    %115 = vector.shape_cast %114 : vector<4x16xf32> to vector<4x16x1xf32>
    %116 = vector.broadcast %115 : vector<4x16x1xf32> to vector<4x16x16xf32>
    %117 = arith.subf %113, %116 : vector<4x16x16xf32>
    %118 = math.exp %117 : vector<4x16x16xf32>
    %cst_45 = arith.constant dense<0.000000e+00> : vector<4x16xf32>
    %119 = vector.multi_reduction <add>, %118, %cst_45 [2] : vector<4x16x16xf32> to vector<4x16xf32>
    %120 = vector.shape_cast %119 : vector<4x16xf32> to vector<4x16x1xf32>
    %121 = tpu.reciprocal %120 {approx = true} : vector<4x16x1xf32> -> vector<4x16x1xf32>
    %122 = vector.broadcast %121 : vector<4x16x1xf32> to vector<4x16x16xf32>
    %123 = arith.mulf %118, %122 : vector<4x16x16xf32>
    %124 = arith.truncf %123 : vector<4x16x16xf32> to vector<4x16x16xbf16>
    "tpu.trace_start"() <{level = 10 : i32, message = "wnm,wmd->wnd"}> : () -> ()
    %cst_46 = arith.constant dense<0.000000e+00> : vector<4x16x8xf32>
    %125 = tpu.matmul %124, %109, %cst_46 {dimension_numbers = #tpu.dot_dimension_numbers<[2], [1], [1], [2], [0, 0, 0, 1, 1, 2], [0], [0]>} : vector<4x16x16xbf16>, vector<4x16x8xbf16>, vector<4x16x8xf32> -> vector<4x16x8xf32>
    "tpu.trace_stop"() : () -> ()
    %126 = vector.shape_cast %125 : vector<4x16x8xf32> to vector<64x8xf32>
    %127 = arith.truncf %126 : vector<64x8xf32> to vector<64x8xbf16>
    %c3_47 = arith.constant 3 : index
    %c0_48 = arith.constant 0 : index
    %c0_49 = arith.constant 0 : index
    %128 = vector.load %arg5[%c3_47, %c0_48, %c0_49] : memref<4x8x128xbf16, #tpu.memory_space<vmem>>, vector<1x8x128xbf16>
    %129 = vector.shape_cast %128 : vector<1x8x128xbf16> to vector<8x128xbf16>
    %cst_50 = arith.constant dense<0.000000e+00> : vector<64x128xf32>
    %130 = tpu.matmul %127, %129, %cst_50 {dimension_numbers = #tpu.dot_dimension_numbers<[1], [0], [0], [1], [0, 0, 1, 1], [], []>} : vector<64x8xbf16>, vector<8x128xbf16>, vector<64x128xf32> -> vector<64x128xf32>
    %131 = arith.addf %100, %130 : vector<64x128xf32>
    %c0_51 = arith.constant 0 : index
    %c0_52 = arith.constant 0 : index
    %132 = vector.load %arg6[%c0_51, %c0_52] : memref<1x128xf32, #tpu.memory_space<vmem>>, vector<1x128xf32>
    %133 = vector.broadcast %132 : vector<1x128xf32> to vector<64x128xf32>
    %134 = arith.addf %131, %133 : vector<64x128xf32>
    %c0_53 = arith.constant 0 : index
    %c0_54 = arith.constant 0 : index
    %135 = vector.load %arg7[%c0_53, %c0_54] : memref<64x128xf32, #tpu.memory_space<vmem>>, vector<64x128xf32>
    tpu.vector_store %arg7[%c0_53, %c0_54], %134 {strides = array<i32>} : memref<64x128xf32, #tpu.memory_space<vmem>>, vector<64x128xf32>,
    return
  }
  func.func @transform_0(%arg0: i32) -> (i32, i32) {
    %c0_i32 = arith.constant 0 : i32
    %c0_i32_0 = arith.constant 0 : i32
    return %arg0, %c0_i32 : i32, i32
  }
  func.func @transform_1(%arg0: i32) -> (i32, i32) {
    %c0_i32 = arith.constant 0 : i32
    %c0_i32_0 = arith.constant 0 : i32
    %c0_i32_1 = arith.constant 0 : i32
    return %c0_i32, %c0_i32_0 : i32, i32
  }
  func.func @transform_2(%arg0: i32) -> (i32, i32) {
    %c0_i32 = arith.constant 0 : i32
    %c0_i32_0 = arith.constant 0 : i32
    %c0_i32_1 = arith.constant 0 : i32
    return %c0_i32, %c0_i32_0 : i32, i32
  }
  func.func @transform_3(%arg0: i32) -> (i32, i32, i32, i32) {
    %c0_i32 = arith.constant 0 : i32
    %c0_i32_0 = arith.constant 0 : i32
    %c0_i32_1 = arith.constant 0 : i32
    %c0_i32_2 = arith.constant 0 : i32
    %c0_i32_3 = arith.constant 0 : i32
    return %c0_i32, %c0_i32_0, %c0_i32_1, %c0_i32_2 : i32, i32, i32, i32
  }
  func.func @transform_4(%arg0: i32) -> (i32, i32, i32) {
    %c0_i32 = arith.constant 0 : i32
    %c0_i32_0 = arith.constant 0 : i32
    %c0_i32_1 = arith.constant 0 : i32
    %c0_i32_2 = arith.constant 0 : i32
    return %c0_i32, %c0_i32_0, %c0_i32_1 : i32, i32, i32
  }
  func.func @transform_5(%arg0: i32) -> (i32, i32) {
    %c0_i32 = arith.constant 0 : i32
    %c0_i32_0 = arith.constant 0 : i32
    %c0_i32_1 = arith.constant 0 : i32
    return %c0_i32, %c0_i32_0 : i32, i32
  }
  func.func @transform_6(%arg0: i32) -> (i32, i32) {
    %c0_i32 = arith.constant 0 : i32
    %c0_i32_0 = arith.constant 0 : i32
    return %arg0, %c0_i32 : i32, i32
  }
}

</mosaic_0001>

<llo_original>
// kernel: tpu_custom_call.1
$region0: #{tpu_custom_call.1}
  #allocation0 [shape = 'u32[]', space=smem, size = 0x4, offset = 0x4, fixed_abs, tag = 'smem constant byte address 0x4 - core index']
  #allocation1 [shape = 'u32[144,128]{1,0:T(1,128)}', space=vmem, size = 0x12000, scoped, tag = 'internal scratch']
  %s0 = inlined_call_operand.hbm [shape: f32[128,128], index: 0, kind: input, shape index: {}]
  %s1 = inlined_call_operand.hbm [shape: bf16[128,384], index: 1, kind: input, shape index: {}]
  %s2 = inlined_call_operand.vmem [shape: f32[1,384], index: 2, kind: input, shape index: {}]
  %s3 = inlined_call_operand.hbm [shape: f32[4,4,16,16], index: 3, kind: input, shape index: {}]
  %s4 = inlined_call_operand.hbm [shape: bf16[4,8,128], index: 4, kind: input, shape index: {}]
  %s5 = inlined_call_operand.vmem [shape: f32[1,128], index: 5, kind: input, shape index: {}]
  %s6 = inlined_call_operand.hbm [shape: f32[128,128], index: 6, kind: output, shape index: {}]
  %s7 = sld [smem:[#allocation0]]
  $region73: #{tpu_custom_call.1} parent=0
    _
  %s9 = ssub.s32 1, %s7
  %s10 = scalar_select 0, %s9, %s7
  $region1: #{tpu_custom_call.1} parent=0
    #allocation2 [shape = 'u8[65536]{0}', space=vmem, size = 0x10000, scoped, tag = 'input window, operand 0']
    #allocation3 [shape = 's32[2]{0}', space=sflag, size = 0x8, scoped, tag = 'scoped memory for tpu_custom_call.1']
    #allocation4 [shape = 's32[2]{0}', space=sflag, size = 0x8, scoped, tag = 'scoped memory for tpu_custom_call.1']
    #allocation5 [shape = 'u8[98304]{0}', space=vmem, size = 0x18000, scoped, tag = 'input window, operand 1, single buffered']
    #allocation6 [shape = 's32[1]{0}', space=sflag, size = 0x4, scoped, tag = 'scoped memory for tpu_custom_call.1']
    #allocation7 [shape = 'u8[131072]{0}', space=vmem, size = 0x20000, scoped, tag = 'input window, operand 3, single buffered']
    #allocation8 [shape = 'u8[8192]{0}', space=vmem, size = 0x2000, scoped, tag = 'input window, operand 4, single buffered']
    #allocation9 [shape = 's32[1]{0}', space=sflag, size = 0x4, scoped, tag = 'scoped memory for tpu_custom_call.1']
    #allocation10 [shape = 'u8[65536]{0}', space=vmem, size = 0x10000, scoped, tag = 'output window, operand 0']
    %11 = vsyncpa [#allocation3], 0
    %s12 = scalar_lea.sflag [#allocation3], 1
    %13 = vsyncpa %s12, 0
    %14 = vsyncpa [#allocation6], 0
    %15 = vsyncpa [#allocation9], 0
    %16 = vsyncpa [#allocation4], 0
    %s17 = scalar_lea.sflag [#allocation4], 1
    %18 = vsyncpa %s17, 0
    loop: start=0, step=1, limit=4
    $region2: #{tpu_custom_call.1} parent=1 // loop_pre_header
      _
    $region3: #{tpu_custom_call.1} parent=1 // loop_header
      %s20 = sphi 0, %s24
      %p21 = scmp.ge.s32.totalorder %s20, 4
      %s30 = sphi 0, %s32
      %s33 = sphi 0, %s30
      %s34 = sphi 0, %s33
      %s50 = sphi 0, %s34
      %s54 = sphi 0, %s54
      %s56 = sphi 0, %s54
      %s57 = sphi 0, %s56
      %s71 = sphi 0, %s57
      %s75 = sphi 0, %s75
      %s77 = sphi 0, %s75
      %s78 = sphi 0, %s77
      %s92 = sphi 0, %s78
      %s96 = sphi 0, %s96
      %s98 = sphi 0, %s96
      %s99 = sphi 0, %s98
      %s113 = sphi 0, %s99
      %s117 = sphi 0, %s117
      %s119 = sphi 0, %s117
      %s120 = sphi 0, %s119
      %s134 = sphi 0, %s120
      %s138 = sphi 0, %s138
      %s140 = sphi 0, %s138
      %s141 = sphi 0, %s140
      %s155 = sphi 0, %s141
      %s161 = sphi 0, %s163
      %s164 = sphi 0, %s161
      %s165 = sphi 0, %s164
      %s181 = sphi 0, %s165
    $region4: #{tpu_custom_call.1} parent=1 // loop_header_branch
      %23 = sbr.rel (%p21) target = $region8
    $region5: #{tpu_custom_call.1} parent=1 // loop_body
      %s25 = ssub.s32 %s20, 1
      %s26 = ssub.s32 %s20, 2
      %s27 = sadd.s32 %s20, 1
      %s28 = ssub.s32 %s20, %s27
      %p29 = scmp.eq.s32.totalorder %s28, 0
      %s31 = sadd.s32 %s30, 1
      %s32 = scalar_select %p29, %s30, %s31
      %p35 = pneg %p29
      %p36 = scmp.eq.s32.totalorder %s20, 1
      %p37 = por %p35, %p36
      %p38 = scmp.ne.s32.totalorder %s30, %s33
      %p39 = scmp.eq.s32.totalorder %s20, 0
      %p40 = por %p38, %p39
      %p41 = scmp.ne.s32.totalorder %s30, %s33
      %p42 = scmp.eq.s32.totalorder %s25, 1
      %p43 = por %p41, %p42
      %p44 = scmp.ne.s32.totalorder %s33, %s34
      %p45 = scmp.eq.s32.totalorder %s25, 0
      %p46 = por %p44, %p45
      %p47 = scmp.ne.s32.totalorder %s33, %s34
      %p48 = scmp.eq.s32.totalorder %s26, 1
      %p49 = por %p47, %p48
      %p51 = scmp.ne.s32.totalorder %s34, %s50
      %p52 = scmp.eq.s32.totalorder %s26, 0
      %p53 = por %p51, %p52
      %s55 = sadd.s32 %s54, 1
      %p58 = scmp.eq.s32.totalorder %s20, 1
      %p59 = scmp.ne.s32.totalorder %s54, %s56
      %p60 = scmp.eq.s32.totalorder %s20, 0
      %p61 = por %p59, %p60
      %p62 = scmp.ne.s32.totalorder %s54, %s56
      %p63 = scmp.eq.s32.totalorder %s25, 1
      %p64 = por %p62, %p63
      %p65 = scmp.ne.s32.totalorder %s56, %s57
      %p66 = scmp.eq.s32.totalorder %s25, 0
      %p67 = por %p65, %p66
      %p68 = scmp.ne.s32.totalorder %s56, %s57
      %p69 = scmp.eq.s32.totalorder %s26, 1
      %p70 = por %p68, %p69
      %p72 = scmp.ne.s32.totalorder %s57, %s71
      %p73 = scmp.eq.s32.totalorder %s26, 0
      %p74 = por %p72, %p73
      %s76 = sadd.s32 %s75, 1
      %p79 = scmp.eq.s32.totalorder %s20, 1
      %p80 = scmp.ne.s32.totalorder %s75, %s77
      %p81 = scmp.eq.s32.totalorder %s20, 0
      %p82 = por %p80, %p81
      %p83 = scmp.ne.s32.totalorder %s75, %s77
      %p84 = scmp.eq.s32.totalorder %s25, 1
      %p85 = por %p83, %p84
      %p86 = scmp.ne.s32.totalorder %s77, %s78
      %p87 = scmp.eq.s32.totalorder %s25, 0
      %p88 = por %p86, %p87
      %p89 = scmp.ne.s32.totalorder %s77, %s78
      %p90 = scmp.eq.s32.totalorder %s26, 1
      %p91 = por %p89, %p90
      %p93 = scmp.ne.s32.totalorder %s78, %s92
      %p94 = scmp.eq.s32.totalorder %s26, 0
      %p95 = por %p93, %p94
      %s97 = sadd.s32 %s96, 1
      %p100 = scmp.eq.s32.totalorder %s20, 1
      %p101 = scmp.ne.s32.totalorder %s96, %s98
      %p102 = scmp.eq.s32.totalorder %s20, 0
      %p103 = por %p101, %p102
      %p104 = scmp.ne.s32.totalorder %s96, %s98
      %p105 = scmp.eq.s32.totalorder %s25, 1
      %p106 = por %p104, %p105
      %p107 = scmp.ne.s32.totalorder %s98, %s99
      %p108 = scmp.eq.s32.totalorder %s25, 0
      %p109 = por %p107, %p108
      %p110 = scmp.ne.s32.totalorder %s98, %s99
      %p111 = scmp.eq.s32.totalorder %s26, 1
      %p112 = por %p110, %p111
      %p114 = scmp.ne.s32.totalorder %s99, %s113
      %p115 = scmp.eq.s32.totalorder %s26, 0
      %p116 = por %p114, %p115
      %s118 = sadd.s32 %s117, 1
      %p121 = scmp.eq.s32.totalorder %s20, 1
      %p122 = scmp.ne.s32.totalorder %s117, %s119
      %p123 = scmp.eq.s32.totalorder %s20, 0
      %p124 = por %p122, %p123
      %p125 = scmp.ne.s32.totalorder %s117, %s119
      %p126 = scmp.eq.s32.totalorder %s25, 1
      %p127 = por %p125, %p126
      %p128 = scmp.ne.s32.totalorder %s119, %s120
      %p129 = scmp.eq.s32.totalorder %s25, 0
      %p130 = por %p128, %p129
      %p131 = scmp.ne.s32.totalorder %s119, %s120
      %p132 = scmp.eq.s32.totalorder %s26, 1
      %p133 = por %p131, %p132
      %p135 = scmp.ne.s32.totalorder %s120, %s134
      %p136 = scmp.eq.s32.totalorder %s26, 0
      %p137 = por %p135, %p136
      %s139 = sadd.s32 %s138, 1
      %p142 = scmp.eq.s32.totalorder %s20, 1
      %p143 = scmp.ne.s32.totalorder %s138, %s140
      %p144 = scmp.eq.s32.totalorder %s20, 0
      %p145 = por %p143, %p144
      %p146 = scmp.ne.s32.totalorder %s138, %s140
      %p147 = scmp.eq.s32.totalorder %s25, 1
      %p148 = por %p146, %p147
      %p149 = scmp.ne.s32.totalorder %s140, %s141
      %p150 = scmp.eq.s32.totalorder %s25, 0
      %p151 = por %p149, %p150
      %p152 = scmp.ne.s32.totalorder %s140, %s141
      %p153 = scmp.eq.s32.totalorder %s26, 1
      %p154 = por %p152, %p153
      %p156 = scmp.ne.s32.totalorder %s141, %s155
      %p157 = scmp.eq.s32.totalorder %s26, 0
      %p158 = por %p156, %p157
      %s159 = ssub.s32 %s20, %s27
      %p160 = scmp.eq.s32.totalorder %s159, 0
      %s162 = sadd.s32 %s161, 1
      %s163 = scalar_select %p160, %s161, %s162
      %p166 = pneg %p160
      %p167 = scmp.eq.s32.totalorder %s20, 1
      %p168 = por %p166, %p167
      %p169 = scmp.ne.s32.totalorder %s161, %s164
      %p170 = scmp.eq.s32.totalorder %s20, 0
      %p171 = por %p169, %p170
      %p172 = scmp.ne.s32.totalorder %s161, %s164
      %p173 = scmp.eq.s32.totalorder %s25, 1
      %p174 = por %p172, %p173
      %p175 = scmp.ne.s32.totalorder %s164, %s165
      %p176 = scmp.eq.s32.totalorder %s25, 0
      %p177 = por %p175, %p176
      %p178 = scmp.ne.s32.totalorder %s164, %s165
      %p179 = scmp.eq.s32.totalorder %s26, 1
      %p180 = por %p178, %p179
      %p182 = scmp.ne.s32.totalorder %s165, %s181
      %p183 = scmp.eq.s32.totalorder %s26, 0
      %p184 = por %p182, %p183
      %p185 = scmp.le.s32.totalorder 1, %s20
      %p186 = scmp.lt.s32.totalorder %s20, 3
      %p187 = pnand %p185, %p186
      %p188 = pneg %p187
      // Predicated region
      $region9: #{tpu_custom_call.1} parent=5 // pred_check
        _
      $region10: #{tpu_custom_call.1} parent=5 // pred_check_branch
        %190 = sbr.rel (%p187) target = $region12
      $region11: #{tpu_custom_call.1} parent=5 // pred_region
        %s191 = ssub.s32 %s20, 1
        // Predicated region
        $region13: #{tpu_custom_call.1} parent=11 // pred_check
          %p192 = pneg %p67
        $region14: #{tpu_custom_call.1} parent=11 // pred_check_branch
          %194 = sbr.rel (%p192) target = $region16
        $region15: #{tpu_custom_call.1} parent=11 // pred_region
          %s196 = ssub.s32 3072, 3072
          %197 = vsyncadd [#allocation6], %s196
          %s198 = sshll.u32 [#allocation5], 4
          %s199 = int_to_ptr.vmem [resolvable:$true] %s198
          %204 = dma.hbm_to_vmem [thread:$0]  %s1, 3072, %s199, [#allocation6], 192, 192, 12
        $region16: #{tpu_custom_call.1} parent=11 // pred_fallthru
          _
        // Predicated region
        $region17: #{tpu_custom_call.1} parent=11 // pred_check
          %p205 = pneg %p88
        $region18: #{tpu_custom_call.1} parent=11 // pred_check_branch
          %207 = sbr.rel (%p205) target = $region20
        $region19: #{tpu_custom_call.1} parent=11 // pred_region
          _
        $region20: #{tpu_custom_call.1} parent=11 // pred_fallthru
          _
        // Predicated region
        $region21: #{tpu_custom_call.1} parent=11 // pred_check
          %p208 = pneg %p109
        $region22: #{tpu_custom_call.1} parent=11 // pred_check_branch
          %210 = sbr.rel (%p208) target = $region24
        $region23: #{tpu_custom_call.1} parent=11 // pred_region
          %s212 = ssub.s32 4096, 4096
          %213 = vsyncadd [#allocation6], %s212
          %s214 = sshll.u32 [#allocation7], 4
          %s215 = int_to_ptr.vmem [resolvable:$true] %s214
          %220 = dma.hbm_to_vmem [thread:$0]  %s3, 4096, %s215, [#allocation6], 128, 128, 8
        $region24: #{tpu_custom_call.1} parent=11 // pred_fallthru
          _
        // Predicated region
        $region25: #{tpu_custom_call.1} parent=11 // pred_check
          %p221 = pneg %p130
        $region26: #{tpu_custom_call.1} parent=11 // pred_check_branch
          %223 = sbr.rel (%p221) target = $region28
        $region27: #{tpu_custom_call.1} parent=11 // pred_region
          %s225 = ssub.s32 256, 256
          %226 = vsyncadd [#allocation9], %s225
          %s227 = sshll.u32 [#allocation8], 4
          %s228 = int_to_ptr.vmem [resolvable:$true] %s227
          %233 = dma.hbm_to_vmem [thread:$0]  %s4, 256, %s228, [#allocation9], 64, 64, 4
        $region28: #{tpu_custom_call.1} parent=11 // pred_fallthru
          _
        // Predicated region
        $region29: #{tpu_custom_call.1} parent=11 // pred_check
          %p234 = pneg %p151
        $region30: #{tpu_custom_call.1} parent=11 // pred_check_branch
          %236 = sbr.rel (%p234) target = $region32
        $region31: #{tpu_custom_call.1} parent=11 // pred_region
          _
        $region32: #{tpu_custom_call.1} parent=11 // pred_fallthru
          _
      $region12: #{tpu_custom_call.1} parent=5 // pred_fallthru
        _
      %p237 = scmp.lt.s32.totalorder %s20, 2
      // Predicated region
      $region33: #{tpu_custom_call.1} parent=5 // pred_check
        %p238 = pneg %p237
      $region34: #{tpu_custom_call.1} parent=5 // pred_check_branch
        %240 = sbr.rel (%p238) target = $region36
      $region35: #{tpu_custom_call.1} parent=5 // pred_region
        // Predicated region
        $region37: #{tpu_custom_call.1} parent=35 // pred_check
          %p241 = pneg %p40
        $region38: #{tpu_custom_call.1} parent=35 // pred_check_branch
          %243 = sbr.rel (%p241) target = $region40
        $region39: #{tpu_custom_call.1} parent=35 // pred_region
          %s244 = sand.u32 %s30, 1
          %s245 = scalar_lea.sflag [#allocation3], %s244
          %s246 = sand.u32 %s30, 1
          %s247 = smul.addr %s246, 64
          %s248 = scalar_lea.vmem [#allocation2], %s247
          %s249 = smul.u32 8, %s20
          %s251 = ssub.s32 1024, 1024
          %252 = vsyncadd %s245, %s251
          %s253 = smul.addr %s249, 128
          %s254 = scalar_lea.hbm %s0, %s253
          %s255 = sshll.u32 %s248, 4
          %s256 = int_to_ptr.vmem [resolvable:$true] %s255
          %261 = dma.hbm_to_vmem [thread:$0]  %s254, 1024, %s256, %s245, 128, 128, 8
        $region40: #{tpu_custom_call.1} parent=35 // pred_fallthru
          _
      $region36: #{tpu_custom_call.1} parent=5 // pred_fallthru
        _
      %p262 = scmp.le.s32.totalorder 1, %s20
      %p263 = scmp.lt.s32.totalorder %s20, 3
      %p264 = pnand %p262, %p263
      %p265 = pneg %p264
      // Predicated region
      $region41: #{tpu_custom_call.1} parent=5 // pred_check
        _
      $region42: #{tpu_custom_call.1} parent=5 // pred_check_branch
        %267 = sbr.rel (%p264) target = $region44
      $region43: #{tpu_custom_call.1} parent=5 // pred_region
        %s268 = ssub.s32 %s20, 1
        %s269 = sand.u32 %s33, 1
        %s270 = scalar_lea.sflag [#allocation3], %s269
        %s271 = sand.u32 %s33, 1
        %s272 = smul.addr %s271, 64
        %s273 = scalar_lea.vmem [#allocation2], %s272
        // Predicated region
        $region45: #{tpu_custom_call.1} parent=43 // pred_check
          %p274 = pneg %p46
        $region46: #{tpu_custom_call.1} parent=43 // pred_check_branch
          %276 = sbr.rel (%p274) target = $region48
        $region47: #{tpu_custom_call.1} parent=43 // pred_region
          %277 = dma.done %s270, 1024
        $region48: #{tpu_custom_call.1} parent=43 // pred_fallthru
          _
        // Predicated region
        $region49: #{tpu_custom_call.1} parent=43 // pred_check
          %p278 = pneg %p67
        $region50: #{tpu_custom_call.1} parent=43 // pred_check_branch
          %280 = sbr.rel (%p278) target = $region52
        $region51: #{tpu_custom_call.1} parent=43 // pred_region
          %281 = dma.done [#allocation6], 3072
        $region52: #{tpu_custom_call.1} parent=43 // pred_fallthru
          _
        // Predicated region
        $region53: #{tpu_custom_call.1} parent=43 // pred_check
          %p282 = pneg %p109
        $region54: #{tpu_custom_call.1} parent=43 // pred_check_branch
          %284 = sbr.rel (%p282) target = $region56
        $region55: #{tpu_custom_call.1} parent=43 // pred_region
          %285 = dma.done [#allocation6], 4096
        $region56: #{tpu_custom_call.1} parent=43 // pred_fallthru
          _
        // Predicated region
        $region57: #{tpu_custom_call.1} parent=43 // pred_check
          %p286 = pneg %p130
        $region58: #{tpu_custom_call.1} parent=43 // pred_check_branch
          %288 = sbr.rel (%p286) target = $region60
        $region59: #{tpu_custom_call.1} parent=43 // pred_region
          %289 = dma.done [#allocation9], 256
        $region60: #{tpu_custom_call.1} parent=43 // pred_fallthru
          _
        %s290 = sand.u32 %s33, 1
        %s291 = scalar_lea.sflag [#allocation3], %s290
        %s292 = sand.u32 %s33, 1
        %s293 = smul.addr %s292, 64
        %s294 = scalar_lea.vmem [#allocation2], %s293
        %p295 = pneg %p46
        %p296 = pneg %p43
        %p297 = pneg %p67
        %p298 = pneg %p64
        %p299 = pneg %p88
        %p300 = pneg %p85
        %p301 = pneg %p109
        %p302 = pneg %p106
        %p303 = pneg %p130
        %p304 = pneg %p127
        %p305 = pneg %p151
        %p306 = pneg %p148
        %p307 = pneg %p177
        %p308 = pneg %p174
        %s309 = sand.u32 %s164, 1
        %s310 = scalar_lea.sflag [#allocation4], %s309
        %s311 = sand.u32 %s164, 1
        %s312 = smul.addr %s311, 64
        %s313 = scalar_lea.vmem [#allocation10], %s312
        %s314 = smul.u32 8, %s25
        %s315 = smul.u32 8, %s25
        %v317 = vld [vmem:[%s273] sm:$0xff]
        %v318 = vld [vmem:[%s273 + $0x8] sm:$0xff]
        %v319 = vld [vmem:[%s273 + $0x10] sm:$0xff]
        %v320 = vld [vmem:[%s273 + $0x18] sm:$0xff]
        %v321 = vld [vmem:[%s273 + $0x20] sm:$0xff]
        %v322 = vld [vmem:[%s273 + $0x28] sm:$0xff]
        %v323 = vld [vmem:[%s273 + $0x30] sm:$0xff]
        %v324 = vld [vmem:[%s273 + $0x38] sm:$0xff]
        %v325 = vpack.c.bf16 %v318, %v317
        %v326 = vpack.c.bf16 %v320, %v319
        %v327 = vpack.c.bf16 %v322, %v321
        %v328 = vpack.c.bf16 %v324, %v323
        %v329 = vld [vmem:[#allocation5] sm:$0xff]
        %v330 = vld [vmem:[#allocation5 + $0x8] sm:$0xf]
        %v331 = vld [vmem:[#allocation5 + $0xc] sm:$0xff]
        %v332 = vld [vmem:[#allocation5 + $0x14] sm:$0xf]
        %v333 = vld [vmem:[#allocation5 + $0x18] sm:$0xff]
        %v334 = vld [vmem:[#allocation5 + $0x20] sm:$0xf]
        %v335 = vld [vmem:[#allocation5 + $0x24] sm:$0xff]
        %v336 = vld [vmem:[#allocation5 + $0x2c] sm:$0xf]
        %v337 = vld [vmem:[#allocation5 + $0x30] sm:$0xff]
        %v338 = vld [vmem:[#allocation5 + $0x38] sm:$0xf]
        %v339 = vld [vmem:[#allocation5 + $0x3c] sm:$0xff]
        %v340 = vld [vmem:[#allocation5 + $0x44] sm:$0xf]
        %v341 = vld [vmem:[#allocation5 + $0x48] sm:$0xff]
        %v342 = vld [vmem:[#allocation5 + $0x50] sm:$0xf]
        %v343 = vld [vmem:[#allocation5 + $0x54] sm:$0xff]
        %v344 = vld [vmem:[#allocation5 + $0x5c] sm:$0xf]
        %v345 = vld [vmem:[#allocation5 + $0x60] sm:$0xff]
        %v346 = vld [vmem:[#allocation5 + $0x68] sm:$0xf]
        %v347 = vld [vmem:[#allocation5 + $0x6c] sm:$0xff]
        %v348 = vld [vmem:[#allocation5 + $0x74] sm:$0xf]
        %v349 = vld [vmem:[#allocation5 + $0x78] sm:$0xff]
        %v350 = vld [vmem:[#allocation5 + $0x80] sm:$0xf]
        %v351 = vld [vmem:[#allocation5 + $0x84] sm:$0xff]
        %v352 = vld [vmem:[#allocation5 + $0x8c] sm:$0xf]
        %v353 = vld [vmem:[#allocation5 + $0x90] sm:$0xff]
        %v354 = vld [vmem:[#allocation5 + $0x98] sm:$0xf]
        %v355 = vld [vmem:[#allocation5 + $0x9c] sm:$0xff]
        %v356 = vld [vmem:[#allocation5 + $0xa4] sm:$0xf]
        %v357 = vld [vmem:[#allocation5 + $0xa8] sm:$0xff]
        %v358 = vld [vmem:[#allocation5 + $0xb0] sm:$0xf]
        %v359 = vld [vmem:[#allocation5 + $0xb4] sm:$0xff]
        %v360 = vld [vmem:[#allocation5 + $0xbc] sm:$0xf]
        %v361 = vld [vmem:[%s2] sm:$0x7]
        %v363 = vlaneseq
        %v364 = vshrl.u32 %v363, 7
        %v365 = vsub.s32 0, %v364
        %v366 = vrot.slane %v361, %v365
        %v367 = vlaneseq
        %v368 = vshrl.u32 %v367, 7
        %v369 = vsub.s32 1, %v368
        %v370 = vrot.slane %v361, %v369
        %v371 = vlaneseq
        %v372 = vshrl.u32 %v371, 7
        %v373 = vsub.s32 2, %v372
        %v374 = vrot.slane %v361, %v373
        %v410 = vunpack.c.l.b16 %v329
        %v411 = vunpack.c.h.b16 %v329
        %v412 = vunpack.c.l.b16 %v330
        %v413 = vunpack.c.l.b16 %v331
        %v414 = vunpack.c.h.b16 %v331
        %v415 = vunpack.c.l.b16 %v332
        %v416 = vunpack.c.l.b16 %v333
        %v417 = vunpack.c.h.b16 %v333
        %v418 = vunpack.c.l.b16 %v334
        %v419 = vunpack.c.l.b16 %v335
        %v420 = vunpack.c.h.b16 %v335
        %v421 = vunpack.c.l.b16 %v336
        %v422 = vunpack.c.l.b16 %v337
        %v423 = vunpack.c.h.b16 %v337
        %v424 = vunpack.c.l.b16 %v338
        %v425 = vunpack.c.l.b16 %v339
        %v426 = vunpack.c.h.b16 %v339
        %v427 = vunpack.c.l.b16 %v340
        %v428 = vunpack.c.l.b16 %v341
        %v429 = vunpack.c.h.b16 %v341
        %v430 = vunpack.c.l.b16 %v342
        %v431 = vunpack.c.l.b16 %v343
        %v432 = vunpack.c.h.b16 %v343
        %v433 = vunpack.c.l.b16 %v344
        %v434 = vunpack.c.l.b16 %v345
        %v435 = vunpack.c.h.b16 %v345
        %v436 = vunpack.c.l.b16 %v346
        %v437 = vunpack.c.l.b16 %v347
        %v438 = vunpack.c.h.b16 %v347
        %v439 = vunpack.c.l.b16 %v348
        %v440 = vunpack.c.l.b16 %v349
        %v441 = vunpack.c.h.b16 %v349
        %v442 = vunpack.c.l.b16 %v350
        %v443 = vunpack.c.l.b16 %v351
        %v444 = vunpack.c.h.b16 %v351
        %v445 = vunpack.c.l.b16 %v352
        %v446 = vunpack.c.l.b16 %v353
        %v447 = vunpack.c.h.b16 %v353
        %v448 = vunpack.c.l.b16 %v354
        %v449 = vunpack.c.l.b16 %v355
        %v450 = vunpack.c.h.b16 %v355
        %v451 = vunpack.c.l.b16 %v356
        %v452 = vunpack.c.l.b16 %v357
        %v453 = vunpack.c.h.b16 %v357
        %v454 = vunpack.c.l.b16 %v358
        %v455 = vunpack.c.l.b16 %v359
        %v456 = vunpack.c.h.b16 %v359
        %v457 = vunpack.c.l.b16 %v360
        %v458 = vpack.c.b16 %v413, %v410
        %v459 = vpack.c.b16 %v414, %v411
        %v460 = vpack.c.b16 %v415, %v412
        %v461 = vpack.c.b16 %v419, %v416
        %v462 = vpack.c.b16 %v420, %v417
        %v463 = vpack.c.b16 %v421, %v418
        %v464 = vpack.c.b16 %v425, %v422
        %v465 = vpack.c.b16 %v426, %v423
        %v466 = vpack.c.b16 %v427, %v424
        %v467 = vpack.c.b16 %v431, %v428
        %v468 = vpack.c.b16 %v432, %v429
        %v469 = vpack.c.b16 %v433, %v430
        %v470 = vpack.c.b16 %v437, %v434
        %v471 = vpack.c.b16 %v438, %v435
        %v472 = vpack.c.b16 %v439, %v436
        %v473 = vpack.c.b16 %v443, %v440
        %v474 = vpack.c.b16 %v444, %v441
        %v475 = vpack.c.b16 %v445, %v442
        %v476 = vpack.c.b16 %v449, %v446
        %v477 = vpack.c.b16 %v450, %v447
        %v478 = vpack.c.b16 %v451, %v448
        %v479 = vpack.c.b16 %v455, %v452
        %v480 = vpack.c.b16 %v456, %v453
        %v481 = vpack.c.b16 %v457, %v454
        %506 = vmatprep.subr.bf16.mxu0 %v459
        %507 = vmatpush1.bf16.msra.mxu0 %v458
        %508 = vmatprep.subr.bf16.mxu0 %v462
        %509 = vmatpush1.bf16.msra.mxu0 %v461
        %510 = vmatprep.subr.bf16.mxu0 %v465
        %511 = vmatpush1.bf16.msra.mxu0 %v464
        %512 = vmatprep.subr.bf16.mxu0 %v468
        %513 = vmatpush1.bf16.msra.mxu0 %v467
        %514 = vmatprep.subr.bf16.mxu0 %v471
        %515 = vmatpush1.bf16.msra.mxu0 %v470
        %516 = vmatprep.subr.bf16.mxu0 %v474
        %517 = vmatpush1.bf16.msra.mxu0 %v473
        %518 = vmatprep.subr.bf16.mxu0 %v477
        %519 = vmatpush1.bf16.msra.mxu0 %v476
        %520 = vmatprep.subr.bf16.mxu0 %v480
        %521 = vmatpush1.bf16.msra.mxu0 %v479
        %522 = vmatprep.subr.bf16.mxu0 0
        %523 = vmatpush1.bf16.msra.mxu0 0
        %524 = vmatprep.subr.bf16.mxu0 0
        %525 = vmatpush1.bf16.msra.mxu0 0
        %526 = vmatprep.subr.bf16.mxu0 0
        %527 = vmatpush1.bf16.msra.mxu0 0
        %528 = vmatprep.subr.bf16.mxu0 0
        %529 = vmatpush1.bf16.msra.mxu0 0
        %530 = vmatprep.subr.bf16.mxu0 0
        %531 = vmatpush1.bf16.msra.mxu0 0
        %532 = vmatprep.subr.bf16.mxu0 0
        %533 = vmatpush1.bf16.msra.mxu0 0
        %534 = vmatprep.subr.bf16.mxu0 0
        %535 = vmatpush1.bf16.msra.mxu0 0
        %536 = vmatprep.subr.bf16.mxu0 0
        %537 = vmatpush1.bf16.msra.mxu0 0
        %538 = vmatprep.mubr.bf16.mxu0 0
        %539 = vmatmul.mubr.bf16.gmra.mrb[0].mxu0 %v325
        %v540 = vpop.f32.mrb[0].mxu0
        %v541 = vadd.f32 %v366, %v540
        %v542 = vpop.f32.mrb[0].mxu0
        %v543 = vadd.f32 %v370, %v542
        %v544 = vpop.f32.mrb[0].mxu0
        %v545 = vadd.f32 %v366, %v544
        %v546 = vpop.f32.mrb[0].mxu0
        %v547 = vadd.f32 %v370, %v546
        %548 = vmatprep.mubr.bf16.mxu0 0
        %549 = vmatmul.mubr.bf16.gmra.mrb[0].mxu0 %v326
        %v550 = vpop.f32.mrb[0].mxu0
        %v551 = vadd.f32 %v366, %v550
        %v552 = vpop.f32.mrb[0].mxu0
        %v553 = vadd.f32 %v370, %v552
        %v554 = vpop.f32.mrb[0].mxu0
        %v555 = vadd.f32 %v366, %v554
        %v556 = vpop.f32.mrb[0].mxu0
        %v557 = vadd.f32 %v370, %v556
        %558 = vmatprep.mubr.bf16.mxu0 0
        %559 = vmatmul.mubr.bf16.gmra.mrb[0].mxu0 %v327
        %v560 = vpop.f32.mrb[0].mxu0
        %v561 = vadd.f32 %v366, %v560
        %v562 = vpop.f32.mrb[0].mxu0
        %v563 = vadd.f32 %v370, %v562
        %v564 = vpop.f32.mrb[0].mxu0
        %v565 = vadd.f32 %v366, %v564
        %v566 = vpop.f32.mrb[0].mxu0
        %v567 = vadd.f32 %v370, %v566
        %568 = vmatprep.mubr.bf16.mxu0 0
        %569 = vmatmul.mubr.bf16.gmra.mrb[0].mxu0 %v328
        %v570 = vpop.f32.mrb[0].mxu0
        %v571 = vadd.f32 %v366, %v570
        %v572 = vpop.f32.mrb[0].mxu0
        %v573 = vadd.f32 %v370, %v572
        %v574 = vpop.f32.mrb[0].mxu0
        %v575 = vadd.f32 %v366, %v574
        %v576 = vpop.f32.mrb[0].mxu0
        %v577 = vadd.f32 %v370, %v576
        %578 = vdwg.mxu0
        %579 = vmatprep.subr.bf16.mxu0 0
        %580 = vmatpush1.bf16.msra.mxu0 %v460
        %581 = vmatprep.subr.bf16.mxu0 0
        %582 = vmatpush1.bf16.msra.mxu0 %v463
        %583 = vmatprep.subr.bf16.mxu0 0
        %584 = vmatpush1.bf16.msra.mxu0 %v466
        %585 = vmatprep.subr.bf16.mxu0 0
        %586 = vmatpush1.bf16.msra.mxu0 %v469
        %587 = vmatprep.subr.bf16.mxu0 0
        %588 = vmatpush1.bf16.msra.mxu0 %v472
        %589 = vmatprep.subr.bf16.mxu0 0
        %590 = vmatpush1.bf16.msra.mxu0 %v475
        %591 = vmatprep.subr.bf16.mxu0 0
        %592 = vmatpush1.bf16.msra.mxu0 %v478
        %593 = vmatprep.subr.bf16.mxu0 0
        %594 = vmatpush1.bf16.msra.mxu0 %v481
        %595 = vmatprep.subr.bf16.mxu0 0
        %596 = vmatpush1.bf16.msra.mxu0 0
        %597 = vmatprep.subr.bf16.mxu0 0
        %598 = vmatpush1.bf16.msra.mxu0 0
        %599 = vmatprep.subr.bf16.mxu0 0
        %600 = vmatpush1.bf16.msra.mxu0 0
        %601 = vmatprep.subr.bf16.mxu0 0
        %602 = vmatpush1.bf16.msra.mxu0 0
        %603 = vmatprep.subr.bf16.mxu0 0
        %604 = vmatpush1.bf16.msra.mxu0 0
        %605 = vmatprep.subr.bf16.mxu0 0
        %606 = vmatpush1.bf16.msra.mxu0 0
        %607 = vmatprep.subr.bf16.mxu0 0
        %608 = vmatpush1.bf16.msra.mxu0 0
        %609 = vmatprep.subr.bf16.mxu0 0
        %610 = vmatpush1.bf16.msra.mxu0 0
        %611 = vmatprep.mubr.bf16.mxu0 0
        %612 = vmatmul.mubr.bf16.gmra.mrb[0].mxu0 %v325
        %v613 = vpop.f32.mrb[0].mxu0
        %v614 = vadd.f32 %v374, %v613
        %v615 = vpop.f32.mrb[0].mxu0
        %v616 = vpop.f32.mrb[0].mxu0
        %v617 = vadd.f32 %v374, %v616
        %v618 = vpop.f32.mrb[0].mxu0
        %619 = vmatprep.mubr.bf16.mxu0 0
        %620 = vmatmul.mubr.bf16.gmra.mrb[0].mxu0 %v326
        %v621 = vpop.f32.mrb[0].mxu0
        %v622 = vadd.f32 %v374, %v621
        %v623 = vpop.f32.mrb[0].mxu0
        %v624 = vpop.f32.mrb[0].mxu0
        %v625 = vadd.f32 %v374, %v624
        %v626 = vpop.f32.mrb[0].mxu0
        %627 = vmatprep.mubr.bf16.mxu0 0
        %628 = vmatmul.mubr.bf16.gmra.mrb[0].mxu0 %v327
        %v629 = vpop.f32.mrb[0].mxu0
        %v630 = vadd.f32 %v374, %v629
        %v631 = vpop.f32.mrb[0].mxu0
        %v632 = vpop.f32.mrb[0].mxu0
        %v633 = vadd.f32 %v374, %v632
        %v634 = vpop.f32.mrb[0].mxu0
        %635 = vmatprep.mubr.bf16.mxu0 0
        %636 = vmatmul.mubr.bf16.gmra.mrb[0].mxu0 %v328
        %v637 = vpop.f32.mrb[0].mxu0
        %v638 = vadd.f32 %v374, %v637
        %v639 = vpop.f32.mrb[0].mxu0
        %v640 = vpop.f32.mrb[0].mxu0
        %v641 = vadd.f32 %v374, %v640
        %v642 = vpop.f32.mrb[0].mxu0
        %643 = vdwg.mxu0
        %v644 = vpack.c.bf16 %v545, %v541
        %v645 = vpack.c.bf16 %v555, %v551
        %v646 = vpack.c.bf16 %v565, %v561
        %v647 = vpack.c.bf16 %v575, %v571
        %v648 = vpack.c.bf16 %v547, %v543
        %v649 = vpack.c.bf16 %v557, %v553
        %v650 = vpack.c.bf16 %v567, %v563
        %v651 = vpack.c.bf16 %v577, %v573
        %v652 = vpack.c.bf16 %v617, %v614
        %v653 = vpack.c.bf16 %v625, %v622
        %v654 = vpack.c.bf16 %v633, %v630
        %v655 = vpack.c.bf16 %v641, %v638
        %v656 = vld [vmem:[#allocation7] sm:$0xff]
        %v657 = vld [vmem:[#allocation7 + $0x8] sm:$0xff]
        %v658 = vld [vmem:[#allocation7 + $0x10] sm:$0xff]
        %v659 = vld [vmem:[#allocation7 + $0x18] sm:$0xff]
        %v660 = vld [vmem:[#allocation7 + $0x20] sm:$0xff]
        %v661 = vld [vmem:[#allocation7 + $0x28] sm:$0xff]
        %v662 = vld [vmem:[#allocation7 + $0x30] sm:$0xff]
        %v663 = vld [vmem:[#allocation7 + $0x38] sm:$0xff]
        %vm664 = vcmask 64512
        %v666 = vsel %vm664, %v644, 0
        %v669 = vsel %vm664, %v648, 0
        %671 = vmatprep.subr.bf16.mxu0 0
        %672 = vmatpush1.bf16.xpose.msra.mxu0 %v669
        %673 = vmatprep.subr.bf16.mxu0 0
        %674 = vmatpush1.bf16.xpose.msra.mxu0 0
        %675 = vmatprep.subr.bf16.mxu0 0
        %676 = vmatpush1.bf16.xpose.msra.mxu0 0
        %677 = vmatprep.subr.bf16.mxu0 0
        %678 = vmatpush1.bf16.xpose.msra.mxu0 0
        %679 = vmatprep.subr.bf16.mxu0 0
        %680 = vmatpush1.bf16.xpose.msra.mxu0 0
        %681 = vmatprep.subr.bf16.mxu0 0
        %682 = vmatpush1.bf16.xpose.msra.mxu0 0
        %683 = vmatprep.subr.bf16.mxu0 0
        %684 = vmatpush1.bf16.xpose.msra.mxu0 0
        %685 = vmatprep.subr.bf16.mxu0 0
        %686 = vmatpush1.bf16.xpose.msra.mxu0 0
        %687 = vmatprep.subr.bf16.mxu0 0
        %688 = vmatpush1.bf16.xpose.msra.mxu0 0
        %689 = vmatprep.subr.bf16.mxu0 0
        %690 = vmatpush1.bf16.xpose.msra.mxu0 0
        %691 = vmatprep.subr.bf16.mxu0 0
        %692 = vmatpush1.bf16.xpose.msra.mxu0 0
        %693 = vmatprep.subr.bf16.mxu0 0
        %694 = vmatpush1.bf16.xpose.msra.mxu0 0
        %695 = vmatprep.subr.bf16.mxu0 0
        %696 = vmatpush1.bf16.xpose.msra.mxu0 0
        %697 = vmatprep.subr.bf16.mxu0 0
        %698 = vmatpush1.bf16.xpose.msra.mxu0 0
        %699 = vmatprep.subr.bf16.mxu0 0
        %700 = vmatpush1.bf16.xpose.msra.mxu0 0
        %701 = vmatprep.subr.bf16.mxu0 0
        %702 = vmatpush1.bf16.xpose.msra.mxu0 0
        %703 = vmatprep.mubr.bf16.mxu0 0
        %704 = vmatmul.mubr.bf16.gmra.mrb[0].mxu0 %v666
        %v705 = vpop.f32.mrb[0].mxu0
        %v706 = vadd.f32 %v656, %v705
        %v707 = vpop.f32.mrb[0].mxu0
        %v708 = vpop.f32.mrb[0].mxu0
        %v709 = vadd.f32 %v657, %v708
        %v710 = vpop.f32.mrb[0].mxu0
        %711 = vdwg.mxu0
        %v713 = vsel %vm664, %v645, 0
        %v716 = vsel %vm664, %v649, 0
        %718 = vmatprep.subr.bf16.mxu0 0
        %719 = vmatpush1.bf16.xpose.msra.mxu0 %v716
        %720 = vmatprep.subr.bf16.mxu0 0
        %721 = vmatpush1.bf16.xpose.msra.mxu0 0
        %722 = vmatprep.subr.bf16.mxu0 0
        %723 = vmatpush1.bf16.xpose.msra.mxu0 0
        %724 = vmatprep.subr.bf16.mxu0 0
        %725 = vmatpush1.bf16.xpose.msra.mxu0 0
        %726 = vmatprep.subr.bf16.mxu0 0
        %727 = vmatpush1.bf16.xpose.msra.mxu0 0
        %728 = vmatprep.subr.bf16.mxu0 0
        %729 = vmatpush1.bf16.xpose.msra.mxu0 0
        %730 = vmatprep.subr.bf16.mxu0 0
        %731 = vmatpush1.bf16.xpose.msra.mxu0 0
        %732 = vmatprep.subr.bf16.mxu0 0
        %733 = vmatpush1.bf16.xpose.msra.mxu0 0
        %734 = vmatprep.subr.bf16.mxu0 0
        %735 = vmatpush1.bf16.xpose.msra.mxu0 0
        %736 = vmatprep.subr.bf16.mxu0 0
        %737 = vmatpush1.bf16.xpose.msra.mxu0 0
        %738 = vmatprep.subr.bf16.mxu0 0
        %739 = vmatpush1.bf16.xpose.msra.mxu0 0
        %740 = vmatprep.subr.bf16.mxu0 0
        %741 = vmatpush1.bf16.xpose.msra.mxu0 0
        %742 = vmatprep.subr.bf16.mxu0 0
        %743 = vmatpush1.bf16.xpose.msra.mxu0 0
        %744 = vmatprep.subr.bf16.mxu0 0
        %745 = vmatpush1.bf16.xpose.msra.mxu0 0
        %746 = vmatprep.subr.bf16.mxu0 0
        %747 = vmatpush1.bf16.xpose.msra.mxu0 0
        %748 = vmatprep.subr.bf16.mxu0 0
        %749 = vmatpush1.bf16.xpose.msra.mxu0 0
        %750 = vmatprep.mubr.bf16.mxu0 0
        %751 = vmatmul.mubr.bf16.gmra.mrb[0].mxu0 %v713
        %v752 = vpop.f32.mrb[0].mxu0
        %v753 = vadd.f32 %v658, %v752
        %v754 = vpop.f32.mrb[0].mxu0
        %v755 = vpop.f32.mrb[0].mxu0
        %v756 = vadd.f32 %v659, %v755
        %v757 = vpop.f32.mrb[0].mxu0
        %758 = vdwg.mxu0
        %v760 = vsel %vm664, %v646, 0
        %v763 = vsel %vm664, %v650, 0
        %765 = vmatprep.subr.bf16.mxu0 0
        %766 = vmatpush1.bf16.xpose.msra.mxu0 %v763
        %767 = vmatprep.subr.bf16.mxu0 0
        %768 = vmatpush1.bf16.xpose.msra.mxu0 0
        %769 = vmatprep.subr.bf16.mxu0 0
        %770 = vmatpush1.bf16.xpose.msra.mxu0 0
        %771 = vmatprep.subr.bf16.mxu0 0
        %772 = vmatpush1.bf16.xpose.msra.mxu0 0
        %773 = vmatprep.subr.bf16.mxu0 0
        %774 = vmatpush1.bf16.xpose.msra.mxu0 0
        %775 = vmatprep.subr.bf16.mxu0 0
        %776 = vmatpush1.bf16.xpose.msra.mxu0 0
        %777 = vmatprep.subr.bf16.mxu0 0
        %778 = vmatpush1.bf16.xpose.msra.mxu0 0
        %779 = vmatprep.subr.bf16.mxu0 0
        %780 = vmatpush1.bf16.xpose.msra.mxu0 0
        %781 = vmatprep.subr.bf16.mxu0 0
        %782 = vmatpush1.bf16.xpose.msra.mxu0 0
        %783 = vmatprep.subr.bf16.mxu0 0
        %784 = vmatpush1.bf16.xpose.msra.mxu0 0
        %785 = vmatprep.subr.bf16.mxu0 0
        %786 = vmatpush1.bf16.xpose.msra.mxu0 0
        %787 = vmatprep.subr.bf16.mxu0 0
        %788 = vmatpush1.bf16.xpose.msra.mxu0 0
        %789 = vmatprep.subr.bf16.mxu0 0
        %790 = vmatpush1.bf16.xpose.msra.mxu0 0
        %791 = vmatprep.subr.bf16.mxu0 0
        %792 = vmatpush1.bf16.xpose.msra.mxu0 0
        %793 = vmatprep.subr.bf16.mxu0 0
        %794 = vmatpush1.bf16.xpose.msra.mxu0 0
        %795 = vmatprep.subr.bf16.mxu0 0
        %796 = vmatpush1.bf16.xpose.msra.mxu0 0
        %797 = vmatprep.mubr.bf16.mxu0 0
        %798 = vmatmul.mubr.bf16.gmra.mrb[0].mxu0 %v760
        %v799 = vpop.f32.mrb[0].mxu0
        %v800 = vadd.f32 %v660, %v799
        %v801 = vpop.f32.mrb[0].mxu0
        %v802 = vpop.f32.mrb[0].mxu0
        %v803 = vadd.f32 %v661, %v802
        %v804 = vpop.f32.mrb[0].mxu0
        %805 = vdwg.mxu0
        %v807 = vsel %vm664, %v647, 0
        %v810 = vsel %vm664, %v651, 0
        %812 = vmatprep.subr.bf16.mxu0 0
        %813 = vmatpush1.bf16.xpose.msra.mxu0 %v810
        %814 = vmatprep.subr.bf16.mxu0 0
        %815 = vmatpush1.bf16.xpose.msra.mxu0 0
        %816 = vmatprep.subr.bf16.mxu0 0
        %817 = vmatpush1.bf16.xpose.msra.mxu0 0
        %818 = vmatprep.subr.bf16.mxu0 0
        %819 = vmatpush1.bf16.xpose.msra.mxu0 0
        %820 = vmatprep.subr.bf16.mxu0 0
        %821 = vmatpush1.bf16.xpose.msra.mxu0 0
        %822 = vmatprep.subr.bf16.mxu0 0
        %823 = vmatpush1.bf16.xpose.msra.mxu0 0
        %824 = vmatprep.subr.bf16.mxu0 0
        %825 = vmatpush1.bf16.xpose.msra.mxu0 0
        %826 = vmatprep.subr.bf16.mxu0 0
        %827 = vmatpush1.bf16.xpose.msra.mxu0 0
        %828 = vmatprep.subr.bf16.mxu0 0
        %829 = vmatpush1.bf16.xpose.msra.mxu0 0
        %830 = vmatprep.subr.bf16.mxu0 0
        %831 = vmatpush1.bf16.xpose.msra.mxu0 0
        %832 = vmatprep.subr.bf16.mxu0 0
        %833 = vmatpush1.bf16.xpose.msra.mxu0 0
        %834 = vmatprep.subr.bf16.mxu0 0
        %835 = vmatpush1.bf16.xpose.msra.mxu0 0
        %836 = vmatprep.subr.bf16.mxu0 0
        %837 = vmatpush1.bf16.xpose.msra.mxu0 0
        %838 = vmatprep.subr.bf16.mxu0 0
        %839 = vmatpush1.bf16.xpose.msra.mxu0 0
        %840 = vmatprep.subr.bf16.mxu0 0
        %841 = vmatpush1.bf16.xpose.msra.mxu0 0
        %842 = vmatprep.subr.bf16.mxu0 0
        %843 = vmatpush1.bf16.xpose.msra.mxu0 0
        %844 = vmatprep.mubr.bf16.mxu0 0
        %845 = vmatmul.mubr.bf16.gmra.mrb[0].mxu0 %v807
        %v846 = vpop.f32.mrb[0].mxu0
        %v847 = vadd.f32 %v662, %v846
        %v848 = vpop.f32.mrb[0].mxu0
        %v849 = vpop.f32.mrb[0].mxu0
        %v850 = vadd.f32 %v663, %v849
        %v851 = vpop.f32.mrb[0].mxu0
        %852 = vdwg.mxu0
        %vm853 = vcmask 130048
        %v854 = vsel %vm853, %v706, -inf
        %855 = vmax.xlane.f32.xlu0 %v854
        %v856 = vpop.xlane.xlu0 %855
        %v857 = vsel %vm853, %v709, -inf
        %858 = vmax.xlane.f32.xlu0 %v857
        %v859 = vpop.xlane.xlu0 %858
        %v860 = vsel %vm853, %v753, -inf
        %861 = vmax.xlane.f32.xlu0 %v860
        %v862 = vpop.xlane.xlu0 %861
        %v863 = vsel %vm853, %v756, -inf
        %864 = vmax.xlane.f32.xlu0 %v863
        %v865 = vpop.xlane.xlu0 %864
        %v866 = vsel %vm853, %v800, -inf
        %867 = vmax.xlane.f32.xlu0 %v866
        %v868 = vpop.xlane.xlu0 %867
        %v869 = vsel %vm853, %v803, -inf
        %870 = vmax.xlane.f32.xlu0 %v869
        %v871 = vpop.xlane.xlu0 %870
        %v872 = vsel %vm853, %v847, -inf
        %873 = vmax.xlane.f32.xlu0 %v872
        %v874 = vpop.xlane.xlu0 %873
        %v875 = vsel %vm853, %v850, -inf
        %876 = vmax.xlane.f32.xlu0 %v875
        %v877 = vpop.xlane.xlu0 %876
        %v878 = vsub.f32 %v706, %v856
        %v879 = vsub.f32 %v709, %v859
        %v880 = vsub.f32 %v753, %v862
        %v881 = vsub.f32 %v756, %v865
        %v882 = vsub.f32 %v800, %v868
        %v883 = vsub.f32 %v803, %v871
        %v884 = vsub.f32 %v847, %v874
        %v885 = vsub.f32 %v850, %v877
        %v886 = vmul.f32 %v878, 1.442695
        %v887 = vpow.pop %v886
        %v888 = vmul.f32 %v879, 1.442695
        %v889 = vpow.pop %v888
        %v890 = vmul.f32 %v880, 1.442695
        %v891 = vpow.pop %v890
        %v892 = vmul.f32 %v881, 1.442695
        %v893 = vpow.pop %v892
        %v894 = vmul.f32 %v882, 1.442695
        %v895 = vpow.pop %v894
        %v896 = vmul.f32 %v883, 1.442695
        %v897 = vpow.pop %v896
        %v898 = vmul.f32 %v884, 1.442695
        %v899 = vpow.pop %v898
        %v900 = vmul.f32 %v885, 1.442695
        %v901 = vpow.pop %v900
        %v902 = vsel %vm853, %v887, 0.0
        %903 = vadd.xlane.f32.xlu0 %v902
        %v904 = vpop.xlane.xlu0 %903
        %v905 = vsel %vm853, %v889, 0.0
        %906 = vadd.xlane.f32.xlu0 %v905
        %v907 = vpop.xlane.xlu0 %906
        %v908 = vsel %vm853, %v891, 0.0
        %909 = vadd.xlane.f32.xlu0 %v908
        %v910 = vpop.xlane.xlu0 %909
        %v911 = vsel %vm853, %v893, 0.0
        %912 = vadd.xlane.f32.xlu0 %v911
        %v913 = vpop.xlane.xlu0 %912
        %v914 = vsel %vm853, %v895, 0.0
        %915 = vadd.xlane.f32.xlu0 %v914
        %v916 = vpop.xlane.xlu0 %915
        %v917 = vsel %vm853, %v897, 0.0
        %918 = vadd.xlane.f32.xlu0 %v917
        %v919 = vpop.xlane.xlu0 %918
        %v920 = vsel %vm853, %v899, 0.0
        %921 = vadd.xlane.f32.xlu0 %v920
        %v922 = vpop.xlane.xlu0 %921
        %v923 = vsel %vm853, %v901, 0.0
        %924 = vadd.xlane.f32.xlu0 %v923
        %v925 = vpop.xlane.xlu0 %924
        %v926 = vrcp.pop %v904
        %v927 = vrcp.pop %v907
        %v928 = vrcp.pop %v910
        %v929 = vrcp.pop %v913
        %v930 = vrcp.pop %v916
        %v931 = vrcp.pop %v919
        %v932 = vrcp.pop %v922
        %v933 = vrcp.pop %v925
        %v934 = vmul.f32 %v887, %v926
        %v935 = vmul.f32 %v889, %v927
        %v936 = vmul.f32 %v891, %v928
        %v937 = vmul.f32 %v893, %v929
        %v938 = vmul.f32 %v895, %v930
        %v939 = vmul.f32 %v897, %v931
        %v940 = vmul.f32 %v899, %v932
        %v941 = vmul.f32 %v901, %v933
        %v942 = vpack.c.bf16 %v935, %v934
        %v943 = vpack.c.bf16 %v937, %v936
        %v944 = vpack.c.bf16 %v939, %v938
        %v945 = vpack.c.bf16 %v941, %v940
        %v947 = vsel %vm853, %v942, 0
        %949 = vmatprep.subr.bf16.mxu0 0
        %950 = vmatpush1.bf16.msra.mxu0 %v652
        %951 = vmatprep.subr.bf16.mxu0 0
        %952 = vmatpush1.bf16.msra.mxu0 0
        %953 = vmatprep.subr.bf16.mxu0 0
        %954 = vmatpush1.bf16.msra.mxu0 0
        %955 = vmatprep.subr.bf16.mxu0 0
        %956 = vmatpush1.bf16.msra.mxu0 0
        %957 = vmatprep.subr.bf16.mxu0 0
        %958 = vmatpush1.bf16.msra.mxu0 0
        %959 = vmatprep.subr.bf16.mxu0 0
        %960 = vmatpush1.bf16.msra.mxu0 0
        %961 = vmatprep.subr.bf16.mxu0 0
        %962 = vmatpush1.bf16.msra.mxu0 0
        %963 = vmatprep.subr.bf16.mxu0 0
        %964 = vmatpush1.bf16.msra.mxu0 0
        %965 = vmatprep.subr.bf16.mxu0 0
        %966 = vmatpush1.bf16.msra.mxu0 0
        %967 = vmatprep.subr.bf16.mxu0 0
        %968 = vmatpush1.bf16.msra.mxu0 0
        %969 = vmatprep.subr.bf16.mxu0 0
        %970 = vmatpush1.bf16.msra.mxu0 0
        %971 = vmatprep.subr.bf16.mxu0 0
        %972 = vmatpush1.bf16.msra.mxu0 0
        %973 = vmatprep.subr.bf16.mxu0 0
        %974 = vmatpush1.bf16.msra.mxu0 0
        %975 = vmatprep.subr.bf16.mxu0 0
        %976 = vmatpush1.bf16.msra.mxu0 0
        %977 = vmatprep.subr.bf16.mxu0 0
        %978 = vmatpush1.bf16.msra.mxu0 0
        %979 = vmatprep.subr.bf16.mxu0 0
        %980 = vmatpush1.bf16.msra.mxu0 0
        %981 = vmatprep.mubr.bf16.mxu0 0
        %982 = vmatmul.mubr.bf16.gmra.mrb[0].mxu0 %v947
        %v983 = vpop.f32.mrb[0].mxu0
        %v984 = vadd.f32 0.0, %v983
        %v985 = vpop.f32.mrb[0].mxu0
        %v986 = vpop.f32.mrb[0].mxu0
        %v987 = vadd.f32 0.0, %v986
        %v988 = vpop.f32.mrb[0].mxu0
        %989 = vdwg.mxu0
        %v991 = vsel %vm853, %v943, 0
        %993 = vmatprep.subr.bf16.mxu0 0
        %994 = vmatpush1.bf16.msra.mxu0 %v653
        %995 = vmatprep.subr.bf16.mxu0 0
        %996 = vmatpush1.bf16.msra.mxu0 0
        %997 = vmatprep.subr.bf16.mxu0 0
        %998 = vmatpush1.bf16.msra.mxu0 0
        %999 = vmatprep.subr.bf16.mxu0 0
        %1000 = vmatpush1.bf16.msra.mxu0 0
        %1001 = vmatprep.subr.bf16.mxu0 0
        %1002 = vmatpush1.bf16.msra.mxu0 0
        %1003 = vmatprep.subr.bf16.mxu0 0
        %1004 = vmatpush1.bf16.msra.mxu0 0
        %1005 = vmatprep.subr.bf16.mxu0 0
        %1006 = vmatpush1.bf16.msra.mxu0 0
        %1007 = vmatprep.subr.bf16.mxu0 0
        %1008 = vmatpush1.bf16.msra.mxu0 0
        %1009 = vmatprep.subr.bf16.mxu0 0
        %1010 = vmatpush1.bf16.msra.mxu0 0
        %1011 = vmatprep.subr.bf16.mxu0 0
        %1012 = vmatpush1.bf16.msra.mxu0 0
        %1013 = vmatprep.subr.bf16.mxu0 0
        %1014 = vmatpush1.bf16.msra.mxu0 0
        %1015 = vmatprep.subr.bf16.mxu0 0
        %1016 = vmatpush1.bf16.msra.mxu0 0
        %1017 = vmatprep.subr.bf16.mxu0 0
        %1018 = vmatpush1.bf16.msra.mxu0 0
        %1019 = vmatprep.subr.bf16.mxu0 0
        %1020 = vmatpush1.bf16.msra.mxu0 0
        %1021 = vmatprep.subr.bf16.mxu0 0
        %1022 = vmatpush1.bf16.msra.mxu0 0
        %1023 = vmatprep.subr.bf16.mxu0 0
        %1024 = vmatpush1.bf16.msra.mxu0 0
        %1025 = vmatprep.mubr.bf16.mxu0 0
        %1026 = vmatmul.mubr.bf16.gmra.mrb[0].mxu0 %v991
        %v1027 = vpop.f32.mrb[0].mxu0
        %v1028 = vadd.f32 0.0, %v1027
        %v1029 = vpop.f32.mrb[0].mxu0
        %v1030 = vpop.f32.mrb[0].mxu0
        %v1031 = vadd.f32 0.0, %v1030
        %v1032 = vpop.f32.mrb[0].mxu0
        %1033 = vdwg.mxu0
        %v1035 = vsel %vm853, %v944, 0
        %1037 = vmatprep.subr.bf16.mxu0 0
        %1038 = vmatpush1.bf16.msra.mxu0 %v654
        %1039 = vmatprep.subr.bf16.mxu0 0
        %1040 = vmatpush1.bf16.msra.mxu0 0
        %1041 = vmatprep.subr.bf16.mxu0 0
        %1042 = vmatpush1.bf16.msra.mxu0 0
        %1043 = vmatprep.subr.bf16.mxu0 0
        %1044 = vmatpush1.bf16.msra.mxu0 0
        %1045 = vmatprep.subr.bf16.mxu0 0
        %1046 = vmatpush1.bf16.msra.mxu0 0
        %1047 = vmatprep.subr.bf16.mxu0 0
        %1048 = vmatpush1.bf16.msra.mxu0 0
        %1049 = vmatprep.subr.bf16.mxu0 0
        %1050 = vmatpush1.bf16.msra.mxu0 0
        %1051 = vmatprep.subr.bf16.mxu0 0
        %1052 = vmatpush1.bf16.msra.mxu0 0
        %1053 = vmatprep.subr.bf16.mxu0 0
        %1054 = vmatpush1.bf16.msra.mxu0 0
        %1055 = vmatprep.subr.bf16.mxu0 0
        %1056 = vmatpush1.bf16.msra.mxu0 0
        %1057 = vmatprep.subr.bf16.mxu0 0
        %1058 = vmatpush1.bf16.msra.mxu0 0
        %1059 = vmatprep.subr.bf16.mxu0 0
        %1060 = vmatpush1.bf16.msra.mxu0 0
        %1061 = vmatprep.subr.bf16.mxu0 0
        %1062 = vmatpush1.bf16.msra.mxu0 0
        %1063 = vmatprep.subr.bf16.mxu0 0
        %1064 = vmatpush1.bf16.msra.mxu0 0
        %1065 = vmatprep.subr.bf16.mxu0 0
        %1066 = vmatpush1.bf16.msra.mxu0 0
        %1067 = vmatprep.subr.bf16.mxu0 0
        %1068 = vmatpush1.bf16.msra.mxu0 0
        %1069 = vmatprep.mubr.bf16.mxu0 0
        %1070 = vmatmul.mubr.bf16.gmra.mrb[0].mxu0 %v1035
        %v1071 = vpop.f32.mrb[0].mxu0
        %v1072 = vadd.f32 0.0, %v1071
        %v1073 = vpop.f32.mrb[0].mxu0
        %v1074 = vpop.f32.mrb[0].mxu0
        %v1075 = vadd.f32 0.0, %v1074
        %v1076 = vpop.f32.mrb[0].mxu0
        %1077 = vdwg.mxu0
        %v1079 = vsel %vm853, %v945, 0
        %1081 = vmatprep.subr.bf16.mxu0 0
        %1082 = vmatpush1.bf16.msra.mxu0 %v655
        %1083 = vmatprep.subr.bf16.mxu0 0
        %1084 = vmatpush1.bf16.msra.mxu0 0
        %1085 = vmatprep.subr.bf16.mxu0 0
        %1086 = vmatpush1.bf16.msra.mxu0 0
        %1087 = vmatprep.subr.bf16.mxu0 0
        %1088 = vmatpush1.bf16.msra.mxu0 0
        %1089 = vmatprep.subr.bf16.mxu0 0
        %1090 = vmatpush1.bf16.msra.mxu0 0
        %1091 = vmatprep.subr.bf16.mxu0 0
        %1092 = vmatpush1.bf16.msra.mxu0 0
        %1093 = vmatprep.subr.bf16.mxu0 0
        %1094 = vmatpush1.bf16.msra.mxu0 0
        %1095 = vmatprep.subr.bf16.mxu0 0
        %1096 = vmatpush1.bf16.msra.mxu0 0
        %1097 = vmatprep.subr.bf16.mxu0 0
        %1098 = vmatpush1.bf16.msra.mxu0 0
        %1099 = vmatprep.subr.bf16.mxu0 0
        %1100 = vmatpush1.bf16.msra.mxu0 0
        %1101 = vmatprep.subr.bf16.mxu0 0
        %1102 = vmatpush1.bf16.msra.mxu0 0
        %1103 = vmatprep.subr.bf16.mxu0 0
        %1104 = vmatpush1.bf16.msra.mxu0 0
        %1105 = vmatprep.subr.bf16.mxu0 0
        %1106 = vmatpush1.bf16.msra.mxu0 0
        %1107 = vmatprep.subr.bf16.mxu0 0
        %1108 = vmatpush1.bf16.msra.mxu0 0
        %1109 = vmatprep.subr.bf16.mxu0 0
        %1110 = vmatpush1.bf16.msra.mxu0 0
        %1111 = vmatprep.subr.bf16.mxu0 0
        %1112 = vmatpush1.bf16.msra.mxu0 0
        %1113 = vmatprep.mubr.bf16.mxu0 0
        %1114 = vmatmul.mubr.bf16.gmra.mrb[0].mxu0 %v1079
        %v1115 = vpop.f32.mrb[0].mxu0
        %v1116 = vadd.f32 0.0, %v1115
        %v1117 = vpop.f32.mrb[0].mxu0
        %v1118 = vpop.f32.mrb[0].mxu0
        %v1119 = vadd.f32 0.0, %v1118
        %v1120 = vpop.f32.mrb[0].mxu0
        %1121 = vdwg.mxu0
        %v1122 = vpack.c.bf16 %v987, %v984
        %v1123 = vpack.c.bf16 %v1031, %v1028
        %v1124 = vpack.c.bf16 %v1075, %v1072
        %v1125 = vpack.c.bf16 %v1119, %v1116
        %v1126 = vld [vmem:[#allocation8] sm:$0xf]
        %s1127 = scalar_lea.vmem [#allocation7], 64
        %v1128 = vld [vmem:[%s1127] sm:$0xff]
        %v1129 = vld [vmem:[%s1127 + $0x8] sm:$0xff]
        %v1130 = vld [vmem:[%s1127 + $0x10] sm:$0xff]
        %v1131 = vld [vmem:[%s1127 + $0x18] sm:$0xff]
        %v1132 = vld [vmem:[%s1127 + $0x20] sm:$0xff]
        %v1133 = vld [vmem:[%s1127 + $0x28] sm:$0xff]
        %v1134 = vld [vmem:[%s1127 + $0x30] sm:$0xff]
        %v1135 = vld [vmem:[%s1127 + $0x38] sm:$0xff]
        %1137 = vrot.lane.b32.xlu0 %v644, 120
        %v1138 = vpop.permute.xlu0 %1137
        %1140 = vrot.lane.b32.xlu0 %v648, 120
        %v1141 = vpop.permute.xlu0 %1140
        %v1143 = vsel %vm664, %v1138, 0
        %v1146 = vsel %vm664, %v1141, 0
        %1148 = vmatprep.subr.bf16.mxu0 0
        %1149 = vmatpush1.bf16.xpose.msra.mxu0 %v1146
        %1150 = vmatprep.subr.bf16.mxu0 0
        %1151 = vmatpush1.bf16.xpose.msra.mxu0 0
        %1152 = vmatprep.subr.bf16.mxu0 0
        %1153 = vmatpush1.bf16.xpose.msra.mxu0 0
        %1154 = vmatprep.subr.bf16.mxu0 0
        %1155 = vmatpush1.bf16.xpose.msra.mxu0 0
        %1156 = vmatprep.subr.bf16.mxu0 0
        %1157 = vmatpush1.bf16.xpose.msra.mxu0 0
        %1158 = vmatprep.subr.bf16.mxu0 0
        %1159 = vmatpush1.bf16.xpose.msra.mxu0 0
        %1160 = vmatprep.subr.bf16.mxu0 0
        %1161 = vmatpush1.bf16.xpose.msra.mxu0 0
        %1162 = vmatprep.subr.bf16.mxu0 0
        %1163 = vmatpush1.bf16.xpose.msra.mxu0 0
        %1164 = vmatprep.subr.bf16.mxu0 0
        %1165 = vmatpush1.bf16.xpose.msra.mxu0 0
        %1166 = vmatprep.subr.bf16.mxu0 0
        %1167 = vmatpush1.bf16.xpose.msra.mxu0 0
        %1168 = vmatprep.subr.bf16.mxu0 0
        %1169 = vmatpush1.bf16.xpose.msra.mxu0 0
        %1170 = vmatprep.subr.bf16.mxu0 0
        %1171 = vmatpush1.bf16.xpose.msra.mxu0 0
        %1172 = vmatprep.subr.bf16.mxu0 0
        %1173 = vmatpush1.bf16.xpose.msra.mxu0 0
        %1174 = vmatprep.subr.bf16.mxu0 0
        %1175 = vmatpush1.bf16.xpose.msra.mxu0 0
        %1176 = vmatprep.subr.bf16.mxu0 0
        %1177 = vmatpush1.bf16.xpose.msra.mxu0 0
        %1178 = vmatprep.subr.bf16.mxu0 0
        %1179 = vmatpush1.bf16.xpose.msra.mxu0 0
        %1180 = vmatprep.mubr.bf16.mxu0 0
        %1181 = vmatmul.mubr.bf16.gmra.mrb[0].mxu0 %v1143
        %v1182 = vpop.f32.mrb[0].mxu0
        %v1183 = vadd.f32 %v1128, %v1182
        %v1184 = vpop.f32.mrb[0].mxu0
        %v1185 = vpop.f32.mrb[0].mxu0
        %v1186 = vadd.f32 %v1129, %v1185
        %v1187 = vpop.f32.mrb[0].mxu0
        %1188 = vdwg.mxu0
        %1190 = vrot.lane.b32.xlu0 %v645, 120
        %v1191 = vpop.permute.xlu0 %1190
        %1193 = vrot.lane.b32.xlu0 %v649, 120
        %v1194 = vpop.permute.xlu0 %1193
        %v1196 = vsel %vm664, %v1191, 0
        %v1199 = vsel %vm664, %v1194, 0
        %1201 = vmatprep.subr.bf16.mxu0 0
        %1202 = vmatpush1.bf16.xpose.msra.mxu0 %v1199
        %1203 = vmatprep.subr.bf16.mxu0 0
        %1204 = vmatpush1.bf16.xpose.msra.mxu0 0
        %1205 = vmatprep.subr.bf16.mxu0 0
        %1206 = vmatpush1.bf16.xpose.msra.mxu0 0
        %1207 = vmatprep.subr.bf16.mxu0 0
        %1208 = vmatpush1.bf16.xpose.msra.mxu0 0
        %1209 = vmatprep.subr.bf16.mxu0 0
        %1210 = vmatpush1.bf16.xpose.msra.mxu0 0
        %1211 = vmatprep.subr.bf16.mxu0 0
        %1212 = vmatpush1.bf16.xpose.msra.mxu0 0
        %1213 = vmatprep.subr.bf16.mxu0 0
        %1214 = vmatpush1.bf16.xpose.msra.mxu0 0
        %1215 = vmatprep.subr.bf16.mxu0 0
        %1216 = vmatpush1.bf16.xpose.msra.mxu0 0
        %1217 = vmatprep.subr.bf16.mxu0 0
        %1218 = vmatpush1.bf16.xpose.msra.mxu0 0
        %1219 = vmatprep.subr.bf16.mxu0 0
        %1220 = vmatpush1.bf16.xpose.msra.mxu0 0
        %1221 = vmatprep.subr.bf16.mxu0 0
        %1222 = vmatpush1.bf16.xpose.msra.mxu0 0
        %1223 = vmatprep.subr.bf16.mxu0 0
        %1224 = vmatpush1.bf16.xpose.msra.mxu0 0
        %1225 = vmatprep.subr.bf16.mxu0 0
        %1226 = vmatpush1.bf16.xpose.msra.mxu0 0
        %1227 = vmatprep.subr.bf16.mxu0 0
        %1228 = vmatpush1.bf16.xpose.msra.mxu0 0
        %1229 = vmatprep.subr.bf16.mxu0 0
        %1230 = vmatpush1.bf16.xpose.msra.mxu0 0
        %1231 = vmatprep.subr.bf16.mxu0 0
        %1232 = vmatpush1.bf16.xpose.msra.mxu0 0
        %1233 = vmatprep.mubr.bf16.mxu0 0
        %1234 = vmatmul.mubr.bf16.gmra.mrb[0].mxu0 %v1196
        %v1235 = vpop.f32.mrb[0].mxu0
        %v1236 = vadd.f32 %v1130, %v1235
        %v1237 = vpop.f32.mrb[0].mxu0
        %v1238 = vpop.f32.mrb[0].mxu0
        %v1239 = vadd.f32 %v1131, %v1238
        %v1240 = vpop.f32.mrb[0].mxu0
        %1241 = vdwg.mxu0
        %1243 = vrot.lane.b32.xlu0 %v646, 120
        %v1244 = vpop.permute.xlu0 %1243
        %1246 = vrot.lane.b32.xlu0 %v650, 120
        %v1247 = vpop.permute.xlu0 %1246
        %v1249 = vsel %vm664, %v1244, 0
        %v1252 = vsel %vm664, %v1247, 0
        %1254 = vmatprep.subr.bf16.mxu0 0
        %1255 = vmatpush1.bf16.xpose.msra.mxu0 %v1252
        %1256 = vmatprep.subr.bf16.mxu0 0
        %1257 = vmatpush1.bf16.xpose.msra.mxu0 0
        %1258 = vmatprep.subr.bf16.mxu0 0
        %1259 = vmatpush1.bf16.xpose.msra.mxu0 0
        %1260 = vmatprep.subr.bf16.mxu0 0
        %1261 = vmatpush1.bf16.xpose.msra.mxu0 0
        %1262 = vmatprep.subr.bf16.mxu0 0
        %1263 = vmatpush1.bf16.xpose.msra.mxu0 0
        %1264 = vmatprep.subr.bf16.mxu0 0
        %1265 = vmatpush1.bf16.xpose.msra.mxu0 0
        %1266 = vmatprep.subr.bf16.mxu0 0
        %1267 = vmatpush1.bf16.xpose.msra.mxu0 0
        %1268 = vmatprep.subr.bf16.mxu0 0
        %1269 = vmatpush1.bf16.xpose.msra.mxu0 0
        %1270 = vmatprep.subr.bf16.mxu0 0
        %1271 = vmatpush1.bf16.xpose.msra.mxu0 0
        %1272 = vmatprep.subr.bf16.mxu0 0
        %1273 = vmatpush1.bf16.xpose.msra.mxu0 0
        %1274 = vmatprep.subr.bf16.mxu0 0
        %1275 = vmatpush1.bf16.xpose.msra.mxu0 0
        %1276 = vmatprep.subr.bf16.mxu0 0
        %1277 = vmatpush1.bf16.xpose.msra.mxu0 0
        %1278 = vmatprep.subr.bf16.mxu0 0
        %1279 = vmatpush1.bf16.xpose.msra.mxu0 0
        %1280 = vmatprep.subr.bf16.mxu0 0
        %1281 = vmatpush1.bf16.xpose.msra.mxu0 0
        %1282 = vmatprep.subr.bf16.mxu0 0
        %1283 = vmatpush1.bf16.xpose.msra.mxu0 0
        %1284 = vmatprep.subr.bf16.mxu0 0
        %1285 = vmatpush1.bf16.xpose.msra.mxu0 0
        %1286 = vmatprep.mubr.bf16.mxu0 0
        %1287 = vmatmul.mubr.bf16.gmra.mrb[0].mxu0 %v1249
        %v1288 = vpop.f32.mrb[0].mxu0
        %v1289 = vadd.f32 %v1132, %v1288
        %v1290 = vpop.f32.mrb[0].mxu0
        %v1291 = vpop.f32.mrb[0].mxu0
        %v1292 = vadd.f32 %v1133, %v1291
        %v1293 = vpop.f32.mrb[0].mxu0
        %1294 = vdwg.mxu0
        %1296 = vrot.lane.b32.xlu0 %v647, 120
        %v1297 = vpop.permute.xlu0 %1296
        %1299 = vrot.lane.b32.xlu0 %v651, 120
        %v1300 = vpop.permute.xlu0 %1299
        %v1302 = vsel %vm664, %v1297, 0
        %v1305 = vsel %vm664, %v1300, 0
        %1307 = vmatprep.subr.bf16.mxu0 0
        %1308 = vmatpush1.bf16.xpose.msra.mxu0 %v1305
        %1309 = vmatprep.subr.bf16.mxu0 0
        %1310 = vmatpush1.bf16.xpose.msra.mxu0 0
        %1311 = vmatprep.subr.bf16.mxu0 0
        %1312 = vmatpush1.bf16.xpose.msra.mxu0 0
        %1313 = vmatprep.subr.bf16.mxu0 0
        %1314 = vmatpush1.bf16.xpose.msra.mxu0 0
        %1315 = vmatprep.subr.bf16.mxu0 0
        %1316 = vmatpush1.bf16.xpose.msra.mxu0 0
        %1317 = vmatprep.subr.bf16.mxu0 0
        %1318 = vmatpush1.bf16.xpose.msra.mxu0 0
        %1319 = vmatprep.subr.bf16.mxu0 0
        %1320 = vmatpush1.bf16.xpose.msra.mxu0 0
        %1321 = vmatprep.subr.bf16.mxu0 0
        %1322 = vmatpush1.bf16.xpose.msra.mxu0 0
        %1323 = vmatprep.subr.bf16.mxu0 0
        %1324 = vmatpush1.bf16.xpose.msra.mxu0 0
        %1325 = vmatprep.subr.bf16.mxu0 0
        %1326 = vmatpush1.bf16.xpose.msra.mxu0 0
        %1327 = vmatprep.subr.bf16.mxu0 0
        %1328 = vmatpush1.bf16.xpose.msra.mxu0 0
        %1329 = vmatprep.subr.bf16.mxu0 0
        %1330 = vmatpush1.bf16.xpose.msra.mxu0 0
        %1331 = vmatprep.subr.bf16.mxu0 0
        %1332 = vmatpush1.bf16.xpose.msra.mxu0 0
        %1333 = vmatprep.subr.bf16.mxu0 0
        %1334 = vmatpush1.bf16.xpose.msra.mxu0 0
        %1335 = vmatprep.subr.bf16.mxu0 0
        %1336 = vmatpush1.bf16.xpose.msra.mxu0 0
        %1337 = vmatprep.subr.bf16.mxu0 0
        %1338 = vmatpush1.bf16.xpose.msra.mxu0 0
        %1339 = vmatprep.mubr.bf16.mxu0 0
        %1340 = vmatmul.mubr.bf16.gmra.mrb[0].mxu0 %v1302
        %v1341 = vpop.f32.mrb[0].mxu0
        %v1342 = vadd.f32 %v1134, %v1341
        %v1343 = vpop.f32.mrb[0].mxu0
        %v1344 = vpop.f32.mrb[0].mxu0
        %v1345 = vadd.f32 %v1135, %v1344
        %v1346 = vpop.f32.mrb[0].mxu0
        %1347 = vdwg.mxu0
        %v1348 = vsel %vm853, %v1183, -inf
        %1349 = vmax.xlane.f32.xlu0 %v1348
        %v1350 = vpop.xlane.xlu0 %1349
        %v1351 = vsel %vm853, %v1186, -inf
        %1352 = vmax.xlane.f32.xlu0 %v1351
        %v1353 = vpop.xlane.xlu0 %1352
        %v1354 = vsel %vm853, %v1236, -inf
        %1355 = vmax.xlane.f32.xlu0 %v1354
        %v1356 = vpop.xlane.xlu0 %1355
        %v1357 = vsel %vm853, %v1239, -inf
        %1358 = vmax.xlane.f32.xlu0 %v1357
        %v1359 = vpop.xlane.xlu0 %1358
        %v1360 = vsel %vm853, %v1289, -inf
        %1361 = vmax.xlane.f32.xlu0 %v1360
        %v1362 = vpop.xlane.xlu0 %1361
        %v1363 = vsel %vm853, %v1292, -inf
        %1364 = vmax.xlane.f32.xlu0 %v1363
        %v1365 = vpop.xlane.xlu0 %1364
        %v1366 = vsel %vm853, %v1342, -inf
        %1367 = vmax.xlane.f32.xlu0 %v1366
        %v1368 = vpop.xlane.xlu0 %1367
        %v1369 = vsel %vm853, %v1345, -inf
        %1370 = vmax.xlane.f32.xlu0 %v1369
        %v1371 = vpop.xlane.xlu0 %1370
        %v1372 = vsub.f32 %v1183, %v1350
        %v1373 = vsub.f32 %v1186, %v1353
        %v1374 = vsub.f32 %v1236, %v1356
        %v1375 = vsub.f32 %v1239, %v1359
        %v1376 = vsub.f32 %v1289, %v1362
        %v1377 = vsub.f32 %v1292, %v1365
        %v1378 = vsub.f32 %v1342, %v1368
        %v1379 = vsub.f32 %v1345, %v1371
        %v1380 = vmul.f32 %v1372, 1.442695
        %v1381 = vpow.pop %v1380
        %v1382 = vmul.f32 %v1373, 1.442695
        %v1383 = vpow.pop %v1382
        %v1384 = vmul.f32 %v1374, 1.442695
        %v1385 = vpow.pop %v1384
        %v1386 = vmul.f32 %v1375, 1.442695
        %v1387 = vpow.pop %v1386
        %v1388 = vmul.f32 %v1376, 1.442695
        %v1389 = vpow.pop %v1388
        %v1390 = vmul.f32 %v1377, 1.442695
        %v1391 = vpow.pop %v1390
        %v1392 = vmul.f32 %v1378, 1.442695
        %v1393 = vpow.pop %v1392
        %v1394 = vmul.f32 %v1379, 1.442695
        %v1395 = vpow.pop %v1394
        %v1396 = vsel %vm853, %v1381, 0.0
        %1397 = vadd.xlane.f32.xlu0 %v1396
        %v1398 = vpop.xlane.xlu0 %1397
        %v1399 = vsel %vm853, %v1383, 0.0
        %1400 = vadd.xlane.f32.xlu0 %v1399
        %v1401 = vpop.xlane.xlu0 %1400
        %v1402 = vsel %vm853, %v1385, 0.0
        %1403 = vadd.xlane.f32.xlu0 %v1402
        %v1404 = vpop.xlane.xlu0 %1403
        %v1405 = vsel %vm853, %v1387, 0.0
        %1406 = vadd.xlane.f32.xlu0 %v1405
        %v1407 = vpop.xlane.xlu0 %1406
        %v1408 = vsel %vm853, %v1389, 0.0
        %1409 = vadd.xlane.f32.xlu0 %v1408
        %v1410 = vpop.xlane.xlu0 %1409
        %v1411 = vsel %vm853, %v1391, 0.0
        %1412 = vadd.xlane.f32.xlu0 %v1411
        %v1413 = vpop.xlane.xlu0 %1412
        %v1414 = vsel %vm853, %v1393, 0.0
        %1415 = vadd.xlane.f32.xlu0 %v1414
        %v1416 = vpop.xlane.xlu0 %1415
        %v1417 = vsel %vm853, %v1395, 0.0
        %1418 = vadd.xlane.f32.xlu0 %v1417
        %v1419 = vpop.xlane.xlu0 %1418
        %v1420 = vrcp.pop %v1398
        %v1421 = vrcp.pop %v1401
        %v1422 = vrcp.pop %v1404
        %v1423 = vrcp.pop %v1407
        %v1424 = vrcp.pop %v1410
        %v1425 = vrcp.pop %v1413
        %v1426 = vrcp.pop %v1416
        %v1427 = vrcp.pop %v1419
        %v1428 = vmul.f32 %v1381, %v1420
        %v1429 = vmul.f32 %v1383, %v1421
        %v1430 = vmul.f32 %v1385, %v1422
        %v1431 = vmul.f32 %v1387, %v1423
        %v1432 = vmul.f32 %v1389, %v1424
        %v1433 = vmul.f32 %v1391, %v1425
        %v1434 = vmul.f32 %v1393, %v1426
        %v1435 = vmul.f32 %v1395, %v1427
        %v1436 = vpack.c.bf16 %v1429, %v1428
        %v1437 = vpack.c.bf16 %v1431, %v1430
        %v1438 = vpack.c.bf16 %v1433, %v1432
        %v1439 = vpack.c.bf16 %v1435, %v1434
        %1441 = vrot.lane.b32.xlu0 %v652, 120
        %v1442 = vpop.permute.xlu0 %1441
        %v1445 = vsel %vm853, %v1436, 0
        %1447 = vmatprep.subr.bf16.mxu0 0
        %1448 = vmatpush1.bf16.msra.mxu0 %v1442
        %1449 = vmatprep.subr.bf16.mxu0 0
        %1450 = vmatpush1.bf16.msra.mxu0 0
        %1451 = vmatprep.subr.bf16.mxu0 0
        %1452 = vmatpush1.bf16.msra.mxu0 0
        %1453 = vmatprep.subr.bf16.mxu0 0
        %1454 = vmatpush1.bf16.msra.mxu0 0
        %1455 = vmatprep.subr.bf16.mxu0 0
        %1456 = vmatpush1.bf16.msra.mxu0 0
        %1457 = vmatprep.subr.bf16.mxu0 0
        %1458 = vmatpush1.bf16.msra.mxu0 0
        %1459 = vmatprep.subr.bf16.mxu0 0
        %1460 = vmatpush1.bf16.msra.mxu0 0
        %1461 = vmatprep.subr.bf16.mxu0 0
        %1462 = vmatpush1.bf16.msra.mxu0 0
        %1463 = vmatprep.subr.bf16.mxu0 0
        %1464 = vmatpush1.bf16.msra.mxu0 0
        %1465 = vmatprep.subr.bf16.mxu0 0
        %1466 = vmatpush1.bf16.msra.mxu0 0
        %1467 = vmatprep.subr.bf16.mxu0 0
        %1468 = vmatpush1.bf16.msra.mxu0 0
        %1469 = vmatprep.subr.bf16.mxu0 0
        %1470 = vmatpush1.bf16.msra.mxu0 0
        %1471 = vmatprep.subr.bf16.mxu0 0
        %1472 = vmatpush1.bf16.msra.mxu0 0
        %1473 = vmatprep.subr.bf16.mxu0 0
        %1474 = vmatpush1.bf16.msra.mxu0 0
        %1475 = vmatprep.subr.bf16.mxu0 0
        %1476 = vmatpush1.bf16.msra.mxu0 0
        %1477 = vmatprep.subr.bf16.mxu0 0
        %1478 = vmatpush1.bf16.msra.mxu0 0
        %1479 = vmatprep.mubr.bf16.mxu0 0
        %1480 = vmatmul.mubr.bf16.gmra.mrb[0].mxu0 %v1445
        %v1481 = vpop.f32.mrb[0].mxu0
        %v1482 = vadd.f32 0.0, %v1481
        %v1483 = vpop.f32.mrb[0].mxu0
        %v1484 = vpop.f32.mrb[0].mxu0
        %v1485 = vadd.f32 0.0, %v1484
        %v1486 = vpop.f32.mrb[0].mxu0
        %1487 = vdwg.mxu0
        %1489 = vrot.lane.b32.xlu0 %v653, 120
        %v1490 = vpop.permute.xlu0 %1489
        %v1493 = vsel %vm853, %v1437, 0
        %1495 = vmatprep.subr.bf16.mxu0 0
        %1496 = vmatpush1.bf16.msra.mxu0 %v1490
        %1497 = vmatprep.subr.bf16.mxu0 0
        %1498 = vmatpush1.bf16.msra.mxu0 0
        %1499 = vmatprep.subr.bf16.mxu0 0
        %1500 = vmatpush1.bf16.msra.mxu0 0
        %1501 = vmatprep.subr.bf16.mxu0 0
        %1502 = vmatpush1.bf16.msra.mxu0 0
        %1503 = vmatprep.subr.bf16.mxu0 0
        %1504 = vmatpush1.bf16.msra.mxu0 0
        %1505 = vmatprep.subr.bf16.mxu0 0
        %1506 = vmatpush1.bf16.msra.mxu0 0
        %1507 = vmatprep.subr.bf16.mxu0 0
        %1508 = vmatpush1.bf16.msra.mxu0 0
        %1509 = vmatprep.subr.bf16.mxu0 0
        %1510 = vmatpush1.bf16.msra.mxu0 0
        %1511 = vmatprep.subr.bf16.mxu0 0
        %1512 = vmatpush1.bf16.msra.mxu0 0
        %1513 = vmatprep.subr.bf16.mxu0 0
        %1514 = vmatpush1.bf16.msra.mxu0 0
        %1515 = vmatprep.subr.bf16.mxu0 0
        %1516 = vmatpush1.bf16.msra.mxu0 0
        %1517 = vmatprep.subr.bf16.mxu0 0
        %1518 = vmatpush1.bf16.msra.mxu0 0
        %1519 = vmatprep.subr.bf16.mxu0 0
        %1520 = vmatpush1.bf16.msra.mxu0 0
        %1521 = vmatprep.subr.bf16.mxu0 0
        %1522 = vmatpush1.bf16.msra.mxu0 0
        %1523 = vmatprep.subr.bf16.mxu0 0
        %1524 = vmatpush1.bf16.msra.mxu0 0
        %1525 = vmatprep.subr.bf16.mxu0 0
        %1526 = vmatpush1.bf16.msra.mxu0 0
        %1527 = vmatprep.mubr.bf16.mxu0 0
        %1528 = vmatmul.mubr.bf16.gmra.mrb[0].mxu0 %v1493
        %v1529 = vpop.f32.mrb[0].mxu0
        %v1530 = vadd.f32 0.0, %v1529
        %v1531 = vpop.f32.mrb[0].mxu0
        %v1532 = vpop.f32.mrb[0].mxu0
        %v1533 = vadd.f32 0.0, %v1532
        %v1534 = vpop.f32.mrb[0].mxu0
        %1535 = vdwg.mxu0
        %1537 = vrot.lane.b32.xlu0 %v654, 120
        %v1538 = vpop.permute.xlu0 %1537
        %v1541 = vsel %vm853, %v1438, 0
        %1543 = vmatprep.subr.bf16.mxu0 0
        %1544 = vmatpush1.bf16.msra.mxu0 %v1538
        %1545 = vmatprep.subr.bf16.mxu0 0
        %1546 = vmatpush1.bf16.msra.mxu0 0
        %1547 = vmatprep.subr.bf16.mxu0 0
        %1548 = vmatpush1.bf16.msra.mxu0 0
        %1549 = vmatprep.subr.bf16.mxu0 0
        %1550 = vmatpush1.bf16.msra.mxu0 0
        %1551 = vmatprep.subr.bf16.mxu0 0
        %1552 = vmatpush1.bf16.msra.mxu0 0
        %1553 = vmatprep.subr.bf16.mxu0 0
        %1554 = vmatpush1.bf16.msra.mxu0 0
        %1555 = vmatprep.subr.bf16.mxu0 0
        %1556 = vmatpush1.bf16.msra.mxu0 0
        %1557 = vmatprep.subr.bf16.mxu0 0
        %1558 = vmatpush1.bf16.msra.mxu0 0
        %1559 = vmatprep.subr.bf16.mxu0 0
        %1560 = vmatpush1.bf16.msra.mxu0 0
        %1561 = vmatprep.subr.bf16.mxu0 0
        %1562 = vmatpush1.bf16.msra.mxu0 0
        %1563 = vmatprep.subr.bf16.mxu0 0
        %1564 = vmatpush1.bf16.msra.mxu0 0
        %1565 = vmatprep.subr.bf16.mxu0 0
        %1566 = vmatpush1.bf16.msra.mxu0 0
        %1567 = vmatprep.subr.bf16.mxu0 0
        %1568 = vmatpush1.bf16.msra.mxu0 0
        %1569 = vmatprep.subr.bf16.mxu0 0
        %1570 = vmatpush1.bf16.msra.mxu0 0
        %1571 = vmatprep.subr.bf16.mxu0 0
        %1572 = vmatpush1.bf16.msra.mxu0 0
        %1573 = vmatprep.subr.bf16.mxu0 0
        %1574 = vmatpush1.bf16.msra.mxu0 0
        %1575 = vmatprep.mubr.bf16.mxu0 0
        %1576 = vmatmul.mubr.bf16.gmra.mrb[0].mxu0 %v1541
        %v1577 = vpop.f32.mrb[0].mxu0
        %v1578 = vadd.f32 0.0, %v1577
        %v1579 = vpop.f32.mrb[0].mxu0
        %v1580 = vpop.f32.mrb[0].mxu0
        %v1581 = vadd.f32 0.0, %v1580
        %v1582 = vpop.f32.mrb[0].mxu0
        %1583 = vdwg.mxu0
        %1585 = vrot.lane.b32.xlu0 %v655, 120
        %v1586 = vpop.permute.xlu0 %1585
        %v1589 = vsel %vm853, %v1439, 0
        %1591 = vmatprep.subr.bf16.mxu0 0
        %1592 = vmatpush1.bf16.msra.mxu0 %v1586
        %1593 = vmatprep.subr.bf16.mxu0 0
        %1594 = vmatpush1.bf16.msra.mxu0 0
        %1595 = vmatprep.subr.bf16.mxu0 0
        %1596 = vmatpush1.bf16.msra.mxu0 0
        %1597 = vmatprep.subr.bf16.mxu0 0
        %1598 = vmatpush1.bf16.msra.mxu0 0
        %1599 = vmatprep.subr.bf16.mxu0 0
        %1600 = vmatpush1.bf16.msra.mxu0 0
        %1601 = vmatprep.subr.bf16.mxu0 0
        %1602 = vmatpush1.bf16.msra.mxu0 0
        %1603 = vmatprep.subr.bf16.mxu0 0
        %1604 = vmatpush1.bf16.msra.mxu0 0
        %1605 = vmatprep.subr.bf16.mxu0 0
        %1606 = vmatpush1.bf16.msra.mxu0 0
        %1607 = vmatprep.subr.bf16.mxu0 0
        %1608 = vmatpush1.bf16.msra.mxu0 0
        %1609 = vmatprep.subr.bf16.mxu0 0
        %1610 = vmatpush1.bf16.msra.mxu0 0
        %1611 = vmatprep.subr.bf16.mxu0 0
        %1612 = vmatpush1.bf16.msra.mxu0 0
        %1613 = vmatprep.subr.bf16.mxu0 0
        %1614 = vmatpush1.bf16.msra.mxu0 0
        %1615 = vmatprep.subr.bf16.mxu0 0
        %1616 = vmatpush1.bf16.msra.mxu0 0
        %1617 = vmatprep.subr.bf16.mxu0 0
        %1618 = vmatpush1.bf16.msra.mxu0 0
        %1619 = vmatprep.subr.bf16.mxu0 0
        %1620 = vmatpush1.bf16.msra.mxu0 0
        %1621 = vmatprep.subr.bf16.mxu0 0
        %1622 = vmatpush1.bf16.msra.mxu0 0
        %1623 = vmatprep.mubr.bf16.mxu0 0
        %1624 = vmatmul.mubr.bf16.gmra.mrb[0].mxu0 %v1589
        %v1625 = vpop.f32.mrb[0].mxu0
        %v1626 = vadd.f32 0.0, %v1625
        %v1627 = vpop.f32.mrb[0].mxu0
        %v1628 = vpop.f32.mrb[0].mxu0
        %v1629 = vadd.f32 0.0, %v1628
        %v1630 = vpop.f32.mrb[0].mxu0
        %1631 = vdwg.mxu0
        %v1632 = vpack.c.bf16 %v1485, %v1482
        %v1633 = vpack.c.bf16 %v1533, %v1530
        %v1634 = vpack.c.bf16 %v1581, %v1578
        %v1635 = vpack.c.bf16 %v1629, %v1626
        %s1636 = scalar_lea.vmem [#allocation8], 4
        %v1637 = vld [vmem:[%s1636] sm:$0xf]
        %v1639 = vsel %vm664, %v1632, 0
        %v1642 = vsel %vm664, %v1633, 0
        %v1645 = vsel %vm664, %v1634, 0
        %v1648 = vsel %vm664, %v1635, 0
        %vm1650 = vcmask 1043456
        %v1652 = vsel %vm1650, %v1637, 0
        %1654 = vmatprep.subr.bf16.mxu0 0
        %1655 = vmatpush1.bf16.msra.mxu0 %v1652
        %1656 = vmatprep.subr.bf16.mxu0 0
        %1657 = vmatpush1.bf16.msra.mxu0 0
        %1658 = vmatprep.subr.bf16.mxu0 0
        %1659 = vmatpush1.bf16.msra.mxu0 0
        %1660 = vmatprep.subr.bf16.mxu0 0
        %1661 = vmatpush1.bf16.msra.mxu0 0
        %1662 = vmatprep.subr.bf16.mxu0 0
        %1663 = vmatpush1.bf16.msra.mxu0 0
        %1664 = vmatprep.subr.bf16.mxu0 0
        %1665 = vmatpush1.bf16.msra.mxu0 0
        %1666 = vmatprep.subr.bf16.mxu0 0
        %1667 = vmatpush1.bf16.msra.mxu0 0
        %1668 = vmatprep.subr.bf16.mxu0 0
        %1669 = vmatpush1.bf16.msra.mxu0 0
        %1670 = vmatprep.subr.bf16.mxu0 0
        %1671 = vmatpush1.bf16.msra.mxu0 0
        %1672 = vmatprep.subr.bf16.mxu0 0
        %1673 = vmatpush1.bf16.msra.mxu0 0
        %1674 = vmatprep.subr.bf16.mxu0 0
        %1675 = vmatpush1.bf16.msra.mxu0 0
        %1676 = vmatprep.subr.bf16.mxu0 0
        %1677 = vmatpush1.bf16.msra.mxu0 0
        %1678 = vmatprep.subr.bf16.mxu0 0
        %1679 = vmatpush1.bf16.msra.mxu0 0
        %1680 = vmatprep.subr.bf16.mxu0 0
        %1681 = vmatpush1.bf16.msra.mxu0 0
        %1682 = vmatprep.subr.bf16.mxu0 0
        %1683 = vmatpush1.bf16.msra.mxu0 0
        %1684 = vmatprep.subr.bf16.mxu0 0
        %1685 = vmatpush1.bf16.msra.mxu0 0
        %1686 = vmatprep.mubr.bf16.mxu0 0
        %1687 = vmatmul.mubr.bf16.gmra.mrb[0].mxu0 %v1639
        %v1688 = vpop.f32.mrb[0].mxu0
        %v1689 = vadd.f32 0.0, %v1688
        %v1690 = vpop.f32.mrb[0].mxu0
        %v1691 = vpop.f32.mrb[0].mxu0
        %v1692 = vadd.f32 0.0, %v1691
        %v1693 = vpop.f32.mrb[0].mxu0
        %1694 = vmatprep.mubr.bf16.mxu0 0
        %1695 = vmatmul.mubr.bf16.gmra.mrb[0].mxu0 %v1642
        %v1696 = vpop.f32.mrb[0].mxu0
        %v1697 = vadd.f32 0.0, %v1696
        %v1698 = vpop.f32.mrb[0].mxu0
        %v1699 = vpop.f32.mrb[0].mxu0
        %v1700 = vadd.f32 0.0, %v1699
        %v1701 = vpop.f32.mrb[0].mxu0
        %1702 = vmatprep.mubr.bf16.mxu0 0
        %1703 = vmatmul.mubr.bf16.gmra.mrb[0].mxu0 %v1645
        %v1704 = vpop.f32.mrb[0].mxu0
        %v1705 = vadd.f32 0.0, %v1704
        %v1706 = vpop.f32.mrb[0].mxu0
        %v1707 = vpop.f32.mrb[0].mxu0
        %v1708 = vadd.f32 0.0, %v1707
        %v1709 = vpop.f32.mrb[0].mxu0
        %1710 = vmatprep.mubr.bf16.mxu0 0
        %1711 = vmatmul.mubr.bf16.gmra.mrb[0].mxu0 %v1648
        %v1712 = vpop.f32.mrb[0].mxu0
        %v1713 = vadd.f32 0.0, %v1712
        %v1714 = vpop.f32.mrb[0].mxu0
        %v1715 = vpop.f32.mrb[0].mxu0
        %v1716 = vadd.f32 0.0, %v1715
        %v1717 = vpop.f32.mrb[0].mxu0
        %1718 = vdwg.mxu0
        %v1720 = vsel %vm664, %v1122, 0
        %v1723 = vsel %vm664, %v1123, 0
        %v1726 = vsel %vm664, %v1124, 0
        %v1729 = vsel %vm664, %v1125, 0
        %v1732 = vsel %vm1650, %v1126, 0
        %1734 = vmatprep.subr.bf16.mxu0 0
        %1735 = vmatpush1.bf16.msra.mxu0 %v1732
        %1736 = vmatprep.subr.bf16.mxu0 0
        %1737 = vmatpush1.bf16.msra.mxu0 0
        %1738 = vmatprep.subr.bf16.mxu0 0
        %1739 = vmatpush1.bf16.msra.mxu0 0
        %1740 = vmatprep.subr.bf16.mxu0 0
        %1741 = vmatpush1.bf16.msra.mxu0 0
        %1742 = vmatprep.subr.bf16.mxu0 0
        %1743 = vmatpush1.bf16.msra.mxu0 0
        %1744 = vmatprep.subr.bf16.mxu0 0
        %1745 = vmatpush1.bf16.msra.mxu0 0
        %1746 = vmatprep.subr.bf16.mxu0 0
        %1747 = vmatpush1.bf16.msra.mxu0 0
        %1748 = vmatprep.subr.bf16.mxu0 0
        %1749 = vmatpush1.bf16.msra.mxu0 0
        %1750 = vmatprep.subr.bf16.mxu0 0
        %1751 = vmatpush1.bf16.msra.mxu0 0
        %1752 = vmatprep.subr.bf16.mxu0 0
        %1753 = vmatpush1.bf16.msra.mxu0 0
        %1754 = vmatprep.subr.bf16.mxu0 0
        %1755 = vmatpush1.bf16.msra.mxu0 0
        %1756 = vmatprep.subr.bf16.mxu0 0
        %1757 = vmatpush1.bf16.msra.mxu0 0
        %1758 = vmatprep.subr.bf16.mxu0 0
        %1759 = vmatpush1.bf16.msra.mxu0 0
        %1760 = vmatprep.subr.bf16.mxu0 0
        %1761 = vmatpush1.bf16.msra.mxu0 0
        %1762 = vmatprep.subr.bf16.mxu0 0
        %1763 = vmatpush1.bf16.msra.mxu0 0
        %1764 = vmatprep.subr.bf16.mxu0 0
        %1765 = vmatpush1.bf16.msra.mxu0 0
        %1766 = vmatprep.mubr.bf16.mxu0 0
        %1767 = vmatmul.mubr.bf16.gmra.mrb[0].mxu0 %v1720
        %v1768 = vpop.f32.mrb[0].mxu0
        %v1769 = vadd.f32 %v1689, %v1768
        %v1770 = vpop.f32.mrb[0].mxu0
        %v1771 = vpop.f32.mrb[0].mxu0
        %v1772 = vadd.f32 %v1692, %v1771
        %v1773 = vpop.f32.mrb[0].mxu0
        %1774 = vmatprep.mubr.bf16.mxu0 0
        %1775 = vmatmul.mubr.bf16.gmra.mrb[0].mxu0 %v1723
        %v1776 = vpop.f32.mrb[0].mxu0
        %v1777 = vadd.f32 %v1697, %v1776
        %v1778 = vpop.f32.mrb[0].mxu0
        %v1779 = vpop.f32.mrb[0].mxu0
        %v1780 = vadd.f32 %v1700, %v1779
        %v1781 = vpop.f32.mrb[0].mxu0
        %1782 = vmatprep.mubr.bf16.mxu0 0
        %1783 = vmatmul.mubr.bf16.gmra.mrb[0].mxu0 %v1726
        %v1784 = vpop.f32.mrb[0].mxu0
        %v1785 = vadd.f32 %v1705, %v1784
        %v1786 = vpop.f32.mrb[0].mxu0
        %v1787 = vpop.f32.mrb[0].mxu0
        %v1788 = vadd.f32 %v1708, %v1787
        %v1789 = vpop.f32.mrb[0].mxu0
        %1790 = vmatprep.mubr.bf16.mxu0 0
        %1791 = vmatmul.mubr.bf16.gmra.mrb[0].mxu0 %v1729
        %v1792 = vpop.f32.mrb[0].mxu0
        %v1793 = vadd.f32 %v1713, %v1792
        %v1794 = vpop.f32.mrb[0].mxu0
        %v1795 = vpop.f32.mrb[0].mxu0
        %v1796 = vadd.f32 %v1716, %v1795
        %v1797 = vpop.f32.mrb[0].mxu0
        %1798 = vdwg.mxu0
        %s1799 = scalar_lea.vmem [#allocation7], 128
        %v1800 = vld [vmem:[%s1799] sm:$0xff]
        %v1801 = vld [vmem:[%s1799 + $0x8] sm:$0xff]
        %v1802 = vld [vmem:[%s1799 + $0x10] sm:$0xff]
        %v1803 = vld [vmem:[%s1799 + $0x18] sm:$0xff]
        %v1804 = vld [vmem:[%s1799 + $0x20] sm:$0xff]
        %v1805 = vld [vmem:[%s1799 + $0x28] sm:$0xff]
        %v1806 = vld [vmem:[%s1799 + $0x30] sm:$0xff]
        %v1807 = vld [vmem:[%s1799 + $0x38] sm:$0xff]
        %1808 = vrot.lane.b32.xlu0 %v644, 112
        %v1809 = vpop.permute.xlu0 %1808
        %1810 = vrot.lane.b32.xlu0 %v648, 112
        %v1811 = vpop.permute.xlu0 %1810
        %v1813 = vsel %vm664, %v1809, 0
        %v1816 = vsel %vm664, %v1811, 0
        %1818 = vmatprep.subr.bf16.mxu0 0
        %1819 = vmatpush1.bf16.xpose.msra.mxu0 %v1816
        %1820 = vmatprep.subr.bf16.mxu0 0
        %1821 = vmatpush1.bf16.xpose.msra.mxu0 0
        %1822 = vmatprep.subr.bf16.mxu0 0
        %1823 = vmatpush1.bf16.xpose.msra.mxu0 0
        %1824 = vmatprep.subr.bf16.mxu0 0
        %1825 = vmatpush1.bf16.xpose.msra.mxu0 0
        %1826 = vmatprep.subr.bf16.mxu0 0
        %1827 = vmatpush1.bf16.xpose.msra.mxu0 0
        %1828 = vmatprep.subr.bf16.mxu0 0
        %1829 = vmatpush1.bf16.xpose.msra.mxu0 0
        %1830 = vmatprep.subr.bf16.mxu0 0
        %1831 = vmatpush1.bf16.xpose.msra.mxu0 0
        %1832 = vmatprep.subr.bf16.mxu0 0
        %1833 = vmatpush1.bf16.xpose.msra.mxu0 0
        %1834 = vmatprep.subr.bf16.mxu0 0
        %1835 = vmatpush1.bf16.xpose.msra.mxu0 0
        %1836 = vmatprep.subr.bf16.mxu0 0
        %1837 = vmatpush1.bf16.xpose.msra.mxu0 0
        %1838 = vmatprep.subr.bf16.mxu0 0
        %1839 = vmatpush1.bf16.xpose.msra.mxu0 0
        %1840 = vmatprep.subr.bf16.mxu0 0
        %1841 = vmatpush1.bf16.xpose.msra.mxu0 0
        %1842 = vmatprep.subr.bf16.mxu0 0
        %1843 = vmatpush1.bf16.xpose.msra.mxu0 0
        %1844 = vmatprep.subr.bf16.mxu0 0
        %1845 = vmatpush1.bf16.xpose.msra.mxu0 0
        %1846 = vmatprep.subr.bf16.mxu0 0
        %1847 = vmatpush1.bf16.xpose.msra.mxu0 0
        %1848 = vmatprep.subr.bf16.mxu0 0
        %1849 = vmatpush1.bf16.xpose.msra.mxu0 0
        %1850 = vmatprep.mubr.bf16.mxu0 0
        %1851 = vmatmul.mubr.bf16.gmra.mrb[0].mxu0 %v1813
        %v1852 = vpop.f32.mrb[0].mxu0
        %v1853 = vadd.f32 %v1800, %v1852
        %v1854 = vpop.f32.mrb[0].mxu0
        %v1855 = vpop.f32.mrb[0].mxu0
        %v1856 = vadd.f32 %v1801, %v1855
        %v1857 = vpop.f32.mrb[0].mxu0
        %1858 = vdwg.mxu0
        %1859 = vrot.lane.b32.xlu0 %v645, 112
        %v1860 = vpop.permute.xlu0 %1859
        %1861 = vrot.lane.b32.xlu0 %v649, 112
        %v1862 = vpop.permute.xlu0 %1861
        %v1864 = vsel %vm664, %v1860, 0
        %v1867 = vsel %vm664, %v1862, 0
        %1869 = vmatprep.subr.bf16.mxu0 0
        %1870 = vmatpush1.bf16.xpose.msra.mxu0 %v1867
        %1871 = vmatprep.subr.bf16.mxu0 0
        %1872 = vmatpush1.bf16.xpose.msra.mxu0 0
        %1873 = vmatprep.subr.bf16.mxu0 0
        %1874 = vmatpush1.bf16.xpose.msra.mxu0 0
        %1875 = vmatprep.subr.bf16.mxu0 0
        %1876 = vmatpush1.bf16.xpose.msra.mxu0 0
        %1877 = vmatprep.subr.bf16.mxu0 0
        %1878 = vmatpush1.bf16.xpose.msra.mxu0 0
        %1879 = vmatprep.subr.bf16.mxu0 0
        %1880 = vmatpush1.bf16.xpose.msra.mxu0 0
        %1881 = vmatprep.subr.bf16.mxu0 0
        %1882 = vmatpush1.bf16.xpose.msra.mxu0 0
        %1883 = vmatprep.subr.bf16.mxu0 0
        %1884 = vmatpush1.bf16.xpose.msra.mxu0 0
        %1885 = vmatprep.subr.bf16.mxu0 0
        %1886 = vmatpush1.bf16.xpose.msra.mxu0 0
        %1887 = vmatprep.subr.bf16.mxu0 0
        %1888 = vmatpush1.bf16.xpose.msra.mxu0 0
        %1889 = vmatprep.subr.bf16.mxu0 0
        %1890 = vmatpush1.bf16.xpose.msra.mxu0 0
        %1891 = vmatprep.subr.bf16.mxu0 0
        %1892 = vmatpush1.bf16.xpose.msra.mxu0 0
        %1893 = vmatprep.subr.bf16.mxu0 0
        %1894 = vmatpush1.bf16.xpose.msra.mxu0 0
        %1895 = vmatprep.subr.bf16.mxu0 0
        %1896 = vmatpush1.bf16.xpose.msra.mxu0 0
        %1897 = vmatprep.subr.bf16.mxu0 0
        %1898 = vmatpush1.bf16.xpose.msra.mxu0 0
        %1899 = vmatprep.subr.bf16.mxu0 0
        %1900 = vmatpush1.bf16.xpose.msra.mxu0 0
        %1901 = vmatprep.mubr.bf16.mxu0 0
        %1902 = vmatmul.mubr.bf16.gmra.mrb[0].mxu0 %v1864
        %v1903 = vpop.f32.mrb[0].mxu0
        %v1904 = vadd.f32 %v1802, %v1903
        %v1905 = vpop.f32.mrb[0].mxu0
        %v1906 = vpop.f32.mrb[0].mxu0
        %v1907 = vadd.f32 %v1803, %v1906
        %v1908 = vpop.f32.mrb[0].mxu0
        %1909 = vdwg.mxu0
        %1910 = vrot.lane.b32.xlu0 %v646, 112
        %v1911 = vpop.permute.xlu0 %1910
        %1912 = vrot.lane.b32.xlu0 %v650, 112
        %v1913 = vpop.permute.xlu0 %1912
        %v1915 = vsel %vm664, %v1911, 0
        %v1918 = vsel %vm664, %v1913, 0
        %1920 = vmatprep.subr.bf16.mxu0 0
        %1921 = vmatpush1.bf16.xpose.msra.mxu0 %v1918
        %1922 = vmatprep.subr.bf16.mxu0 0
        %1923 = vmatpush1.bf16.xpose.msra.mxu0 0
        %1924 = vmatprep.subr.bf16.mxu0 0
        %1925 = vmatpush1.bf16.xpose.msra.mxu0 0
        %1926 = vmatprep.subr.bf16.mxu0 0
        %1927 = vmatpush1.bf16.xpose.msra.mxu0 0
        %1928 = vmatprep.subr.bf16.mxu0 0
        %1929 = vmatpush1.bf16.xpose.msra.mxu0 0
        %1930 = vmatprep.subr.bf16.mxu0 0
        %1931 = vmatpush1.bf16.xpose.msra.mxu0 0
        %1932 = vmatprep.subr.bf16.mxu0 0
        %1933 = vmatpush1.bf16.xpose.msra.mxu0 0
        %1934 = vmatprep.subr.bf16.mxu0 0
        %1935 = vmatpush1.bf16.xpose.msra.mxu0 0
        %1936 = vmatprep.subr.bf16.mxu0 0
        %1937 = vmatpush1.bf16.xpose.msra.mxu0 0
        %1938 = vmatprep.subr.bf16.mxu0 0
        %1939 = vmatpush1.bf16.xpose.msra.mxu0 0
        %1940 = vmatprep.subr.bf16.mxu0 0
        %1941 = vmatpush1.bf16.xpose.msra.mxu0 0
        %1942 = vmatprep.subr.bf16.mxu0 0
        %1943 = vmatpush1.bf16.xpose.msra.mxu0 0
        %1944 = vmatprep.subr.bf16.mxu0 0
        %1945 = vmatpush1.bf16.xpose.msra.mxu0 0
        %1946 = vmatprep.subr.bf16.mxu0 0
        %1947 = vmatpush1.bf16.xpose.msra.mxu0 0
        %1948 = vmatprep.subr.bf16.mxu0 0
        %1949 = vmatpush1.bf16.xpose.msra.mxu0 0
        %1950 = vmatprep.subr.bf16.mxu0 0
        %1951 = vmatpush1.bf16.xpose.msra.mxu0 0
        %1952 = vmatprep.mubr.bf16.mxu0 0
        %1953 = vmatmul.mubr.bf16.gmra.mrb[0].mxu0 %v1915
        %v1954 = vpop.f32.mrb[0].mxu0
        %v1955 = vadd.f32 %v1804, %v1954
        %v1956 = vpop.f32.mrb[0].mxu0
        %v1957 = vpop.f32.mrb[0].mxu0
        %v1958 = vadd.f32 %v1805, %v1957
        %v1959 = vpop.f32.mrb[0].mxu0
        %1960 = vdwg.mxu0
        %1961 = vrot.lane.b32.xlu0 %v647, 112
        %v1962 = vpop.permute.xlu0 %1961
        %1963 = vrot.lane.b32.xlu0 %v651, 112
        %v1964 = vpop.permute.xlu0 %1963
        %v1966 = vsel %vm664, %v1962, 0
        %v1969 = vsel %vm664, %v1964, 0
        %1971 = vmatprep.subr.bf16.mxu0 0
        %1972 = vmatpush1.bf16.xpose.msra.mxu0 %v1969
        %1973 = vmatprep.subr.bf16.mxu0 0
        %1974 = vmatpush1.bf16.xpose.msra.mxu0 0
        %1975 = vmatprep.subr.bf16.mxu0 0
        %1976 = vmatpush1.bf16.xpose.msra.mxu0 0
        %1977 = vmatprep.subr.bf16.mxu0 0
        %1978 = vmatpush1.bf16.xpose.msra.mxu0 0
        %1979 = vmatprep.subr.bf16.mxu0 0
        %1980 = vmatpush1.bf16.xpose.msra.mxu0 0
        %1981 = vmatprep.subr.bf16.mxu0 0
        %1982 = vmatpush1.bf16.xpose.msra.mxu0 0
        %1983 = vmatprep.subr.bf16.mxu0 0
        %1984 = vmatpush1.bf16.xpose.msra.mxu0 0
        %1985 = vmatprep.subr.bf16.mxu0 0
        %1986 = vmatpush1.bf16.xpose.msra.mxu0 0
        %1987 = vmatprep.subr.bf16.mxu0 0
        %1988 = vmatpush1.bf16.xpose.msra.mxu0 0
        %1989 = vmatprep.subr.bf16.mxu0 0
        %1990 = vmatpush1.bf16.xpose.msra.mxu0 0
        %1991 = vmatprep.subr.bf16.mxu0 0
        %1992 = vmatpush1.bf16.xpose.msra.mxu0 0
        %1993 = vmatprep.subr.bf16.mxu0 0
        %1994 = vmatpush1.bf16.xpose.msra.mxu0 0
        %1995 = vmatprep.subr.bf16.mxu0 0
        %1996 = vmatpush1.bf16.xpose.msra.mxu0 0
        %1997 = vmatprep.subr.bf16.mxu0 0
        %1998 = vmatpush1.bf16.xpose.msra.mxu0 0
        %1999 = vmatprep.subr.bf16.mxu0 0
        %2000 = vmatpush1.bf16.xpose.msra.mxu0 0
        %2001 = vmatprep.subr.bf16.mxu0 0
        %2002 = vmatpush1.bf16.xpose.msra.mxu0 0
        %2003 = vmatprep.mubr.bf16.mxu0 0
        %2004 = vmatmul.mubr.bf16.gmra.mrb[0].mxu0 %v1966
        %v2005 = vpop.f32.mrb[0].mxu0
        %v2006 = vadd.f32 %v1806, %v2005
        %v2007 = vpop.f32.mrb[0].mxu0
        %v2008 = vpop.f32.mrb[0].mxu0
        %v2009 = vadd.f32 %v1807, %v2008
        %v2010 = vpop.f32.mrb[0].mxu0
        %2011 = vdwg.mxu0
        %v2012 = vsel %vm853, %v1853, -inf
        %2013 = vmax.xlane.f32.xlu0 %v2012
        %v2014 = vpop.xlane.xlu0 %2013
        %v2015 = vsel %vm853, %v1856, -inf
        %2016 = vmax.xlane.f32.xlu0 %v2015
        %v2017 = vpop.xlane.xlu0 %2016
        %v2018 = vsel %vm853, %v1904, -inf
        %2019 = vmax.xlane.f32.xlu0 %v2018
        %v2020 = vpop.xlane.xlu0 %2019
        %v2021 = vsel %vm853, %v1907, -inf
        %2022 = vmax.xlane.f32.xlu0 %v2021
        %v2023 = vpop.xlane.xlu0 %2022
        %v2024 = vsel %vm853, %v1955, -inf
        %2025 = vmax.xlane.f32.xlu0 %v2024
        %v2026 = vpop.xlane.xlu0 %2025
        %v2027 = vsel %vm853, %v1958, -inf
        %2028 = vmax.xlane.f32.xlu0 %v2027
        %v2029 = vpop.xlane.xlu0 %2028
        %v2030 = vsel %vm853, %v2006, -inf
        %2031 = vmax.xlane.f32.xlu0 %v2030
        %v2032 = vpop.xlane.xlu0 %2031
        %v2033 = vsel %vm853, %v2009, -inf
        %2034 = vmax.xlane.f32.xlu0 %v2033
        %v2035 = vpop.xlane.xlu0 %2034
        %v2036 = vsub.f32 %v1853, %v2014
        %v2037 = vsub.f32 %v1856, %v2017
        %v2038 = vsub.f32 %v1904, %v2020
        %v2039 = vsub.f32 %v1907, %v2023
        %v2040 = vsub.f32 %v1955, %v2026
        %v2041 = vsub.f32 %v1958, %v2029
        %v2042 = vsub.f32 %v2006, %v2032
        %v2043 = vsub.f32 %v2009, %v2035
        %v2044 = vmul.f32 %v2036, 1.442695
        %v2045 = vpow.pop %v2044
        %v2046 = vmul.f32 %v2037, 1.442695
        %v2047 = vpow.pop %v2046
        %v2048 = vmul.f32 %v2038, 1.442695
        %v2049 = vpow.pop %v2048
        %v2050 = vmul.f32 %v2039, 1.442695
        %v2051 = vpow.pop %v2050
        %v2052 = vmul.f32 %v2040, 1.442695
        %v2053 = vpow.pop %v2052
        %v2054 = vmul.f32 %v2041, 1.442695
        %v2055 = vpow.pop %v2054
        %v2056 = vmul.f32 %v2042, 1.442695
        %v2057 = vpow.pop %v2056
        %v2058 = vmul.f32 %v2043, 1.442695
        %v2059 = vpow.pop %v2058
        %v2060 = vsel %vm853, %v2045, 0.0
        %2061 = vadd.xlane.f32.xlu0 %v2060
        %v2062 = vpop.xlane.xlu0 %2061
        %v2063 = vsel %vm853, %v2047, 0.0
        %2064 = vadd.xlane.f32.xlu0 %v2063
        %v2065 = vpop.xlane.xlu0 %2064
        %v2066 = vsel %vm853, %v2049, 0.0
        %2067 = vadd.xlane.f32.xlu0 %v2066
        %v2068 = vpop.xlane.xlu0 %2067
        %v2069 = vsel %vm853, %v2051, 0.0
        %2070 = vadd.xlane.f32.xlu0 %v2069
        %v2071 = vpop.xlane.xlu0 %2070
        %v2072 = vsel %vm853, %v2053, 0.0
        %2073 = vadd.xlane.f32.xlu0 %v2072
        %v2074 = vpop.xlane.xlu0 %2073
        %v2075 = vsel %vm853, %v2055, 0.0
        %2076 = vadd.xlane.f32.xlu0 %v2075
        %v2077 = vpop.xlane.xlu0 %2076
        %v2078 = vsel %vm853, %v2057, 0.0
        %2079 = vadd.xlane.f32.xlu0 %v2078
        %v2080 = vpop.xlane.xlu0 %2079
        %v2081 = vsel %vm853, %v2059, 0.0
        %2082 = vadd.xlane.f32.xlu0 %v2081
        %v2083 = vpop.xlane.xlu0 %2082
        %v2084 = vrcp.pop %v2062
        %v2085 = vrcp.pop %v2065
        %v2086 = vrcp.pop %v2068
        %v2087 = vrcp.pop %v2071
        %v2088 = vrcp.pop %v2074
        %v2089 = vrcp.pop %v2077
        %v2090 = vrcp.pop %v2080
        %v2091 = vrcp.pop %v2083
        %v2092 = vmul.f32 %v2045, %v2084
        %v2093 = vmul.f32 %v2047, %v2085
        %v2094 = vmul.f32 %v2049, %v2086
        %v2095 = vmul.f32 %v2051, %v2087
        %v2096 = vmul.f32 %v2053, %v2088
        %v2097 = vmul.f32 %v2055, %v2089
        %v2098 = vmul.f32 %v2057, %v2090
        %v2099 = vmul.f32 %v2059, %v2091
        %v2100 = vpack.c.bf16 %v2093, %v2092
        %v2101 = vpack.c.bf16 %v2095, %v2094
        %v2102 = vpack.c.bf16 %v2097, %v2096
        %v2103 = vpack.c.bf16 %v2099, %v2098
        %2104 = vrot.lane.b32.xlu0 %v652, 112
        %v2105 = vpop.permute.xlu0 %2104
        %v2108 = vsel %vm853, %v2100, 0
        %2110 = vmatprep.subr.bf16.mxu0 0
        %2111 = vmatpush1.bf16.msra.mxu0 %v2105
        %2112 = vmatprep.subr.bf16.mxu0 0
        %2113 = vmatpush1.bf16.msra.mxu0 0
        %2114 = vmatprep.subr.bf16.mxu0 0
        %2115 = vmatpush1.bf16.msra.mxu0 0
        %2116 = vmatprep.subr.bf16.mxu0 0
        %2117 = vmatpush1.bf16.msra.mxu0 0
        %2118 = vmatprep.subr.bf16.mxu0 0
        %2119 = vmatpush1.bf16.msra.mxu0 0
        %2120 = vmatprep.subr.bf16.mxu0 0
        %2121 = vmatpush1.bf16.msra.mxu0 0
        %2122 = vmatprep.subr.bf16.mxu0 0
        %2123 = vmatpush1.bf16.msra.mxu0 0
        %2124 = vmatprep.subr.bf16.mxu0 0
        %2125 = vmatpush1.bf16.msra.mxu0 0
        %2126 = vmatprep.subr.bf16.mxu0 0
        %2127 = vmatpush1.bf16.msra.mxu0 0
        %2128 = vmatprep.subr.bf16.mxu0 0
        %2129 = vmatpush1.bf16.msra.mxu0 0
        %2130 = vmatprep.subr.bf16.mxu0 0
        %2131 = vmatpush1.bf16.msra.mxu0 0
        %2132 = vmatprep.subr.bf16.mxu0 0
        %2133 = vmatpush1.bf16.msra.mxu0 0
        %2134 = vmatprep.subr.bf16.mxu0 0
        %2135 = vmatpush1.bf16.msra.mxu0 0
        %2136 = vmatprep.subr.bf16.mxu0 0
        %2137 = vmatpush1.bf16.msra.mxu0 0
        %2138 = vmatprep.subr.bf16.mxu0 0
        %2139 = vmatpush1.bf16.msra.mxu0 0
        %2140 = vmatprep.subr.bf16.mxu0 0
        %2141 = vmatpush1.bf16.msra.mxu0 0
        %2142 = vmatprep.mubr.bf16.mxu0 0
        %2143 = vmatmul.mubr.bf16.gmra.mrb[0].mxu0 %v2108
        %v2144 = vpop.f32.mrb[0].mxu0
        %v2145 = vadd.f32 0.0, %v2144
        %v2146 = vpop.f32.mrb[0].mxu0
        %v2147 = vpop.f32.mrb[0].mxu0
        %v2148 = vadd.f32 0.0, %v2147
        %v2149 = vpop.f32.mrb[0].mxu0
        %2150 = vdwg.mxu0
        %2151 = vrot.lane.b32.xlu0 %v653, 112
        %v2152 = vpop.permute.xlu0 %2151
        %v2155 = vsel %vm853, %v2101, 0
        %2157 = vmatprep.subr.bf16.mxu0 0
        %2158 = vmatpush1.bf16.msra.mxu0 %v2152
        %2159 = vmatprep.subr.bf16.mxu0 0
        %2160 = vmatpush1.bf16.msra.mxu0 0
        %2161 = vmatprep.subr.bf16.mxu0 0
        %2162 = vmatpush1.bf16.msra.mxu0 0
        %2163 = vmatprep.subr.bf16.mxu0 0
        %2164 = vmatpush1.bf16.msra.mxu0 0
        %2165 = vmatprep.subr.bf16.mxu0 0
        %2166 = vmatpush1.bf16.msra.mxu0 0
        %2167 = vmatprep.subr.bf16.mxu0 0
        %2168 = vmatpush1.bf16.msra.mxu0 0
        %2169 = vmatprep.subr.bf16.mxu0 0
        %2170 = vmatpush1.bf16.msra.mxu0 0
        %2171 = vmatprep.subr.bf16.mxu0 0
        %2172 = vmatpush1.bf16.msra.mxu0 0
        %2173 = vmatprep.subr.bf16.mxu0 0
        %2174 = vmatpush1.bf16.msra.mxu0 0
        %2175 = vmatprep.subr.bf16.mxu0 0
        %2176 = vmatpush1.bf16.msra.mxu0 0
        %2177 = vmatprep.subr.bf16.mxu0 0
        %2178 = vmatpush1.bf16.msra.mxu0 0
        %2179 = vmatprep.subr.bf16.mxu0 0
        %2180 = vmatpush1.bf16.msra.mxu0 0
        %2181 = vmatprep.subr.bf16.mxu0 0
        %2182 = vmatpush1.bf16.msra.mxu0 0
        %2183 = vmatprep.subr.bf16.mxu0 0
        %2184 = vmatpush1.bf16.msra.mxu0 0
        %2185 = vmatprep.subr.bf16.mxu0 0
        %2186 = vmatpush1.bf16.msra.mxu0 0
        %2187 = vmatprep.subr.bf16.mxu0 0
        %2188 = vmatpush1.bf16.msra.mxu0 0
        %2189 = vmatprep.mubr.bf16.mxu0 0
        %2190 = vmatmul.mubr.bf16.gmra.mrb[0].mxu0 %v2155
        %v2191 = vpop.f32.mrb[0].mxu0
        %v2192 = vadd.f32 0.0, %v2191
        %v2193 = vpop.f32.mrb[0].mxu0
        %v2194 = vpop.f32.mrb[0].mxu0
        %v2195 = vadd.f32 0.0, %v2194
        %v2196 = vpop.f32.mrb[0].mxu0
        %2197 = vdwg.mxu0
        %2198 = vrot.lane.b32.xlu0 %v654, 112
        %v2199 = vpop.permute.xlu0 %2198
        %v2202 = vsel %vm853, %v2102, 0
        %2204 = vmatprep.subr.bf16.mxu0 0
        %2205 = vmatpush1.bf16.msra.mxu0 %v2199
        %2206 = vmatprep.subr.bf16.mxu0 0
        %2207 = vmatpush1.bf16.msra.mxu0 0
        %2208 = vmatprep.subr.bf16.mxu0 0
        %2209 = vmatpush1.bf16.msra.mxu0 0
        %2210 = vmatprep.subr.bf16.mxu0 0
        %2211 = vmatpush1.bf16.msra.mxu0 0
        %2212 = vmatprep.subr.bf16.mxu0 0
        %2213 = vmatpush1.bf16.msra.mxu0 0
        %2214 = vmatprep.subr.bf16.mxu0 0
        %2215 = vmatpush1.bf16.msra.mxu0 0
        %2216 = vmatprep.subr.bf16.mxu0 0
        %2217 = vmatpush1.bf16.msra.mxu0 0
        %2218 = vmatprep.subr.bf16.mxu0 0
        %2219 = vmatpush1.bf16.msra.mxu0 0
        %2220 = vmatprep.subr.bf16.mxu0 0
        %2221 = vmatpush1.bf16.msra.mxu0 0
        %2222 = vmatprep.subr.bf16.mxu0 0
        %2223 = vmatpush1.bf16.msra.mxu0 0
        %2224 = vmatprep.subr.bf16.mxu0 0
        %2225 = vmatpush1.bf16.msra.mxu0 0
        %2226 = vmatprep.subr.bf16.mxu0 0
        %2227 = vmatpush1.bf16.msra.mxu0 0
        %2228 = vmatprep.subr.bf16.mxu0 0
        %2229 = vmatpush1.bf16.msra.mxu0 0
        %2230 = vmatprep.subr.bf16.mxu0 0
        %2231 = vmatpush1.bf16.msra.mxu0 0
        %2232 = vmatprep.subr.bf16.mxu0 0
        %2233 = vmatpush1.bf16.msra.mxu0 0
        %2234 = vmatprep.subr.bf16.mxu0 0
        %2235 = vmatpush1.bf16.msra.mxu0 0
        %2236 = vmatprep.mubr.bf16.mxu0 0
        %2237 = vmatmul.mubr.bf16.gmra.mrb[0].mxu0 %v2202
        %v2238 = vpop.f32.mrb[0].mxu0
        %v2239 = vadd.f32 0.0, %v2238
        %v2240 = vpop.f32.mrb[0].mxu0
        %v2241 = vpop.f32.mrb[0].mxu0
        %v2242 = vadd.f32 0.0, %v2241
        %v2243 = vpop.f32.mrb[0].mxu0
        %2244 = vdwg.mxu0
        %2245 = vrot.lane.b32.xlu0 %v655, 112
        %v2246 = vpop.permute.xlu0 %2245
        %v2249 = vsel %vm853, %v2103, 0
        %2251 = vmatprep.subr.bf16.mxu0 0
        %2252 = vmatpush1.bf16.msra.mxu0 %v2246
        %2253 = vmatprep.subr.bf16.mxu0 0
        %2254 = vmatpush1.bf16.msra.mxu0 0
        %2255 = vmatprep.subr.bf16.mxu0 0
        %2256 = vmatpush1.bf16.msra.mxu0 0
        %2257 = vmatprep.subr.bf16.mxu0 0
        %2258 = vmatpush1.bf16.msra.mxu0 0
        %2259 = vmatprep.subr.bf16.mxu0 0
        %2260 = vmatpush1.bf16.msra.mxu0 0
        %2261 = vmatprep.subr.bf16.mxu0 0
        %2262 = vmatpush1.bf16.msra.mxu0 0
        %2263 = vmatprep.subr.bf16.mxu0 0
        %2264 = vmatpush1.bf16.msra.mxu0 0
        %2265 = vmatprep.subr.bf16.mxu0 0
        %2266 = vmatpush1.bf16.msra.mxu0 0
        %2267 = vmatprep.subr.bf16.mxu0 0
        %2268 = vmatpush1.bf16.msra.mxu0 0
        %2269 = vmatprep.subr.bf16.mxu0 0
        %2270 = vmatpush1.bf16.msra.mxu0 0
        %2271 = vmatprep.subr.bf16.mxu0 0
        %2272 = vmatpush1.bf16.msra.mxu0 0
        %2273 = vmatprep.subr.bf16.mxu0 0
        %2274 = vmatpush1.bf16.msra.mxu0 0
        %2275 = vmatprep.subr.bf16.mxu0 0
        %2276 = vmatpush1.bf16.msra.mxu0 0
        %2277 = vmatprep.subr.bf16.mxu0 0
        %2278 = vmatpush1.bf16.msra.mxu0 0
        %2279 = vmatprep.subr.bf16.mxu0 0
        %2280 = vmatpush1.bf16.msra.mxu0 0
        %2281 = vmatprep.subr.bf16.mxu0 0
        %2282 = vmatpush1.bf16.msra.mxu0 0
        %2283 = vmatprep.mubr.bf16.mxu0 0
        %2284 = vmatmul.mubr.bf16.gmra.mrb[0].mxu0 %v2249
        %v2285 = vpop.f32.mrb[0].mxu0
        %v2286 = vadd.f32 0.0, %v2285
        %v2287 = vpop.f32.mrb[0].mxu0
        %v2288 = vpop.f32.mrb[0].mxu0
        %v2289 = vadd.f32 0.0, %v2288
        %v2290 = vpop.f32.mrb[0].mxu0
        %2291 = vdwg.mxu0
        %v2292 = vpack.c.bf16 %v2148, %v2145
        %v2293 = vpack.c.bf16 %v2195, %v2192
        %v2294 = vpack.c.bf16 %v2242, %v2239
        %v2295 = vpack.c.bf16 %v2289, %v2286
        %s2296 = scalar_lea.vmem [#allocation8], 8
        %v2297 = vld [vmem:[%s2296] sm:$0xf]
        %v2299 = vsel %vm664, %v2292, 0
        %v2302 = vsel %vm664, %v2293, 0
        %v2305 = vsel %vm664, %v2294, 0
        %v2308 = vsel %vm664, %v2295, 0
        %v2311 = vsel %vm1650, %v2297, 0
        %2313 = vmatprep.subr.bf16.mxu0 0
        %2314 = vmatpush1.bf16.msra.mxu0 %v2311
        %2315 = vmatprep.subr.bf16.mxu0 0
        %2316 = vmatpush1.bf16.msra.mxu0 0
        %2317 = vmatprep.subr.bf16.mxu0 0
        %2318 = vmatpush1.bf16.msra.mxu0 0
        %2319 = vmatprep.subr.bf16.mxu0 0
        %2320 = vmatpush1.bf16.msra.mxu0 0
        %2321 = vmatprep.subr.bf16.mxu0 0
        %2322 = vmatpush1.bf16.msra.mxu0 0
        %2323 = vmatprep.subr.bf16.mxu0 0
        %2324 = vmatpush1.bf16.msra.mxu0 0
        %2325 = vmatprep.subr.bf16.mxu0 0
        %2326 = vmatpush1.bf16.msra.mxu0 0
        %2327 = vmatprep.subr.bf16.mxu0 0
        %2328 = vmatpush1.bf16.msra.mxu0 0
        %2329 = vmatprep.subr.bf16.mxu0 0
        %2330 = vmatpush1.bf16.msra.mxu0 0
        %2331 = vmatprep.subr.bf16.mxu0 0
        %2332 = vmatpush1.bf16.msra.mxu0 0
        %2333 = vmatprep.subr.bf16.mxu0 0
        %2334 = vmatpush1.bf16.msra.mxu0 0
        %2335 = vmatprep.subr.bf16.mxu0 0
        %2336 = vmatpush1.bf16.msra.mxu0 0
        %2337 = vmatprep.subr.bf16.mxu0 0
        %2338 = vmatpush1.bf16.msra.mxu0 0
        %2339 = vmatprep.subr.bf16.mxu0 0
        %2340 = vmatpush1.bf16.msra.mxu0 0
        %2341 = vmatprep.subr.bf16.mxu0 0
        %2342 = vmatpush1.bf16.msra.mxu0 0
        %2343 = vmatprep.subr.bf16.mxu0 0
        %2344 = vmatpush1.bf16.msra.mxu0 0
        %2345 = vmatprep.mubr.bf16.mxu0 0
        %2346 = vmatmul.mubr.bf16.gmra.mrb[0].mxu0 %v2299
        %v2347 = vpop.f32.mrb[0].mxu0
        %v2348 = vadd.f32 0.0, %v2347
        %v2349 = vpop.f32.mrb[0].mxu0
        %v2350 = vpop.f32.mrb[0].mxu0
        %v2351 = vadd.f32 0.0, %v2350
        %v2352 = vpop.f32.mrb[0].mxu0
        %2353 = vmatprep.mubr.bf16.mxu0 0
        %2354 = vmatmul.mubr.bf16.gmra.mrb[0].mxu0 %v2302
        %v2355 = vpop.f32.mrb[0].mxu0
        %v2356 = vadd.f32 0.0, %v2355
        %v2357 = vpop.f32.mrb[0].mxu0
        %v2358 = vpop.f32.mrb[0].mxu0
        %v2359 = vadd.f32 0.0, %v2358
        %v2360 = vpop.f32.mrb[0].mxu0
        %2361 = vmatprep.mubr.bf16.mxu0 0
        %2362 = vmatmul.mubr.bf16.gmra.mrb[0].mxu0 %v2305
        %v2363 = vpop.f32.mrb[0].mxu0
        %v2364 = vadd.f32 0.0, %v2363
        %v2365 = vpop.f32.mrb[0].mxu0
        %v2366 = vpop.f32.mrb[0].mxu0
        %v2367 = vadd.f32 0.0, %v2366
        %v2368 = vpop.f32.mrb[0].mxu0
        %2369 = vmatprep.mubr.bf16.mxu0 0
        %2370 = vmatmul.mubr.bf16.gmra.mrb[0].mxu0 %v2308
        %v2371 = vpop.f32.mrb[0].mxu0
        %v2372 = vadd.f32 0.0, %v2371
        %v2373 = vpop.f32.mrb[0].mxu0
        %v2374 = vpop.f32.mrb[0].mxu0
        %v2375 = vadd.f32 0.0, %v2374
        %v2376 = vpop.f32.mrb[0].mxu0
        %2377 = vdwg.mxu0
        %v2378 = vadd.f32 %v1769, %v2348
        %v2379 = vadd.f32 %v1772, %v2351
        %v2380 = vadd.f32 %v1777, %v2356
        %v2381 = vadd.f32 %v1780, %v2359
        %v2382 = vadd.f32 %v1785, %v2364
        %v2383 = vadd.f32 %v1788, %v2367
        %v2384 = vadd.f32 %v1793, %v2372
        %v2385 = vadd.f32 %v1796, %v2375
        %s2386 = scalar_lea.vmem [#allocation7], 192
        %v2387 = vld [vmem:[%s2386] sm:$0xff]
        %v2388 = vld [vmem:[%s2386 + $0x8] sm:$0xff]
        %v2389 = vld [vmem:[%s2386 + $0x10] sm:$0xff]
        %v2390 = vld [vmem:[%s2386 + $0x18] sm:$0xff]
        %v2391 = vld [vmem:[%s2386 + $0x20] sm:$0xff]
        %v2392 = vld [vmem:[%s2386 + $0x28] sm:$0xff]
        %v2393 = vld [vmem:[%s2386 + $0x30] sm:$0xff]
        %v2394 = vld [vmem:[%s2386 + $0x38] sm:$0xff]
        %2395 = vrot.lane.b32.xlu0 %v644, 104
        %v2396 = vpop.permute.xlu0 %2395
        %2397 = vrot.lane.b32.xlu0 %v648, 104
        %v2398 = vpop.permute.xlu0 %2397
        %v2400 = vsel %vm664, %v2396, 0
        %v2403 = vsel %vm664, %v2398, 0
        %2405 = vmatprep.subr.bf16.mxu0 0
        %2406 = vmatpush1.bf16.xpose.msra.mxu0 %v2403
        %2407 = vmatprep.subr.bf16.mxu0 0
        %2408 = vmatpush1.bf16.xpose.msra.mxu0 0
        %2409 = vmatprep.subr.bf16.mxu0 0
        %2410 = vmatpush1.bf16.xpose.msra.mxu0 0
        %2411 = vmatprep.subr.bf16.mxu0 0
        %2412 = vmatpush1.bf16.xpose.msra.mxu0 0
        %2413 = vmatprep.subr.bf16.mxu0 0
        %2414 = vmatpush1.bf16.xpose.msra.mxu0 0
        %2415 = vmatprep.subr.bf16.mxu0 0
        %2416 = vmatpush1.bf16.xpose.msra.mxu0 0
        %2417 = vmatprep.subr.bf16.mxu0 0
        %2418 = vmatpush1.bf16.xpose.msra.mxu0 0
        %2419 = vmatprep.subr.bf16.mxu0 0
        %2420 = vmatpush1.bf16.xpose.msra.mxu0 0
        %2421 = vmatprep.subr.bf16.mxu0 0
        %2422 = vmatpush1.bf16.xpose.msra.mxu0 0
        %2423 = vmatprep.subr.bf16.mxu0 0
        %2424 = vmatpush1.bf16.xpose.msra.mxu0 0
        %2425 = vmatprep.subr.bf16.mxu0 0
        %2426 = vmatpush1.bf16.xpose.msra.mxu0 0
        %2427 = vmatprep.subr.bf16.mxu0 0
        %2428 = vmatpush1.bf16.xpose.msra.mxu0 0
        %2429 = vmatprep.subr.bf16.mxu0 0
        %2430 = vmatpush1.bf16.xpose.msra.mxu0 0
        %2431 = vmatprep.subr.bf16.mxu0 0
        %2432 = vmatpush1.bf16.xpose.msra.mxu0 0
        %2433 = vmatprep.subr.bf16.mxu0 0
        %2434 = vmatpush1.bf16.xpose.msra.mxu0 0
        %2435 = vmatprep.subr.bf16.mxu0 0
        %2436 = vmatpush1.bf16.xpose.msra.mxu0 0
        %2437 = vmatprep.mubr.bf16.mxu0 0
        %2438 = vmatmul.mubr.bf16.gmra.mrb[0].mxu0 %v2400
        %v2439 = vpop.f32.mrb[0].mxu0
        %v2440 = vadd.f32 %v2387, %v2439
        %v2441 = vpop.f32.mrb[0].mxu0
        %v2442 = vpop.f32.mrb[0].mxu0
        %v2443 = vadd.f32 %v2388, %v2442
        %v2444 = vpop.f32.mrb[0].mxu0
        %2445 = vdwg.mxu0
        %2446 = vrot.lane.b32.xlu0 %v645, 104
        %v2447 = vpop.permute.xlu0 %2446
        %2448 = vrot.lane.b32.xlu0 %v649, 104
        %v2449 = vpop.permute.xlu0 %2448
        %v2451 = vsel %vm664, %v2447, 0
        %v2454 = vsel %vm664, %v2449, 0
        %2456 = vmatprep.subr.bf16.mxu0 0
        %2457 = vmatpush1.bf16.xpose.msra.mxu0 %v2454
        %2458 = vmatprep.subr.bf16.mxu0 0
        %2459 = vmatpush1.bf16.xpose.msra.mxu0 0
        %2460 = vmatprep.subr.bf16.mxu0 0
        %2461 = vmatpush1.bf16.xpose.msra.mxu0 0
        %2462 = vmatprep.subr.bf16.mxu0 0
        %2463 = vmatpush1.bf16.xpose.msra.mxu0 0
        %2464 = vmatprep.subr.bf16.mxu0 0
        %2465 = vmatpush1.bf16.xpose.msra.mxu0 0
        %2466 = vmatprep.subr.bf16.mxu0 0
        %2467 = vmatpush1.bf16.xpose.msra.mxu0 0
        %2468 = vmatprep.subr.bf16.mxu0 0
        %2469 = vmatpush1.bf16.xpose.msra.mxu0 0
        %2470 = vmatprep.subr.bf16.mxu0 0
        %2471 = vmatpush1.bf16.xpose.msra.mxu0 0
        %2472 = vmatprep.subr.bf16.mxu0 0
        %2473 = vmatpush1.bf16.xpose.msra.mxu0 0
        %2474 = vmatprep.subr.bf16.mxu0 0
        %2475 = vmatpush1.bf16.xpose.msra.mxu0 0
        %2476 = vmatprep.subr.bf16.mxu0 0
        %2477 = vmatpush1.bf16.xpose.msra.mxu0 0
        %2478 = vmatprep.subr.bf16.mxu0 0
        %2479 = vmatpush1.bf16.xpose.msra.mxu0 0
        %2480 = vmatprep.subr.bf16.mxu0 0
        %2481 = vmatpush1.bf16.xpose.msra.mxu0 0
        %2482 = vmatprep.subr.bf16.mxu0 0
        %2483 = vmatpush1.bf16.xpose.msra.mxu0 0
        %2484 = vmatprep.subr.bf16.mxu0 0
        %2485 = vmatpush1.bf16.xpose.msra.mxu0 0
        %2486 = vmatprep.subr.bf16.mxu0 0
        %2487 = vmatpush1.bf16.xpose.msra.mxu0 0
        %2488 = vmatprep.mubr.bf16.mxu0 0
        %2489 = vmatmul.mubr.bf16.gmra.mrb[0].mxu0 %v2451
        %v2490 = vpop.f32.mrb[0].mxu0
        %v2491 = vadd.f32 %v2389, %v2490
        %v2492 = vpop.f32.mrb[0].mxu0
        %v2493 = vpop.f32.mrb[0].mxu0
        %v2494 = vadd.f32 %v2390, %v2493
        %v2495 = vpop.f32.mrb[0].mxu0
        %2496 = vdwg.mxu0
        %2497 = vrot.lane.b32.xlu0 %v646, 104
        %v2498 = vpop.permute.xlu0 %2497
        %2499 = vrot.lane.b32.xlu0 %v650, 104
        %v2500 = vpop.permute.xlu0 %2499
        %v2502 = vsel %vm664, %v2498, 0
        %v2505 = vsel %vm664, %v2500, 0
        %2507 = vmatprep.subr.bf16.mxu0 0
        %2508 = vmatpush1.bf16.xpose.msra.mxu0 %v2505
        %2509 = vmatprep.subr.bf16.mxu0 0
        %2510 = vmatpush1.bf16.xpose.msra.mxu0 0
        %2511 = vmatprep.subr.bf16.mxu0 0
        %2512 = vmatpush1.bf16.xpose.msra.mxu0 0
        %2513 = vmatprep.subr.bf16.mxu0 0
        %2514 = vmatpush1.bf16.xpose.msra.mxu0 0
        %2515 = vmatprep.subr.bf16.mxu0 0
        %2516 = vmatpush1.bf16.xpose.msra.mxu0 0
        %2517 = vmatprep.subr.bf16.mxu0 0
        %2518 = vmatpush1.bf16.xpose.msra.mxu0 0
        %2519 = vmatprep.subr.bf16.mxu0 0
        %2520 = vmatpush1.bf16.xpose.msra.mxu0 0
        %2521 = vmatprep.subr.bf16.mxu0 0
        %2522 = vmatpush1.bf16.xpose.msra.mxu0 0
        %2523 = vmatprep.subr.bf16.mxu0 0
        %2524 = vmatpush1.bf16.xpose.msra.mxu0 0
        %2525 = vmatprep.subr.bf16.mxu0 0
        %2526 = vmatpush1.bf16.xpose.msra.mxu0 0
        %2527 = vmatprep.subr.bf16.mxu0 0
        %2528 = vmatpush1.bf16.xpose.msra.mxu0 0
        %2529 = vmatprep.subr.bf16.mxu0 0
        %2530 = vmatpush1.bf16.xpose.msra.mxu0 0
        %2531 = vmatprep.subr.bf16.mxu0 0
        %2532 = vmatpush1.bf16.xpose.msra.mxu0 0
        %2533 = vmatprep.subr.bf16.mxu0 0
        %2534 = vmatpush1.bf16.xpose.msra.mxu0 0
        %2535 = vmatprep.subr.bf16.mxu0 0
        %2536 = vmatpush1.bf16.xpose.msra.mxu0 0
        %2537 = vmatprep.subr.bf16.mxu0 0
        %2538 = vmatpush1.bf16.xpose.msra.mxu0 0
        %2539 = vmatprep.mubr.bf16.mxu0 0
        %2540 = vmatmul.mubr.bf16.gmra.mrb[0].mxu0 %v2502
        %v2541 = vpop.f32.mrb[0].mxu0
        %v2542 = vadd.f32 %v2391, %v2541
        %v2543 = vpop.f32.mrb[0].mxu0
        %v2544 = vpop.f32.mrb[0].mxu0
        %v2545 = vadd.f32 %v2392, %v2544
        %v2546 = vpop.f32.mrb[0].mxu0
        %2547 = vdwg.mxu0
        %2548 = vrot.lane.b32.xlu0 %v647, 104
        %v2549 = vpop.permute.xlu0 %2548
        %2550 = vrot.lane.b32.xlu0 %v651, 104
        %v2551 = vpop.permute.xlu0 %2550
        %v2553 = vsel %vm664, %v2549, 0
        %v2556 = vsel %vm664, %v2551, 0
        %2558 = vmatprep.subr.bf16.mxu0 0
        %2559 = vmatpush1.bf16.xpose.msra.mxu0 %v2556
        %2560 = vmatprep.subr.bf16.mxu0 0
        %2561 = vmatpush1.bf16.xpose.msra.mxu0 0
        %2562 = vmatprep.subr.bf16.mxu0 0
        %2563 = vmatpush1.bf16.xpose.msra.mxu0 0
        %2564 = vmatprep.subr.bf16.mxu0 0
        %2565 = vmatpush1.bf16.xpose.msra.mxu0 0
        %2566 = vmatprep.subr.bf16.mxu0 0
        %2567 = vmatpush1.bf16.xpose.msra.mxu0 0
        %2568 = vmatprep.subr.bf16.mxu0 0
        %2569 = vmatpush1.bf16.xpose.msra.mxu0 0
        %2570 = vmatprep.subr.bf16.mxu0 0
        %2571 = vmatpush1.bf16.xpose.msra.mxu0 0
        %2572 = vmatprep.subr.bf16.mxu0 0
        %2573 = vmatpush1.bf16.xpose.msra.mxu0 0
        %2574 = vmatprep.subr.bf16.mxu0 0
        %2575 = vmatpush1.bf16.xpose.msra.mxu0 0
        %2576 = vmatprep.subr.bf16.mxu0 0
        %2577 = vmatpush1.bf16.xpose.msra.mxu0 0
        %2578 = vmatprep.subr.bf16.mxu0 0
        %2579 = vmatpush1.bf16.xpose.msra.mxu0 0
        %2580 = vmatprep.subr.bf16.mxu0 0
        %2581 = vmatpush1.bf16.xpose.msra.mxu0 0
        %2582 = vmatprep.subr.bf16.mxu0 0
        %2583 = vmatpush1.bf16.xpose.msra.mxu0 0
        %2584 = vmatprep.subr.bf16.mxu0 0
        %2585 = vmatpush1.bf16.xpose.msra.mxu0 0
        %2586 = vmatprep.subr.bf16.mxu0 0
        %2587 = vmatpush1.bf16.xpose.msra.mxu0 0
        %2588 = vmatprep.subr.bf16.mxu0 0
        %2589 = vmatpush1.bf16.xpose.msra.mxu0 0
        %2590 = vmatprep.mubr.bf16.mxu0 0
        %2591 = vmatmul.mubr.bf16.gmra.mrb[0].mxu0 %v2553
        %v2592 = vpop.f32.mrb[0].mxu0
        %v2593 = vadd.f32 %v2393, %v2592
        %v2594 = vpop.f32.mrb[0].mxu0
        %v2595 = vpop.f32.mrb[0].mxu0
        %v2596 = vadd.f32 %v2394, %v2595
        %v2597 = vpop.f32.mrb[0].mxu0
        %2598 = vdwg.mxu0
        %v2599 = vsel %vm853, %v2440, -inf
        %2600 = vmax.xlane.f32.xlu0 %v2599
        %v2601 = vpop.xlane.xlu0 %2600
        %v2602 = vsel %vm853, %v2443, -inf
        %2603 = vmax.xlane.f32.xlu0 %v2602
        %v2604 = vpop.xlane.xlu0 %2603
        %v2605 = vsel %vm853, %v2491, -inf
        %2606 = vmax.xlane.f32.xlu0 %v2605
        %v2607 = vpop.xlane.xlu0 %2606
        %v2608 = vsel %vm853, %v2494, -inf
        %2609 = vmax.xlane.f32.xlu0 %v2608
        %v2610 = vpop.xlane.xlu0 %2609
        %v2611 = vsel %vm853, %v2542, -inf
        %2612 = vmax.xlane.f32.xlu0 %v2611
        %v2613 = vpop.xlane.xlu0 %2612
        %v2614 = vsel %vm853, %v2545, -inf
        %2615 = vmax.xlane.f32.xlu0 %v2614
        %v2616 = vpop.xlane.xlu0 %2615
        %v2617 = vsel %vm853, %v2593, -inf
        %2618 = vmax.xlane.f32.xlu0 %v2617
        %v2619 = vpop.xlane.xlu0 %2618
        %v2620 = vsel %vm853, %v2596, -inf
        %2621 = vmax.xlane.f32.xlu0 %v2620
        %v2622 = vpop.xlane.xlu0 %2621
        %v2623 = vsub.f32 %v2440, %v2601
        %v2624 = vsub.f32 %v2443, %v2604
        %v2625 = vsub.f32 %v2491, %v2607
        %v2626 = vsub.f32 %v2494, %v2610
        %v2627 = vsub.f32 %v2542, %v2613
        %v2628 = vsub.f32 %v2545, %v2616
        %v2629 = vsub.f32 %v2593, %v2619
        %v2630 = vsub.f32 %v2596, %v2622
        %v2631 = vmul.f32 %v2623, 1.442695
        %v2632 = vpow.pop %v2631
        %v2633 = vmul.f32 %v2624, 1.442695
        %v2634 = vpow.pop %v2633
        %v2635 = vmul.f32 %v2625, 1.442695
        %v2636 = vpow.pop %v2635
        %v2637 = vmul.f32 %v2626, 1.442695
        %v2638 = vpow.pop %v2637
        %v2639 = vmul.f32 %v2627, 1.442695
        %v2640 = vpow.pop %v2639
        %v2641 = vmul.f32 %v2628, 1.442695
        %v2642 = vpow.pop %v2641
        %v2643 = vmul.f32 %v2629, 1.442695
        %v2644 = vpow.pop %v2643
        %v2645 = vmul.f32 %v2630, 1.442695
        %v2646 = vpow.pop %v2645
        %v2647 = vsel %vm853, %v2632, 0.0
        %2648 = vadd.xlane.f32.xlu0 %v2647
        %v2649 = vpop.xlane.xlu0 %2648
        %v2650 = vsel %vm853, %v2634, 0.0
        %2651 = vadd.xlane.f32.xlu0 %v2650
        %v2652 = vpop.xlane.xlu0 %2651
        %v2653 = vsel %vm853, %v2636, 0.0
        %2654 = vadd.xlane.f32.xlu0 %v2653
        %v2655 = vpop.xlane.xlu0 %2654
        %v2656 = vsel %vm853, %v2638, 0.0
        %2657 = vadd.xlane.f32.xlu0 %v2656
        %v2658 = vpop.xlane.xlu0 %2657
        %v2659 = vsel %vm853, %v2640, 0.0
        %2660 = vadd.xlane.f32.xlu0 %v2659
        %v2661 = vpop.xlane.xlu0 %2660
        %v2662 = vsel %vm853, %v2642, 0.0
        %2663 = vadd.xlane.f32.xlu0 %v2662
        %v2664 = vpop.xlane.xlu0 %2663
        %v2665 = vsel %vm853, %v2644, 0.0
        %2666 = vadd.xlane.f32.xlu0 %v2665
        %v2667 = vpop.xlane.xlu0 %2666
        %v2668 = vsel %vm853, %v2646, 0.0
        %2669 = vadd.xlane.f32.xlu0 %v2668
        %v2670 = vpop.xlane.xlu0 %2669
        %v2671 = vrcp.pop %v2649
        %v2672 = vrcp.pop %v2652
        %v2673 = vrcp.pop %v2655
        %v2674 = vrcp.pop %v2658
        %v2675 = vrcp.pop %v2661
        %v2676 = vrcp.pop %v2664
        %v2677 = vrcp.pop %v2667
        %v2678 = vrcp.pop %v2670
        %v2679 = vmul.f32 %v2632, %v2671
        %v2680 = vmul.f32 %v2634, %v2672
        %v2681 = vmul.f32 %v2636, %v2673
        %v2682 = vmul.f32 %v2638, %v2674
        %v2683 = vmul.f32 %v2640, %v2675
        %v2684 = vmul.f32 %v2642, %v2676
        %v2685 = vmul.f32 %v2644, %v2677
        %v2686 = vmul.f32 %v2646, %v2678
        %v2687 = vpack.c.bf16 %v2680, %v2679
        %v2688 = vpack.c.bf16 %v2682, %v2681
        %v2689 = vpack.c.bf16 %v2684, %v2683
        %v2690 = vpack.c.bf16 %v2686, %v2685
        %2691 = vrot.lane.b32.xlu0 %v652, 104
        %v2692 = vpop.permute.xlu0 %2691
        %v2695 = vsel %vm853, %v2687, 0
        %2697 = vmatprep.subr.bf16.mxu0 0
        %2698 = vmatpush1.bf16.msra.mxu0 %v2692
        %2699 = vmatprep.subr.bf16.mxu0 0
        %2700 = vmatpush1.bf16.msra.mxu0 0
        %2701 = vmatprep.subr.bf16.mxu0 0
        %2702 = vmatpush1.bf16.msra.mxu0 0
        %2703 = vmatprep.subr.bf16.mxu0 0
        %2704 = vmatpush1.bf16.msra.mxu0 0
        %2705 = vmatprep.subr.bf16.mxu0 0
        %2706 = vmatpush1.bf16.msra.mxu0 0
        %2707 = vmatprep.subr.bf16.mxu0 0
        %2708 = vmatpush1.bf16.msra.mxu0 0
        %2709 = vmatprep.subr.bf16.mxu0 0
        %2710 = vmatpush1.bf16.msra.mxu0 0
        %2711 = vmatprep.subr.bf16.mxu0 0
        %2712 = vmatpush1.bf16.msra.mxu0 0
        %2713 = vmatprep.subr.bf16.mxu0 0
        %2714 = vmatpush1.bf16.msra.mxu0 0
        %2715 = vmatprep.subr.bf16.mxu0 0
        %2716 = vmatpush1.bf16.msra.mxu0 0
        %2717 = vmatprep.subr.bf16.mxu0 0
        %2718 = vmatpush1.bf16.msra.mxu0 0
        %2719 = vmatprep.subr.bf16.mxu0 0
        %2720 = vmatpush1.bf16.msra.mxu0 0
        %2721 = vmatprep.subr.bf16.mxu0 0
        %2722 = vmatpush1.bf16.msra.mxu0 0
        %2723 = vmatprep.subr.bf16.mxu0 0
        %2724 = vmatpush1.bf16.msra.mxu0 0
        %2725 = vmatprep.subr.bf16.mxu0 0
        %2726 = vmatpush1.bf16.msra.mxu0 0
        %2727 = vmatprep.subr.bf16.mxu0 0
        %2728 = vmatpush1.bf16.msra.mxu0 0
        %2729 = vmatprep.mubr.bf16.mxu0 0
        %2730 = vmatmul.mubr.bf16.gmra.mrb[0].mxu0 %v2695
        %v2731 = vpop.f32.mrb[0].mxu0
        %v2732 = vadd.f32 0.0, %v2731
        %v2733 = vpop.f32.mrb[0].mxu0
        %v2734 = vpop.f32.mrb[0].mxu0
        %v2735 = vadd.f32 0.0, %v2734
        %v2736 = vpop.f32.mrb[0].mxu0
        %2737 = vdwg.mxu0
        %2738 = vrot.lane.b32.xlu0 %v653, 104
        %v2739 = vpop.permute.xlu0 %2738
        %v2742 = vsel %vm853, %v2688, 0
        %2744 = vmatprep.subr.bf16.mxu0 0
        %2745 = vmatpush1.bf16.msra.mxu0 %v2739
        %2746 = vmatprep.subr.bf16.mxu0 0
        %2747 = vmatpush1.bf16.msra.mxu0 0
        %2748 = vmatprep.subr.bf16.mxu0 0
        %2749 = vmatpush1.bf16.msra.mxu0 0
        %2750 = vmatprep.subr.bf16.mxu0 0
        %2751 = vmatpush1.bf16.msra.mxu0 0
        %2752 = vmatprep.subr.bf16.mxu0 0
        %2753 = vmatpush1.bf16.msra.mxu0 0
        %2754 = vmatprep.subr.bf16.mxu0 0
        %2755 = vmatpush1.bf16.msra.mxu0 0
        %2756 = vmatprep.subr.bf16.mxu0 0
        %2757 = vmatpush1.bf16.msra.mxu0 0
        %2758 = vmatprep.subr.bf16.mxu0 0
        %2759 = vmatpush1.bf16.msra.mxu0 0
        %2760 = vmatprep.subr.bf16.mxu0 0
        %2761 = vmatpush1.bf16.msra.mxu0 0
        %2762 = vmatprep.subr.bf16.mxu0 0
        %2763 = vmatpush1.bf16.msra.mxu0 0
        %2764 = vmatprep.subr.bf16.mxu0 0
        %2765 = vmatpush1.bf16.msra.mxu0 0
        %2766 = vmatprep.subr.bf16.mxu0 0
        %2767 = vmatpush1.bf16.msra.mxu0 0
        %2768 = vmatprep.subr.bf16.mxu0 0
        %2769 = vmatpush1.bf16.msra.mxu0 0
        %2770 = vmatprep.subr.bf16.mxu0 0
        %2771 = vmatpush1.bf16.msra.mxu0 0
        %2772 = vmatprep.subr.bf16.mxu0 0
        %2773 = vmatpush1.bf16.msra.mxu0 0
        %2774 = vmatprep.subr.bf16.mxu0 0
        %2775 = vmatpush1.bf16.msra.mxu0 0
        %2776 = vmatprep.mubr.bf16.mxu0 0
        %2777 = vmatmul.mubr.bf16.gmra.mrb[0].mxu0 %v2742
        %v2778 = vpop.f32.mrb[0].mxu0
        %v2779 = vadd.f32 0.0, %v2778
        %v2780 = vpop.f32.mrb[0].mxu0
        %v2781 = vpop.f32.mrb[0].mxu0
        %v2782 = vadd.f32 0.0, %v2781
        %v2783 = vpop.f32.mrb[0].mxu0
        %2784 = vdwg.mxu0
        %2785 = vrot.lane.b32.xlu0 %v654, 104
        %v2786 = vpop.permute.xlu0 %2785
        %v2789 = vsel %vm853, %v2689, 0
        %2791 = vmatprep.subr.bf16.mxu0 0
        %2792 = vmatpush1.bf16.msra.mxu0 %v2786
        %2793 = vmatprep.subr.bf16.mxu0 0
        %2794 = vmatpush1.bf16.msra.mxu0 0
        %2795 = vmatprep.subr.bf16.mxu0 0
        %2796 = vmatpush1.bf16.msra.mxu0 0
        %2797 = vmatprep.subr.bf16.mxu0 0
        %2798 = vmatpush1.bf16.msra.mxu0 0
        %2799 = vmatprep.subr.bf16.mxu0 0
        %2800 = vmatpush1.bf16.msra.mxu0 0
        %2801 = vmatprep.subr.bf16.mxu0 0
        %2802 = vmatpush1.bf16.msra.mxu0 0
        %2803 = vmatprep.subr.bf16.mxu0 0
        %2804 = vmatpush1.bf16.msra.mxu0 0
        %2805 = vmatprep.subr.bf16.mxu0 0
        %2806 = vmatpush1.bf16.msra.mxu0 0
        %2807 = vmatprep.subr.bf16.mxu0 0
        %2808 = vmatpush1.bf16.msra.mxu0 0
        %2809 = vmatprep.subr.bf16.mxu0 0
        %2810 = vmatpush1.bf16.msra.mxu0 0
        %2811 = vmatprep.subr.bf16.mxu0 0
        %2812 = vmatpush1.bf16.msra.mxu0 0
        %2813 = vmatprep.subr.bf16.mxu0 0
        %2814 = vmatpush1.bf16.msra.mxu0 0
        %2815 = vmatprep.subr.bf16.mxu0 0
        %2816 = vmatpush1.bf16.msra.mxu0 0
        %2817 = vmatprep.subr.bf16.mxu0 0
        %2818 = vmatpush1.bf16.msra.mxu0 0
        %2819 = vmatprep.subr.bf16.mxu0 0
        %2820 = vmatpush1.bf16.msra.mxu0 0
        %2821 = vmatprep.subr.bf16.mxu0 0
        %2822 = vmatpush1.bf16.msra.mxu0 0
        %2823 = vmatprep.mubr.bf16.mxu0 0
        %2824 = vmatmul.mubr.bf16.gmra.mrb[0].mxu0 %v2789
        %v2825 = vpop.f32.mrb[0].mxu0
        %v2826 = vadd.f32 0.0, %v2825
        %v2827 = vpop.f32.mrb[0].mxu0
        %v2828 = vpop.f32.mrb[0].mxu0
        %v2829 = vadd.f32 0.0, %v2828
        %v2830 = vpop.f32.mrb[0].mxu0
        %2831 = vdwg.mxu0
        %2832 = vrot.lane.b32.xlu0 %v655, 104
        %v2833 = vpop.permute.xlu0 %2832
        %v2836 = vsel %vm853, %v2690, 0
        %2838 = vmatprep.subr.bf16.mxu0 0
        %2839 = vmatpush1.bf16.msra.mxu0 %v2833
        %2840 = vmatprep.subr.bf16.mxu0 0
        %2841 = vmatpush1.bf16.msra.mxu0 0
        %2842 = vmatprep.subr.bf16.mxu0 0
        %2843 = vmatpush1.bf16.msra.mxu0 0
        %2844 = vmatprep.subr.bf16.mxu0 0
        %2845 = vmatpush1.bf16.msra.mxu0 0
        %2846 = vmatprep.subr.bf16.mxu0 0
        %2847 = vmatpush1.bf16.msra.mxu0 0
        %2848 = vmatprep.subr.bf16.mxu0 0
        %2849 = vmatpush1.bf16.msra.mxu0 0
        %2850 = vmatprep.subr.bf16.mxu0 0
        %2851 = vmatpush1.bf16.msra.mxu0 0
        %2852 = vmatprep.subr.bf16.mxu0 0
        %2853 = vmatpush1.bf16.msra.mxu0 0
        %2854 = vmatprep.subr.bf16.mxu0 0
        %2855 = vmatpush1.bf16.msra.mxu0 0
        %2856 = vmatprep.subr.bf16.mxu0 0
        %2857 = vmatpush1.bf16.msra.mxu0 0
        %2858 = vmatprep.subr.bf16.mxu0 0
        %2859 = vmatpush1.bf16.msra.mxu0 0
        %2860 = vmatprep.subr.bf16.mxu0 0
        %2861 = vmatpush1.bf16.msra.mxu0 0
        %2862 = vmatprep.subr.bf16.mxu0 0
        %2863 = vmatpush1.bf16.msra.mxu0 0
        %2864 = vmatprep.subr.bf16.mxu0 0
        %2865 = vmatpush1.bf16.msra.mxu0 0
        %2866 = vmatprep.subr.bf16.mxu0 0
        %2867 = vmatpush1.bf16.msra.mxu0 0
        %2868 = vmatprep.subr.bf16.mxu0 0
        %2869 = vmatpush1.bf16.msra.mxu0 0
        %2870 = vmatprep.mubr.bf16.mxu0 0
        %2871 = vmatmul.mubr.bf16.gmra.mrb[0].mxu0 %v2836
        %v2872 = vpop.f32.mrb[0].mxu0
        %v2873 = vadd.f32 0.0, %v2872
        %v2874 = vpop.f32.mrb[0].mxu0
        %v2875 = vpop.f32.mrb[0].mxu0
        %v2876 = vadd.f32 0.0, %v2875
        %v2877 = vpop.f32.mrb[0].mxu0
        %2878 = vdwg.mxu0
        %v2879 = vpack.c.bf16 %v2735, %v2732
        %v2880 = vpack.c.bf16 %v2782, %v2779
        %v2881 = vpack.c.bf16 %v2829, %v2826
        %v2882 = vpack.c.bf16 %v2876, %v2873
        %s2883 = scalar_lea.vmem [#allocation8], 12
        %v2884 = vld [vmem:[%s2883] sm:$0xf]
        %v2886 = vsel %vm664, %v2879, 0
        %v2889 = vsel %vm664, %v2880, 0
        %v2892 = vsel %vm664, %v2881, 0
        %v2895 = vsel %vm664, %v2882, 0
        %v2898 = vsel %vm1650, %v2884, 0
        %2900 = vmatprep.subr.bf16.mxu0 0
        %2901 = vmatpush1.bf16.msra.mxu0 %v2898
        %2902 = vmatprep.subr.bf16.mxu0 0
        %2903 = vmatpush1.bf16.msra.mxu0 0
        %2904 = vmatprep.subr.bf16.mxu0 0
        %2905 = vmatpush1.bf16.msra.mxu0 0
        %2906 = vmatprep.subr.bf16.mxu0 0
        %2907 = vmatpush1.bf16.msra.mxu0 0
        %2908 = vmatprep.subr.bf16.mxu0 0
        %2909 = vmatpush1.bf16.msra.mxu0 0
        %2910 = vmatprep.subr.bf16.mxu0 0
        %2911 = vmatpush1.bf16.msra.mxu0 0
        %2912 = vmatprep.subr.bf16.mxu0 0
        %2913 = vmatpush1.bf16.msra.mxu0 0
        %2914 = vmatprep.subr.bf16.mxu0 0
        %2915 = vmatpush1.bf16.msra.mxu0 0
        %2916 = vmatprep.subr.bf16.mxu0 0
        %2917 = vmatpush1.bf16.msra.mxu0 0
        %2918 = vmatprep.subr.bf16.mxu0 0
        %2919 = vmatpush1.bf16.msra.mxu0 0
        %2920 = vmatprep.subr.bf16.mxu0 0
        %2921 = vmatpush1.bf16.msra.mxu0 0
        %2922 = vmatprep.subr.bf16.mxu0 0
        %2923 = vmatpush1.bf16.msra.mxu0 0
        %2924 = vmatprep.subr.bf16.mxu0 0
        %2925 = vmatpush1.bf16.msra.mxu0 0
        %2926 = vmatprep.subr.bf16.mxu0 0
        %2927 = vmatpush1.bf16.msra.mxu0 0
        %2928 = vmatprep.subr.bf16.mxu0 0
        %2929 = vmatpush1.bf16.msra.mxu0 0
        %2930 = vmatprep.subr.bf16.mxu0 0
        %2931 = vmatpush1.bf16.msra.mxu0 0
        %2932 = vmatprep.mubr.bf16.mxu0 0
        %2933 = vmatmul.mubr.bf16.gmra.mrb[0].mxu0 %v2886
        %v2934 = vpop.f32.mrb[0].mxu0
        %v2935 = vadd.f32 0.0, %v2934
        %v2936 = vpop.f32.mrb[0].mxu0
        %v2937 = vpop.f32.mrb[0].mxu0
        %v2938 = vadd.f32 0.0, %v2937
        %v2939 = vpop.f32.mrb[0].mxu0
        %2940 = vmatprep.mubr.bf16.mxu0 0
        %2941 = vmatmul.mubr.bf16.gmra.mrb[0].mxu0 %v2889
        %v2942 = vpop.f32.mrb[0].mxu0
        %v2943 = vadd.f32 0.0, %v2942
        %v2944 = vpop.f32.mrb[0].mxu0
        %v2945 = vpop.f32.mrb[0].mxu0
        %v2946 = vadd.f32 0.0, %v2945
        %v2947 = vpop.f32.mrb[0].mxu0
        %2948 = vmatprep.mubr.bf16.mxu0 0
        %2949 = vmatmul.mubr.bf16.gmra.mrb[0].mxu0 %v2892
        %v2950 = vpop.f32.mrb[0].mxu0
        %v2951 = vadd.f32 0.0, %v2950
        %v2952 = vpop.f32.mrb[0].mxu0
        %v2953 = vpop.f32.mrb[0].mxu0
        %v2954 = vadd.f32 0.0, %v2953
        %v2955 = vpop.f32.mrb[0].mxu0
        %2956 = vmatprep.mubr.bf16.mxu0 0
        %2957 = vmatmul.mubr.bf16.gmra.mrb[0].mxu0 %v2895
        %v2958 = vpop.f32.mrb[0].mxu0
        %v2959 = vadd.f32 0.0, %v2958
        %v2960 = vpop.f32.mrb[0].mxu0
        %v2961 = vpop.f32.mrb[0].mxu0
        %v2962 = vadd.f32 0.0, %v2961
        %v2963 = vpop.f32.mrb[0].mxu0
        %2964 = vdwg.mxu0
        %v2965 = vadd.f32 %v2378, %v2935
        %v2966 = vadd.f32 %v2379, %v2938
        %v2967 = vadd.f32 %v2380, %v2943
        %v2968 = vadd.f32 %v2381, %v2946
        %v2969 = vadd.f32 %v2382, %v2951
        %v2970 = vadd.f32 %v2383, %v2954
        %v2971 = vadd.f32 %v2384, %v2959
        %v2972 = vadd.f32 %v2385, %v2962
        %v2973 = vld [vmem:[%s5] sm:$0x1]
        %v2975 = vlaneseq
        %v2976 = vshrl.u32 %v2975, 7
        %v2977 = vsub.s32 0, %v2976
        %v2978 = vrot.slane %v2973, %v2977
        %v2980 = vadd.f32 %v2965, %v2978
        %v2981 = vadd.f32 %v2966, %v2978
        %v2982 = vadd.f32 %v2967, %v2978
        %v2983 = vadd.f32 %v2968, %v2978
        %v2984 = vadd.f32 %v2969, %v2978
        %v2985 = vadd.f32 %v2970, %v2978
        %v2986 = vadd.f32 %v2971, %v2978
        %v2987 = vadd.f32 %v2972, %v2978
        %2988 = vst [vmem:[%s313] sm:$0xff] %v2980
        %2989 = vst [vmem:[%s313 + $0x8] sm:$0xff] %v2981
        %2990 = vst [vmem:[%s313 + $0x10] sm:$0xff] %v2982
        %2991 = vst [vmem:[%s313 + $0x18] sm:$0xff] %v2983
        %2992 = vst [vmem:[%s313 + $0x20] sm:$0xff] %v2984
        %2993 = vst [vmem:[%s313 + $0x28] sm:$0xff] %v2985
        %2994 = vst [vmem:[%s313 + $0x30] sm:$0xff] %v2986
        %2995 = vst [vmem:[%s313 + $0x38] sm:$0xff] %v2987
        %s2996 = sand.u32 %s164, 1
        %s2997 = scalar_lea.sflag [#allocation4], %s2996
        %s2998 = sand.u32 %s164, 1
        %s2999 = smul.addr %s2998, 64
        %s3000 = scalar_lea.vmem [#allocation10], %s2999
        // Predicated region
        $region61: #{tpu_custom_call.1} parent=43 // pred_check
          %p3001 = pneg %p174
        $region62: #{tpu_custom_call.1} parent=43 // pred_check_branch
          %3003 = sbr.rel (%p3001) target = $region64
        $region63: #{tpu_custom_call.1} parent=43 // pred_region
          %s3004 = smul.u32 8, %s25
          %s3006 = ssub.s32 1024, 1024
          %3007 = vsyncadd %s2997, %s3006
          %s3008 = smul.addr %s3004, 128
          %s3009 = scalar_lea.hbm %s6, %s3008
          %s3010 = sshll.u32 %s3000, 4
          %s3011 = int_to_ptr.vmem [resolvable:$true] %s3010
          %3016 = dma.vmem_to_hbm [thread:$0]  %s3011, 1024, %s3009, %s2997, 128, 128, 8
        $region64: #{tpu_custom_call.1} parent=43 // pred_fallthru
          _
      $region44: #{tpu_custom_call.1} parent=5 // pred_fallthru
        _
      %p3017 = scmp.le.s32.totalorder 2, %s20
      // Predicated region
      $region65: #{tpu_custom_call.1} parent=5 // pred_check
        %p3018 = pneg %p3017
      $region66: #{tpu_custom_call.1} parent=5 // pred_check_branch
        %3020 = sbr.rel (%p3018) target = $region68
      $region67: #{tpu_custom_call.1} parent=5 // pred_region
        %s3021 = ssub.s32 %s20, 2
        // Predicated region
        $region69: #{tpu_custom_call.1} parent=67 // pred_check
          %p3022 = pneg %p180
        $region70: #{tpu_custom_call.1} parent=67 // pred_check_branch
          %3024 = sbr.rel (%p3022) target = $region72
        $region71: #{tpu_custom_call.1} parent=67 // pred_region
          %s3025 = sand.u32 %s165, 1
          %s3026 = scalar_lea.sflag [#allocation4], %s3025
          %s3027 = sand.u32 %s165, 1
          %s3028 = smul.addr %s3027, 64
          %s3029 = scalar_lea.vmem [#allocation10], %s3028
          %3030 = dma.done %s3026, 1024
        $region72: #{tpu_custom_call.1} parent=67 // pred_fallthru
          _
      $region68: #{tpu_custom_call.1} parent=5 // pred_fallthru
        _
    $region6: #{tpu_custom_call.1} parent=1 // loop_footer
      %s24 = sadd.s32 1, %s20
    $region7: #{tpu_custom_call.1} parent=1 // loop_footer_branch
      %19 = sbr.rel target = $region3
    $region8: #{tpu_custom_call.1} parent=1 // loop_exit
      _
    %3031 = vsyncpa [#allocation3], 1
    %s3032 = scalar_lea.sflag [#allocation3], 1
    %3033 = vsyncpa %s3032, 1
    %3034 = vsyncpa [#allocation6], 1
    %3035 = vsyncpa [#allocation9], 1
    %3036 = vsyncpa [#allocation4], 1
    %s3037 = scalar_lea.sflag [#allocation4], 1
    %3038 = vsyncpa %s3037, 1

</llo_original>
